<compile_context>
chip_gen: v7x
topology: tpu7x:2x2x1
jax: 0.10.0
libtpu: 0.0.40
codegen_flags: <defaults>
</compile_context>

<pallas_src>
import functools
import math
import numpy as np
import jax
import jax.numpy as jnp
from jax import lax
from jax.experimental import pallas as pl
from jax.experimental.pallas import tpu as pltpu

LANE = 128  # lane width used for all padded weight / output layouts

# ---------------- hyper-parameters (small, deterministic) -------------------
HPS = dict(
    dict_size=50,
    word_embedding_size=16,
    pos_class_num=10,
    pos_embedding_size=8,
    event_class_num=6,        # trigger_class_num
    argument_class_num=5,
    lstm_hidden_size=16,
    lstm_num_layers=1,        # TODO(synk): only 1 LSTM layer implemented
    gcn_layers=2,
    gcn_out_dim=24,
    multi_head_num=2,
    single_attention_out_dim=12,
)


# ----------------------------- Pallas kernels -------------------------------
def _linear_kernel(x_ref, w_ref, b_ref, o_ref):
    # o = x @ W + b   (single block, whole arrays resident in VMEM)
    o_ref[...] = (jnp.dot(x_ref[...], w_ref[...],
                          preferred_element_type=jnp.float32) + b_ref[...])


def linear_padded(x2d, w_bf16, b_f32):
    """[M, K] @ [K, 128] + [1, 128]; bf16 matmul inputs, f32 accumulate."""
    M = x2d.shape[0]
    N = w_bf16.shape[1]
    return pl.pallas_call(
        _linear_kernel,
        out_shape=jax.ShapeDtypeStruct((M, N), jnp.float32),
    )(x2d.astype(jnp.bfloat16), w_bf16, b_f32)


def _fused_kernel(x_ref, vmask_ref, adj_ref, amask_ref,
                  liw_ref, lib_ref, whhf_ref, whhb_ref, *rest,
                  num_gcn, num_heads, head_dim, B, S, H):
    """BiLSTM -> GCN stack -> multi-head self-attention -> trigger classifier.

    Single invocation (no grid).  Rows are flattened s-major (row = t*B + b);
    adj_ref / amask_ref are block-diagonal [B*S, B*S] so every matmul runs on
    the whole batch at once.  The only output is one lane-dense
    [B*S, 128*(2+num_heads)] f32 slab: [xg_pad | ctx_0..ctx_{nh-1} | trig_pad].
    """
    gcn_refs = rest[:2 * num_gcn]
    wqkv_ref, tw_ref, tb_ref, slab_ref, fwd_buf, bwd_buf = rest[2 * num_gcn:]

    bf16 = jnp.bfloat16

    def sigmoid(v):
        return 1.0 / (1.0 + jnp.exp(-v))

    # ---------------- BiLSTM: fused input projection + unrolled recurrence --
    proj = (jnp.dot(x_ref[...], liw_ref[...],
                    preferred_element_type=jnp.float32)
            + lib_ref[...])                            # [B*S, 8H] f32
    whh_f = whhf_ref[...]
    whh_b = whhb_ref[...]

    def cell(xp_t, h, c, whh):
        gates = xp_t + jnp.dot(h.astype(bf16), whh,
                               preferred_element_type=jnp.float32)
        i = sigmoid(gates[:, 0 * H:1 * H])
        f = sigmoid(gates[:, 1 * H:2 * H])
        g = jnp.tanh(gates[:, 2 * H:3 * H])
        o = sigmoid(gates[:, 3 * H:4 * H])
        c_new = f * c + i * g
        h_new = o * jnp.tanh(c_new)
        return h_new, c_new

    zeros = jnp.zeros((B, H), jnp.float32)

    h, c = zeros, zeros
    for t in range(S):                                 # forward direction
        valid = vmask_ref[pl.ds(t * B, B), :]          # [B, H] of {0,1} f32
        h_new, c_new = cell(proj[t * B:(t + 1) * B, 0:4 * H], h, c, whh_f)
        h = valid * h_new + (1.0 - valid) * h
        c = valid * c_new + (1.0 - valid) * c
        fwd_buf[pl.ds(t * B, B), :] = valid * h_new    # packed-seq padding -> 0

    h, c = zeros, zeros
    for t in range(S - 1, -1, -1):                     # backward direction
        valid = vmask_ref[pl.ds(t * B, B), :]
        h_new, c_new = cell(proj[t * B:(t + 1) * B, 4 * H:8 * H], h, c, whh_b)
        h = valid * h_new + (1.0 - valid) * h
        c = valid * c_new + (1.0 - valid) * c
        bwd_buf[pl.ds(t * B, B), :] = valid * h_new

    hgc = jnp.concatenate([fwd_buf[...], bwd_buf[...]], axis=-1)   # [B*S, 2H]
    # dropout(p=0.5): identity in eval/inference mode

    # ---------------- GCN layers: relu(adj_blk @ (h @ W) + b) ---------------
    adj = adj_ref[...]                                 # [B*S, B*S] bf16
    for li in range(num_gcn):
        w = gcn_refs[2 * li][...]
        bias = gcn_refs[2 * li + 1][...]
        support = jnp.dot(hgc.astype(bf16), w,
                          preferred_element_type=jnp.float32)
        hgc = jnp.maximum(
            jnp.dot(adj, support.astype(bf16),
                    preferred_element_type=jnp.float32) + bias, 0.0)
    # hgc is now the lane-padded x_gcn piece: [B*S, 128], lanes >= G are zero.

    # ---------------- multi-head self-attention ------------------------------
    qkv = jnp.dot(hgc.astype(bf16), wqkv_ref[...],
                  preferred_element_type=jnp.float32)  # [B*S, num_heads*3*128]
    amask = amask_ref[...]                             # additive mask, f32
    scale = 1.0 / math.sqrt(head_dim)
    ctxs = []
    for hh in range(num_heads):
        base = 3 * hh * LANE                           # 128-aligned slices only
        q = qkv[:, base:base + LANE].astype(bf16)
        k = qkv[:, base + LANE:base + 2 * LANE].astype(bf16)
        v = qkv[:, base + 2 * LANE:base + 3 * LANE].astype(bf16)
        s = lax.dot_general(q, k, (((1,), (1,)), ((), ())),
                            preferred_element_type=jnp.float32) * scale + amask
        m = jnp.max(s, axis=-1, keepdims=True)
        p = jnp.exp(s - m)
        inv = pl.reciprocal(jnp.sum(p, axis=-1, keepdims=True), approx=True)
        a = (p * inv).astype(bf16)
        ctxs.append(jnp.dot(a, v, preferred_element_type=jnp.float32))

    # ---------------- trigger classifier (per-head padded stacked weights) ---
    ctx_all = jnp.concatenate(ctxs, axis=-1).astype(bf16)   # 128-aligned concat
    trig = (jnp.dot(ctx_all, tw_ref[...],
                    preferred_element_type=jnp.float32) + tb_ref[...])

    # ---------------- one lane-dense store of the whole output slab ----------
    slab_ref[...] = jnp.concatenate([hgc] + ctxs + [trig], axis=-1)


def fused_dense_call(x_sm, vmask, adj_blk, amask, prep, B, S):
    num_gcn = len(prep['gcn_pad'])
    nh = HPS['multi_head_num']
    H = HPS['lstm_hidden_size']
    out_w = LANE * (2 + nh)
    kernel = functools.partial(
        _fused_kernel, num_gcn=num_gcn, num_heads=nh,
        head_dim=HPS['single_attention_out_dim'], B=B, S=S, H=H)
    gcn_flat = []
    for w, b in prep['gcn_pad']:
        gcn_flat += [w, b]
    return pl.pallas_call(
        kernel,
        out_shape=jax.ShapeDtypeStruct((B * S, out_w), jnp.float32),
        scratch_shapes=[pltpu.VMEM((B * S, H), jnp.float32),
                        pltpu.VMEM((B * S, H), jnp.float32)],
    )(x_sm, vmask, adj_blk, amask,
      prep['lstm_in_w'], prep['lstm_in_b'], prep['whh_f'], prep['whh_b'],
      *gcn_flat, prep['w_qkv_big'], prep['trig_w_big'], prep['trig_b_pad'])


# ------------------------------ parameters -----------------------------------
def init_params(key, hps):
    ks = iter(jax.random.split(key, 32))

    def nrm(shape, scale=0.1):
        return (scale * jax.random.normal(next(ks), shape)).astype(jnp.float32)

    E, P = hps['word_embedding_size'], hps['pos_embedding_size']
    rep = E + P
    H = hps['lstm_hidden_size']
    G = hps['gcn_out_dim']
    nh = hps['multi_head_num']
    dh = hps['single_attention_out_dim']
    params = dict(
        word_emb=nrm((hps['dict_size'], E), 1.0),
        pos_emb=nrm((hps['pos_class_num'], P), 1.0),
        lstm_fwd=(nrm((rep, 4 * H)), nrm((H, 4 * H)), nrm((4 * H,))),
        lstm_bwd=(nrm((rep, 4 * H)), nrm((H, 4 * H)), nrm((4 * H,))),
        wq=nrm((nh, G, dh)), wk=nrm((nh, G, dh)), wv=nrm((nh, G, dh)),
        trigger=(nrm((nh * dh, hps['event_class_num'])),
                 nrm((hps['event_class_num'],))),
        argument=(nrm((nh * dh + G, hps['argument_class_num'])),
                  nrm((hps['argument_class_num'],))),
    )
    gcns = [(nrm((2 * H, G)), nrm((G,)))]
    for _ in range(hps['gcn_layers'] - 1):
        gcns.append((nrm((G, G)), nrm((G,))))
    params['gcns'] = gcns
    return params


def prepare_params(params, hps):
    """One-time derived weights, all laid out for lane-dense in-kernel matmuls.

    NOTE: if real PyTorch LSTM weights are ported, bias_ih + bias_hh must both
    be folded into lstm_in_b (here init_params only has one bias/direction).
    """
    nh = hps['multi_head_num']
    dh = hps['single_attention_out_dim']
    H = hps['lstm_hidden_size']
    C = hps['event_class_num']
    A = hps['argument_class_num']
    bf = jnp.bfloat16
    prep = dict(params)

    wf, whhf, bfw = params['lstm_fwd']
    wb, whhb, bbw = params['lstm_bwd']
    prep['lstm_in_w'] = jnp.concatenate([wf, wb], axis=1).astype(bf)   # [rep,8H]
    prep['lstm_in_b'] = jnp.concatenate([bfw, bbw], axis=0).reshape(
        1, 8 * H).astype(jnp.float32)
    prep['whh_f'] = whhf.astype(bf)
    prep['whh_b'] = whhb.astype(bf)

    # GCN weights: output cols padded to 128 (zeros), inputs of layers >0
    # padded to 128 rows so the padded activation lanes contribute nothing.
    gcn_pad = []
    for li, (w, b) in enumerate(params['gcns']):
        win, wout = w.shape
        row_pad = (LANE - win) if li > 0 else 0
        w_p = jnp.pad(w, ((0, row_pad), (0, LANE - wout))).astype(bf)
        b_p = jnp.pad(b, (0, LANE - b.shape[0])).reshape(1, LANE).astype(
            jnp.float32)
        gcn_pad.append((w_p, b_p))
    prep['gcn_pad'] = gcn_pad

    # Stacked QKV: per-head Q/K/V blocks, each padded to [128, 128] so all
    # in-kernel slices land on 128-lane boundaries.
    def pad_block(w2):
        return jnp.pad(w2, ((0, LANE - w2.shape[0]), (0, LANE - w2.shape[1])))

    blocks = []
    for hh in range(nh):
        blocks += [pad_block(params['wq'][hh]),
                   pad_block(params['wk'][hh]),
                   pad_block(params['wv'][hh])]
    prep['w_qkv_big'] = jnp.concatenate(blocks, axis=1).astype(bf)  # [128,6*128]

    tw, tb = params['trigger']                                      # [nh*dh, C]
    tblocks = [jnp.pad(tw[hh * dh:(hh + 1) * dh, :],
                       ((0, LANE - dh), (0, LANE - C))) for hh in range(nh)]
    prep['trig_w_big'] = jnp.concatenate(tblocks, axis=0).astype(bf)  # [nh*128,128]
    prep['trig_b_pad'] = jnp.pad(tb, (0, LANE - C)).reshape(1, LANE).astype(
        jnp.float32)

    aw, ab = params['argument']
    prep['arg_w_pad'] = jnp.pad(aw, ((0, 0), (0, LANE - A))).astype(bf)
    prep['arg_b_pad'] = jnp.pad(ab, (0, LANE - A)).reshape(1, LANE).astype(
        jnp.float32)
    return prep


# --------------------------- host-side trigger logic -------------------------
def get_triggers(batch_trigger_classes, word_seq_lens, id2trigger):
    batch_triggers = []
    for i in range(batch_trigger_classes.shape[0]):
        triggers = {}
        sent = batch_trigger_classes[i]
        for j in range(int(word_seq_lens[i])):
            label = id2trigger[int(sent[j])]
            if label.startswith('B-'):
                tg_end = j + 1
                for k in range(j + 1, int(word_seq_lens[i])):
                    if id2trigger[int(sent[k])] == 'I-' + label[2:]:
                        continue
                    else:
                        tg_end = k
                        break
                triggers[(j, tg_end)] = int(sent[j])
        batch_triggers.append(triggers)
    return batch_triggers


# --------------------------------- forward -----------------------------------
@jax.jit
def dense_forward(prep, word_seqs, lens, pos_tags, adj):
    """Embedding gather -> ONE fused Pallas kernel (BiLSTM + GCNx2 + MHA +
    trigger classifier) -> argmax.  All under a single jit."""
    B, S = word_seqs.shape
    H = HPS['lstm_hidden_size']
    G = HPS['gcn_out_dim']
    nh = HPS['multi_head_num']
    dh = HPS['single_attention_out_dim']
    C = HPS['event_class_num']

    kv = (jnp.arange(S)[None, :] < lens[:, None]).astype(jnp.float32)  # [B,S]
    mask = kv.astype(jnp.uint8)

    x = jnp.concatenate([prep['word_emb'][word_seqs],
                         prep['pos_emb'][pos_tags]], axis=-1)          # [B,S,rep]
    # s-major flattening (row = t*B + b) so per-timestep rows are contiguous.
    x_sm = jnp.transpose(x, (1, 0, 2)).reshape(B * S, -1).astype(jnp.bfloat16)
    vmask = jnp.broadcast_to(kv.T.reshape(B * S, 1), (B * S, H)).astype(
        jnp.float32)

    eye_b = jnp.eye(B, dtype=jnp.float32)
    adj_blk = jnp.einsum('bij,bc->ibjc', adj.astype(jnp.float32),
                         eye_b).reshape(B * S, B * S).astype(jnp.bfloat16)
    allowed = jnp.einsum('bc,cj->bjc', eye_b, kv)                      # [B,S,B]
    amask = jnp.where(jnp.broadcast_to(allowed[None], (S, B, S, B)) > 0.0,
                      0.0, -1e9).reshape(B * S, B * S).astype(jnp.float32)

    slab = fused_dense_call(x_sm, vmask, adj_blk, amask, prep, B, S)
    slab = slab.reshape(S, B, -1).transpose(1, 0, 2)                   # [B,S,*]

    x_gcn = slab[:, :, 0:G]
    x_attn = jnp.concatenate(
        [slab[:, :, LANE * (1 + h):LANE * (1 + h) + dh] for h in range(nh)],
        axis=-1)
    trigger_logits = slab[:, :, LANE * (1 + nh):LANE * (1 + nh) + C]
    trigger_classes = jnp.argmax(trigger_logits, axis=-1).astype(jnp.int32)
    return mask, x_gcn, x_attn, trigger_logits, trigger_classes


def model_forward(prep, word_seqs, word_seq_lens, pos_tags, adj,
                  entities, id2trigger):
    lens = jnp.asarray(word_seq_lens, jnp.int32)
    mask, x_gcn, x_attn, trigger_logits, trigger_classes = dense_forward(
        prep, word_seqs, lens, pos_tags, adj)

    # NaN asserts of the original module omitted on the hot path (they force a
    # blocking host sync); single device->host transfer after the jitted path.
    trigger_classes_np, x_attn_np, x_gcn_np, lens_np = jax.device_get(
        (trigger_classes, x_attn, x_gcn, lens))
    batch_triggers = get_triggers(trigger_classes_np, lens_np, id2trigger)

    # TODO(synk): data-dependent trigger/entity pairing is inherently host-side
    # Python (dict-of-variable-length outputs); the classifier matmul for ALL
    # pairs across the batch runs in one bucketed Pallas linear call.
    B = word_seqs.shape[0]
    A = HPS['argument_class_num']
    batch_args = [dict() for _ in range(B)]
    pair_rows, pair_index = [], []
    for i in range(B):
        if len(entities[i]) == 0:
            continue
        for trig in batch_triggers[i].keys():
            t0, t1 = trig
            trig_rep = x_attn_np[i, t0:t1].sum(axis=0) / (t1 - t0)
            for (es, ee, _et) in entities[i]:
                ent_rep = x_gcn_np[i, es:ee].sum(axis=0) / (ee - es)
                pair_rows.append(
                    np.concatenate([trig_rep, ent_rep]).astype(np.float32))
            pair_index.append((i, trig, len(entities[i])))

    if pair_rows:
        n = len(pair_rows)
        bucket = max(8, pl.next_power_of_2(n))   # cap distinct Mosaic compiles
        rows = np.zeros((bucket, pair_rows[0].shape[0]), np.float32)
        rows[:n] = np.stack(pair_rows)
        all_logits = linear_padded(jnp.asarray(rows), prep['arg_w_pad'],
                                   prep['arg_b_pad'])[:n, :A]
        off = 0
        for (i, trig, cnt) in pair_index:
            batch_args[i][trig] = all_logits[off:off + cnt]
            off += cnt

    return mask, trigger_logits, batch_args


# ----------------------------------- main ------------------------------------
if __name__ == "__main__":
    key = jax.random.PRNGKey(0)
    k1, k2, k3 = jax.random.split(key, 3)
    B, S = 2, 8
    word_seqs = jax.random.randint(k1, (B, S), 0, HPS['dict_size'])
    pos_tags = jax.random.randint(k2, (B, S), 0, HPS['pos_class_num'])
    word_seq_lens = jnp.array([8, 6], dtype=jnp.int32)
    adj = (jax.random.uniform(k3, (B, S, S)) > 0.7).astype(jnp.float32)
    adj = jnp.minimum(adj + jnp.eye(S, dtype=jnp.float32), 1.0)
    entities = [[(0, 2, 'PER')], [(1, 3, 'ORG')]]
    id2trigger = {0: 'O', 1: 'B-Attack', 2: 'I-Attack',
                  3: 'B-Die', 4: 'I-Die', 5: 'B-Meet'}

    params = init_params(jax.random.PRNGKey(42), HPS)
    prep = prepare_params(params, HPS)

    mask, trigger_logits, arg_logits = model_forward(
        prep, word_seqs, word_seq_lens, pos_tags, adj, entities, id2trigger)

    jax.block_until_ready(mask)
    jax.block_until_ready(trigger_logits)
    for d in arg_logits:
        for v in d.values():
            jax.block_until_ready(v)
    print("KERNEL_OK")
</pallas_src>

<mosaic_0001>
module attributes {stable_mosaic.version = 11 : i64} {
  func.func @_fused_kernel(%arg0: memref<16x24xbf16, #tpu.memory_space<vmem>>, %arg1: memref<16x16xf32, #tpu.memory_space<vmem>>, %arg2: memref<16x16xbf16, #tpu.memory_space<vmem>>, %arg3: memref<16x16xf32, #tpu.memory_space<vmem>>, %arg4: memref<24x128xbf16, #tpu.memory_space<vmem>>, %arg5: memref<1x128xf32, #tpu.memory_space<vmem>>, %arg6: memref<16x64xbf16, #tpu.memory_space<vmem>>, %arg7: memref<16x64xbf16, #tpu.memory_space<vmem>>, %arg8: memref<32x128xbf16, #tpu.memory_space<vmem>>, %arg9: memref<1x128xf32, #tpu.memory_space<vmem>>, %arg10: memref<128x128xbf16, #tpu.memory_space<vmem>>, %arg11: memref<1x128xf32, #tpu.memory_space<vmem>>, %arg12: memref<128x768xbf16, #tpu.memory_space<vmem>>, %arg13: memref<256x128xbf16, #tpu.memory_space<vmem>>, %arg14: memref<1x128xf32, #tpu.memory_space<vmem>>, %arg15: memref<16x512xf32, #tpu.memory_space<vmem>>, %arg16: memref<16x16xf32, #tpu.memory_space<vmem>>, %arg17: memref<16x16xf32, #tpu.memory_space<vmem>>) attributes {dimension_semantics = [], scalar_prefetch = 0 : i64, scratch_operands = 2 : i64, tpu.core_type = #tpu.core_type<tc>} {
    %c0 = arith.constant 0 : index
    %c0_0 = arith.constant 0 : index
    %0 = vector.load %arg0[%c0, %c0_0] : memref<16x24xbf16, #tpu.memory_space<vmem>>, vector<16x24xbf16>
    %c0_1 = arith.constant 0 : index
    %c0_2 = arith.constant 0 : index
    %1 = vector.load %arg4[%c0_1, %c0_2] : memref<24x128xbf16, #tpu.memory_space<vmem>>, vector<24x128xbf16>
    %cst = arith.constant dense<0.000000e+00> : vector<16x128xf32>
    %2 = tpu.matmul %0, %1, %cst {dimension_numbers = #tpu.dot_dimension_numbers<[1], [0], [0], [1], [0, 0, 1, 1], [], []>} : vector<16x24xbf16>, vector<24x128xbf16>, vector<16x128xf32> -> vector<16x128xf32>
    %c0_3 = arith.constant 0 : index
    %c0_4 = arith.constant 0 : index
    %3 = vector.load %arg5[%c0_3, %c0_4] : memref<1x128xf32, #tpu.memory_space<vmem>>, vector<1x128xf32>
    %4 = vector.broadcast %3 : vector<1x128xf32> to vector<16x128xf32>
    %5 = arith.addf %2, %4 : vector<16x128xf32>
    %c0_5 = arith.constant 0 : index
    %c0_6 = arith.constant 0 : index
    %6 = vector.load %arg6[%c0_5, %c0_6] : memref<16x64xbf16, #tpu.memory_space<vmem>>, vector<16x64xbf16>
    %c0_7 = arith.constant 0 : index
    %c0_8 = arith.constant 0 : index
    %7 = vector.load %arg7[%c0_7, %c0_8] : memref<16x64xbf16, #tpu.memory_space<vmem>>, vector<16x64xbf16>
    %cst_9 = arith.constant 0.000000e+00 : f32
    %8 = vector.broadcast %cst_9 : f32 to vector<2x16xf32>
    %c0_10 = arith.constant 0 : index
    %c0_11 = arith.constant 0 : index
    %9 = vector.load %arg1[%c0_10, %c0_11] : memref<16x16xf32, #tpu.memory_space<vmem>>, vector<2x16xf32>
    %10 = vector.extract_strided_slice %5 {offsets = [0, 0], sizes = [2, 64], strides = [1, 1]} : vector<16x128xf32> to vector<2x64xf32>
    %11 = arith.truncf %8 : vector<2x16xf32> to vector<2x16xbf16>
    %cst_12 = arith.constant dense<0.000000e+00> : vector<2x64xf32>
    %12 = tpu.matmul %11, %6, %cst_12 {dimension_numbers = #tpu.dot_dimension_numbers<[1], [0], [0], [1], [0, 0, 1, 1], [], []>} : vector<2x16xbf16>, vector<16x64xbf16>, vector<2x64xf32> -> vector<2x64xf32>
    %13 = arith.addf %10, %12 : vector<2x64xf32>
    %14 = vector.extract_strided_slice %13 {offsets = [0, 0], sizes = [2, 16], strides = [1, 1]} : vector<2x64xf32> to vector<2x16xf32>
    %cst_13 = arith.constant 0.000000e+00 : f32
    %15 = vector.broadcast %cst_13 : f32 to vector<2x16xf32>
    %16 = arith.subf %15, %14 : vector<2x16xf32>
    %17 = math.exp %16 : vector<2x16xf32>
    %cst_14 = arith.constant 1.000000e+00 : f32
    %18 = vector.broadcast %cst_14 : f32 to vector<2x16xf32>
    %19 = arith.addf %18, %17 : vector<2x16xf32>
    %cst_15 = arith.constant 1.000000e+00 : f32
    %20 = vector.broadcast %cst_15 : f32 to vector<2x16xf32>
    %21 = arith.divf %20, %19 : vector<2x16xf32>
    %22 = vector.extract_strided_slice %13 {offsets = [0, 16], sizes = [2, 16], strides = [1, 1]} : vector<2x64xf32> to vector<2x16xf32>
    %cst_16 = arith.constant 0.000000e+00 : f32
    %23 = vector.broadcast %cst_16 : f32 to vector<2x16xf32>
    %24 = arith.subf %23, %22 : vector<2x16xf32>
    %25 = math.exp %24 : vector<2x16xf32>
    %cst_17 = arith.constant 1.000000e+00 : f32
    %26 = vector.broadcast %cst_17 : f32 to vector<2x16xf32>
    %27 = arith.addf %26, %25 : vector<2x16xf32>
    %cst_18 = arith.constant 1.000000e+00 : f32
    %28 = vector.broadcast %cst_18 : f32 to vector<2x16xf32>
    %29 = arith.divf %28, %27 : vector<2x16xf32>
    %30 = vector.extract_strided_slice %13 {offsets = [0, 32], sizes = [2, 16], strides = [1, 1]} : vector<2x64xf32> to vector<2x16xf32>
    %31 = math.tanh %30 : vector<2x16xf32>
    %32 = vector.extract_strided_slice %13 {offsets = [0, 48], sizes = [2, 16], strides = [1, 1]} : vector<2x64xf32> to vector<2x16xf32>
    %cst_19 = arith.constant 0.000000e+00 : f32
    %33 = vector.broadcast %cst_19 : f32 to vector<2x16xf32>
    %34 = arith.subf %33, %32 : vector<2x16xf32>
    %35 = math.exp %34 : vector<2x16xf32>
    %cst_20 = arith.constant 1.000000e+00 : f32
    %36 = vector.broadcast %cst_20 : f32 to vector<2x16xf32>
    %37 = arith.addf %36, %35 : vector<2x16xf32>
    %cst_21 = arith.constant 1.000000e+00 : f32
    %38 = vector.broadcast %cst_21 : f32 to vector<2x16xf32>
    %39 = arith.divf %38, %37 : vector<2x16xf32>
    %40 = arith.mulf %29, %8 : vector<2x16xf32>
    %41 = arith.mulf %21, %31 : vector<2x16xf32>
    %42 = arith.addf %40, %41 : vector<2x16xf32>
    %43 = math.tanh %42 : vector<2x16xf32>
    %44 = arith.mulf %39, %43 : vector<2x16xf32>
    %45 = arith.mulf %9, %44 : vector<2x16xf32>
    %cst_22 = arith.constant 1.000000e+00 : f32
    %46 = vector.broadcast %cst_22 : f32 to vector<2x16xf32>
    %47 = arith.subf %46, %9 : vector<2x16xf32>
    %48 = arith.mulf %47, %8 : vector<2x16xf32>
    %49 = arith.addf %45, %48 : vector<2x16xf32>
    %50 = arith.mulf %9, %42 : vector<2x16xf32>
    %cst_23 = arith.constant 1.000000e+00 : f32
    %51 = vector.broadcast %cst_23 : f32 to vector<2x16xf32>
    %52 = arith.subf %51, %9 : vector<2x16xf32>
    %53 = arith.mulf %52, %8 : vector<2x16xf32>
    %54 = arith.addf %50, %53 : vector<2x16xf32>
    %55 = arith.mulf %9, %44 : vector<2x16xf32>
    %c0_24 = arith.constant 0 : index
    %c0_25 = arith.constant 0 : index
    %56 = vector.load %arg16[%c0_24, %c0_25] : memref<16x16xf32, #tpu.memory_space<vmem>>, vector<2x16xf32>
    tpu.vector_store %arg16[%c0_24, %c0_25], %55 {strides = array<i32>} : memref<16x16xf32, #tpu.memory_space<vmem>>, vector<2x16xf32>,
    %c2 = arith.constant 2 : index
    %c0_26 = arith.constant 0 : index
    %57 = vector.load %arg1[%c2, %c0_26] : memref<16x16xf32, #tpu.memory_space<vmem>>, vector<2x16xf32>
    %58 = vector.extract_strided_slice %5 {offsets = [2, 0], sizes = [2, 64], strides = [1, 1]} : vector<16x128xf32> to vector<2x64xf32>
    %59 = arith.truncf %49 : vector<2x16xf32> to vector<2x16xbf16>
    %cst_27 = arith.constant dense<0.000000e+00> : vector<2x64xf32>
    %60 = tpu.matmul %59, %6, %cst_27 {dimension_numbers = #tpu.dot_dimension_numbers<[1], [0], [0], [1], [0, 0, 1, 1], [], []>} : vector<2x16xbf16>, vector<16x64xbf16>, vector<2x64xf32> -> vector<2x64xf32>
    %61 = arith.addf %58, %60 : vector<2x64xf32>
    %62 = vector.extract_strided_slice %61 {offsets = [0, 0], sizes = [2, 16], strides = [1, 1]} : vector<2x64xf32> to vector<2x16xf32>
    %cst_28 = arith.constant 0.000000e+00 : f32
    %63 = vector.broadcast %cst_28 : f32 to vector<2x16xf32>
    %64 = arith.subf %63, %62 : vector<2x16xf32>
    %65 = math.exp %64 : vector<2x16xf32>
    %cst_29 = arith.constant 1.000000e+00 : f32
    %66 = vector.broadcast %cst_29 : f32 to vector<2x16xf32>
    %67 = arith.addf %66, %65 : vector<2x16xf32>
    %cst_30 = arith.constant 1.000000e+00 : f32
    %68 = vector.broadcast %cst_30 : f32 to vector<2x16xf32>
    %69 = arith.divf %68, %67 : vector<2x16xf32>
    %70 = vector.extract_strided_slice %61 {offsets = [0, 16], sizes = [2, 16], strides = [1, 1]} : vector<2x64xf32> to vector<2x16xf32>
    %cst_31 = arith.constant 0.000000e+00 : f32
    %71 = vector.broadcast %cst_31 : f32 to vector<2x16xf32>
    %72 = arith.subf %71, %70 : vector<2x16xf32>
    %73 = math.exp %72 : vector<2x16xf32>
    %cst_32 = arith.constant 1.000000e+00 : f32
    %74 = vector.broadcast %cst_32 : f32 to vector<2x16xf32>
    %75 = arith.addf %74, %73 : vector<2x16xf32>
    %cst_33 = arith.constant 1.000000e+00 : f32
    %76 = vector.broadcast %cst_33 : f32 to vector<2x16xf32>
    %77 = arith.divf %76, %75 : vector<2x16xf32>
    %78 = vector.extract_strided_slice %61 {offsets = [0, 32], sizes = [2, 16], strides = [1, 1]} : vector<2x64xf32> to vector<2x16xf32>
    %79 = math.tanh %78 : vector<2x16xf32>
    %80 = vector.extract_strided_slice %61 {offsets = [0, 48], sizes = [2, 16], strides = [1, 1]} : vector<2x64xf32> to vector<2x16xf32>
    %cst_34 = arith.constant 0.000000e+00 : f32
    %81 = vector.broadcast %cst_34 : f32 to vector<2x16xf32>
    %82 = arith.subf %81, %80 : vector<2x16xf32>
    %83 = math.exp %82 : vector<2x16xf32>
    %cst_35 = arith.constant 1.000000e+00 : f32
    %84 = vector.broadcast %cst_35 : f32 to vector<2x16xf32>
    %85 = arith.addf %84, %83 : vector<2x16xf32>
    %cst_36 = arith.constant 1.000000e+00 : f32
    %86 = vector.broadcast %cst_36 : f32 to vector<2x16xf32>
    %87 = arith.divf %86, %85 : vector<2x16xf32>
    %88 = arith.mulf %77, %54 : vector<2x16xf32>
    %89 = arith.mulf %69, %79 : vector<2x16xf32>
    %90 = arith.addf %88, %89 : vector<2x16xf32>
    %91 = math.tanh %90 : vector<2x16xf32>
    %92 = arith.mulf %87, %91 : vector<2x16xf32>
    %93 = arith.mulf %57, %92 : vector<2x16xf32>
    %cst_37 = arith.constant 1.000000e+00 : f32
    %94 = vector.broadcast %cst_37 : f32 to vector<2x16xf32>
    %95 = arith.subf %94, %57 : vector<2x16xf32>
    %96 = arith.mulf %95, %49 : vector<2x16xf32>
    %97 = arith.addf %93, %96 : vector<2x16xf32>
    %98 = arith.mulf %57, %90 : vector<2x16xf32>
    %cst_38 = arith.constant 1.000000e+00 : f32
    %99 = vector.broadcast %cst_38 : f32 to vector<2x16xf32>
    %100 = arith.subf %99, %57 : vector<2x16xf32>
    %101 = arith.mulf %100, %54 : vector<2x16xf32>
    %102 = arith.addf %98, %101 : vector<2x16xf32>
    %103 = arith.mulf %57, %92 : vector<2x16xf32>
    %c2_39 = arith.constant 2 : index
    %c0_40 = arith.constant 0 : index
    %104 = vector.load %arg16[%c2_39, %c0_40] : memref<16x16xf32, #tpu.memory_space<vmem>>, vector<2x16xf32>
    tpu.vector_store %arg16[%c2_39, %c0_40], %103 {strides = array<i32>} : memref<16x16xf32, #tpu.memory_space<vmem>>, vector<2x16xf32>,
    %c4 = arith.constant 4 : index
    %c0_41 = arith.constant 0 : index
    %105 = vector.load %arg1[%c4, %c0_41] : memref<16x16xf32, #tpu.memory_space<vmem>>, vector<2x16xf32>
    %106 = vector.extract_strided_slice %5 {offsets = [4, 0], sizes = [2, 64], strides = [1, 1]} : vector<16x128xf32> to vector<2x64xf32>
    %107 = arith.truncf %97 : vector<2x16xf32> to vector<2x16xbf16>
    %cst_42 = arith.constant dense<0.000000e+00> : vector<2x64xf32>
    %108 = tpu.matmul %107, %6, %cst_42 {dimension_numbers = #tpu.dot_dimension_numbers<[1], [0], [0], [1], [0, 0, 1, 1], [], []>} : vector<2x16xbf16>, vector<16x64xbf16>, vector<2x64xf32> -> vector<2x64xf32>
    %109 = arith.addf %106, %108 : vector<2x64xf32>
    %110 = vector.extract_strided_slice %109 {offsets = [0, 0], sizes = [2, 16], strides = [1, 1]} : vector<2x64xf32> to vector<2x16xf32>
    %cst_43 = arith.constant 0.000000e+00 : f32
    %111 = vector.broadcast %cst_43 : f32 to vector<2x16xf32>
    %112 = arith.subf %111, %110 : vector<2x16xf32>
    %113 = math.exp %112 : vector<2x16xf32>
    %cst_44 = arith.constant 1.000000e+00 : f32
    %114 = vector.broadcast %cst_44 : f32 to vector<2x16xf32>
    %115 = arith.addf %114, %113 : vector<2x16xf32>
    %cst_45 = arith.constant 1.000000e+00 : f32
    %116 = vector.broadcast %cst_45 : f32 to vector<2x16xf32>
    %117 = arith.divf %116, %115 : vector<2x16xf32>
    %118 = vector.extract_strided_slice %109 {offsets = [0, 16], sizes = [2, 16], strides = [1, 1]} : vector<2x64xf32> to vector<2x16xf32>
    %cst_46 = arith.constant 0.000000e+00 : f32
    %119 = vector.broadcast %cst_46 : f32 to vector<2x16xf32>
    %120 = arith.subf %119, %118 : vector<2x16xf32>
    %121 = math.exp %120 : vector<2x16xf32>
    %cst_47 = arith.constant 1.000000e+00 : f32
    %122 = vector.broadcast %cst_47 : f32 to vector<2x16xf32>
    %123 = arith.addf %122, %121 : vector<2x16xf32>
    %cst_48 = arith.constant 1.000000e+00 : f32
    %124 = vector.broadcast %cst_48 : f32 to vector<2x16xf32>
    %125 = arith.divf %124, %123 : vector<2x16xf32>
    %126 = vector.extract_strided_slice %109 {offsets = [0, 32], sizes = [2, 16], strides = [1, 1]} : vector<2x64xf32> to vector<2x16xf32>
    %127 = math.tanh %126 : vector<2x16xf32>
    %128 = vector.extract_strided_slice %109 {offsets = [0, 48], sizes = [2, 16], strides = [1, 1]} : vector<2x64xf32> to vector<2x16xf32>
    %cst_49 = arith.constant 0.000000e+00 : f32
    %129 = vector.broadcast %cst_49 : f32 to vector<2x16xf32>
    %130 = arith.subf %129, %128 : vector<2x16xf32>
    %131 = math.exp %130 : vector<2x16xf32>
    %cst_50 = arith.constant 1.000000e+00 : f32
    %132 = vector.broadcast %cst_50 : f32 to vector<2x16xf32>
    %133 = arith.addf %132, %131 : vector<2x16xf32>
    %cst_51 = arith.constant 1.000000e+00 : f32
    %134 = vector.broadcast %cst_51 : f32 to vector<2x16xf32>
    %135 = arith.divf %134, %133 : vector<2x16xf32>
    %136 = arith.mulf %125, %102 : vector<2x16xf32>
    %137 = arith.mulf %117, %127 : vector<2x16xf32>
    %138 = arith.addf %136, %137 : vector<2x16xf32>
    %139 = math.tanh %138 : vector<2x16xf32>
    %140 = arith.mulf %135, %139 : vector<2x16xf32>
    %141 = arith.mulf %105, %140 : vector<2x16xf32>
    %cst_52 = arith.constant 1.000000e+00 : f32
    %142 = vector.broadcast %cst_52 : f32 to vector<2x16xf32>
    %143 = arith.subf %142, %105 : vector<2x16xf32>
    %144 = arith.mulf %143, %97 : vector<2x16xf32>
    %145 = arith.addf %141, %144 : vector<2x16xf32>
    %146 = arith.mulf %105, %138 : vector<2x16xf32>
    %cst_53 = arith.constant 1.000000e+00 : f32
    %147 = vector.broadcast %cst_53 : f32 to vector<2x16xf32>
    %148 = arith.subf %147, %105 : vector<2x16xf32>
    %149 = arith.mulf %148, %102 : vector<2x16xf32>
    %150 = arith.addf %146, %149 : vector<2x16xf32>
    %151 = arith.mulf %105, %140 : vector<2x16xf32>
    %c4_54 = arith.constant 4 : index
    %c0_55 = arith.constant 0 : index
    %152 = vector.load %arg16[%c4_54, %c0_55] : memref<16x16xf32, #tpu.memory_space<vmem>>, vector<2x16xf32>
    tpu.vector_store %arg16[%c4_54, %c0_55], %151 {strides = array<i32>} : memref<16x16xf32, #tpu.memory_space<vmem>>, vector<2x16xf32>,
    %c6 = arith.constant 6 : index
    %c0_56 = arith.constant 0 : index
    %153 = vector.load %arg1[%c6, %c0_56] : memref<16x16xf32, #tpu.memory_space<vmem>>, vector<2x16xf32>
    %154 = vector.extract_strided_slice %5 {offsets = [6, 0], sizes = [2, 64], strides = [1, 1]} : vector<16x128xf32> to vector<2x64xf32>
    %155 = arith.truncf %145 : vector<2x16xf32> to vector<2x16xbf16>
    %cst_57 = arith.constant dense<0.000000e+00> : vector<2x64xf32>
    %156 = tpu.matmul %155, %6, %cst_57 {dimension_numbers = #tpu.dot_dimension_numbers<[1], [0], [0], [1], [0, 0, 1, 1], [], []>} : vector<2x16xbf16>, vector<16x64xbf16>, vector<2x64xf32> -> vector<2x64xf32>
    %157 = arith.addf %154, %156 : vector<2x64xf32>
    %158 = vector.extract_strided_slice %157 {offsets = [0, 0], sizes = [2, 16], strides = [1, 1]} : vector<2x64xf32> to vector<2x16xf32>
    %cst_58 = arith.constant 0.000000e+00 : f32
    %159 = vector.broadcast %cst_58 : f32 to vector<2x16xf32>
    %160 = arith.subf %159, %158 : vector<2x16xf32>
    %161 = math.exp %160 : vector<2x16xf32>
    %cst_59 = arith.constant 1.000000e+00 : f32
    %162 = vector.broadcast %cst_59 : f32 to vector<2x16xf32>
    %163 = arith.addf %162, %161 : vector<2x16xf32>
    %cst_60 = arith.constant 1.000000e+00 : f32
    %164 = vector.broadcast %cst_60 : f32 to vector<2x16xf32>
    %165 = arith.divf %164, %163 : vector<2x16xf32>
    %166 = vector.extract_strided_slice %157 {offsets = [0, 16], sizes = [2, 16], strides = [1, 1]} : vector<2x64xf32> to vector<2x16xf32>
    %cst_61 = arith.constant 0.000000e+00 : f32
    %167 = vector.broadcast %cst_61 : f32 to vector<2x16xf32>
    %168 = arith.subf %167, %166 : vector<2x16xf32>
    %169 = math.exp %168 : vector<2x16xf32>
    %cst_62 = arith.constant 1.000000e+00 : f32
    %170 = vector.broadcast %cst_62 : f32 to vector<2x16xf32>
    %171 = arith.addf %170, %169 : vector<2x16xf32>
    %cst_63 = arith.constant 1.000000e+00 : f32
    %172 = vector.broadcast %cst_63 : f32 to vector<2x16xf32>
    %173 = arith.divf %172, %171 : vector<2x16xf32>
    %174 = vector.extract_strided_slice %157 {offsets = [0, 32], sizes = [2, 16], strides = [1, 1]} : vector<2x64xf32> to vector<2x16xf32>
    %175 = math.tanh %174 : vector<2x16xf32>
    %176 = vector.extract_strided_slice %157 {offsets = [0, 48], sizes = [2, 16], strides = [1, 1]} : vector<2x64xf32> to vector<2x16xf32>
    %cst_64 = arith.constant 0.000000e+00 : f32
    %177 = vector.broadcast %cst_64 : f32 to vector<2x16xf32>
    %178 = arith.subf %177, %176 : vector<2x16xf32>
    %179 = math.exp %178 : vector<2x16xf32>
    %cst_65 = arith.constant 1.000000e+00 : f32
    %180 = vector.broadcast %cst_65 : f32 to vector<2x16xf32>
    %181 = arith.addf %180, %179 : vector<2x16xf32>
    %cst_66 = arith.constant 1.000000e+00 : f32
    %182 = vector.broadcast %cst_66 : f32 to vector<2x16xf32>
    %183 = arith.divf %182, %181 : vector<2x16xf32>
    %184 = arith.mulf %173, %150 : vector<2x16xf32>
    %185 = arith.mulf %165, %175 : vector<2x16xf32>
    %186 = arith.addf %184, %185 : vector<2x16xf32>
    %187 = math.tanh %186 : vector<2x16xf32>
    %188 = arith.mulf %183, %187 : vector<2x16xf32>
    %189 = arith.mulf %153, %188 : vector<2x16xf32>
    %cst_67 = arith.constant 1.000000e+00 : f32
    %190 = vector.broadcast %cst_67 : f32 to vector<2x16xf32>
    %191 = arith.subf %190, %153 : vector<2x16xf32>
    %192 = arith.mulf %191, %145 : vector<2x16xf32>
    %193 = arith.addf %189, %192 : vector<2x16xf32>
    %194 = arith.mulf %153, %186 : vector<2x16xf32>
    %cst_68 = arith.constant 1.000000e+00 : f32
    %195 = vector.broadcast %cst_68 : f32 to vector<2x16xf32>
    %196 = arith.subf %195, %153 : vector<2x16xf32>
    %197 = arith.mulf %196, %150 : vector<2x16xf32>
    %198 = arith.addf %194, %197 : vector<2x16xf32>
    %199 = arith.mulf %153, %188 : vector<2x16xf32>
    %c6_69 = arith.constant 6 : index
    %c0_70 = arith.constant 0 : index
    %200 = vector.load %arg16[%c6_69, %c0_70] : memref<16x16xf32, #tpu.memory_space<vmem>>, vector<2x16xf32>
    tpu.vector_store %arg16[%c6_69, %c0_70], %199 {strides = array<i32>} : memref<16x16xf32, #tpu.memory_space<vmem>>, vector<2x16xf32>,
    %c8 = arith.constant 8 : index
    %c0_71 = arith.constant 0 : index
    %201 = vector.load %arg1[%c8, %c0_71] : memref<16x16xf32, #tpu.memory_space<vmem>>, vector<2x16xf32>
    %202 = vector.extract_strided_slice %5 {offsets = [8, 0], sizes = [2, 64], strides = [1, 1]} : vector<16x128xf32> to vector<2x64xf32>
    %203 = arith.truncf %193 : vector<2x16xf32> to vector<2x16xbf16>
    %cst_72 = arith.constant dense<0.000000e+00> : vector<2x64xf32>
    %204 = tpu.matmul %203, %6, %cst_72 {dimension_numbers = #tpu.dot_dimension_numbers<[1], [0], [0], [1], [0, 0, 1, 1], [], []>} : vector<2x16xbf16>, vector<16x64xbf16>, vector<2x64xf32> -> vector<2x64xf32>
    %205 = arith.addf %202, %204 : vector<2x64xf32>
    %206 = vector.extract_strided_slice %205 {offsets = [0, 0], sizes = [2, 16], strides = [1, 1]} : vector<2x64xf32> to vector<2x16xf32>
    %cst_73 = arith.constant 0.000000e+00 : f32
    %207 = vector.broadcast %cst_73 : f32 to vector<2x16xf32>
    %208 = arith.subf %207, %206 : vector<2x16xf32>
    %209 = math.exp %208 : vector<2x16xf32>
    %cst_74 = arith.constant 1.000000e+00 : f32
    %210 = vector.broadcast %cst_74 : f32 to vector<2x16xf32>
    %211 = arith.addf %210, %209 : vector<2x16xf32>
    %cst_75 = arith.constant 1.000000e+00 : f32
    %212 = vector.broadcast %cst_75 : f32 to vector<2x16xf32>
    %213 = arith.divf %212, %211 : vector<2x16xf32>
    %214 = vector.extract_strided_slice %205 {offsets = [0, 16], sizes = [2, 16], strides = [1, 1]} : vector<2x64xf32> to vector<2x16xf32>
    %cst_76 = arith.constant 0.000000e+00 : f32
    %215 = vector.broadcast %cst_76 : f32 to vector<2x16xf32>
    %216 = arith.subf %215, %214 : vector<2x16xf32>
    %217 = math.exp %216 : vector<2x16xf32>
    %cst_77 = arith.constant 1.000000e+00 : f32
    %218 = vector.broadcast %cst_77 : f32 to vector<2x16xf32>
    %219 = arith.addf %218, %217 : vector<2x16xf32>
    %cst_78 = arith.constant 1.000000e+00 : f32
    %220 = vector.broadcast %cst_78 : f32 to vector<2x16xf32>
    %221 = arith.divf %220, %219 : vector<2x16xf32>
    %222 = vector.extract_strided_slice %205 {offsets = [0, 32], sizes = [2, 16], strides = [1, 1]} : vector<2x64xf32> to vector<2x16xf32>
    %223 = math.tanh %222 : vector<2x16xf32>
    %224 = vector.extract_strided_slice %205 {offsets = [0, 48], sizes = [2, 16], strides = [1, 1]} : vector<2x64xf32> to vector<2x16xf32>
    %cst_79 = arith.constant 0.000000e+00 : f32
    %225 = vector.broadcast %cst_79 : f32 to vector<2x16xf32>
    %226 = arith.subf %225, %224 : vector<2x16xf32>
    %227 = math.exp %226 : vector<2x16xf32>
    %cst_80 = arith.constant 1.000000e+00 : f32
    %228 = vector.broadcast %cst_80 : f32 to vector<2x16xf32>
    %229 = arith.addf %228, %227 : vector<2x16xf32>
    %cst_81 = arith.constant 1.000000e+00 : f32
    %230 = vector.broadcast %cst_81 : f32 to vector<2x16xf32>
    %231 = arith.divf %230, %229 : vector<2x16xf32>
    %232 = arith.mulf %221, %198 : vector<2x16xf32>
    %233 = arith.mulf %213, %223 : vector<2x16xf32>
    %234 = arith.addf %232, %233 : vector<2x16xf32>
    %235 = math.tanh %234 : vector<2x16xf32>
    %236 = arith.mulf %231, %235 : vector<2x16xf32>
    %237 = arith.mulf %201, %236 : vector<2x16xf32>
    %cst_82 = arith.constant 1.000000e+00 : f32
    %238 = vector.broadcast %cst_82 : f32 to vector<2x16xf32>
    %239 = arith.subf %238, %201 : vector<2x16xf32>
    %240 = arith.mulf %239, %193 : vector<2x16xf32>
    %241 = arith.addf %237, %240 : vector<2x16xf32>
    %242 = arith.mulf %201, %234 : vector<2x16xf32>
    %cst_83 = arith.constant 1.000000e+00 : f32
    %243 = vector.broadcast %cst_83 : f32 to vector<2x16xf32>
    %244 = arith.subf %243, %201 : vector<2x16xf32>
    %245 = arith.mulf %244, %198 : vector<2x16xf32>
    %246 = arith.addf %242, %245 : vector<2x16xf32>
    %247 = arith.mulf %201, %236 : vector<2x16xf32>
    %c8_84 = arith.constant 8 : index
    %c0_85 = arith.constant 0 : index
    %248 = vector.load %arg16[%c8_84, %c0_85] : memref<16x16xf32, #tpu.memory_space<vmem>>, vector<2x16xf32>
    tpu.vector_store %arg16[%c8_84, %c0_85], %247 {strides = array<i32>} : memref<16x16xf32, #tpu.memory_space<vmem>>, vector<2x16xf32>,
    %c10 = arith.constant 10 : index
    %c0_86 = arith.constant 0 : index
    %249 = vector.load %arg1[%c10, %c0_86] : memref<16x16xf32, #tpu.memory_space<vmem>>, vector<2x16xf32>
    %250 = vector.extract_strided_slice %5 {offsets = [10, 0], sizes = [2, 64], strides = [1, 1]} : vector<16x128xf32> to vector<2x64xf32>
    %251 = arith.truncf %241 : vector<2x16xf32> to vector<2x16xbf16>
    %cst_87 = arith.constant dense<0.000000e+00> : vector<2x64xf32>
    %252 = tpu.matmul %251, %6, %cst_87 {dimension_numbers = #tpu.dot_dimension_numbers<[1], [0], [0], [1], [0, 0, 1, 1], [], []>} : vector<2x16xbf16>, vector<16x64xbf16>, vector<2x64xf32> -> vector<2x64xf32>
    %253 = arith.addf %250, %252 : vector<2x64xf32>
    %254 = vector.extract_strided_slice %253 {offsets = [0, 0], sizes = [2, 16], strides = [1, 1]} : vector<2x64xf32> to vector<2x16xf32>
    %cst_88 = arith.constant 0.000000e+00 : f32
    %255 = vector.broadcast %cst_88 : f32 to vector<2x16xf32>
    %256 = arith.subf %255, %254 : vector<2x16xf32>
    %257 = math.exp %256 : vector<2x16xf32>
    %cst_89 = arith.constant 1.000000e+00 : f32
    %258 = vector.broadcast %cst_89 : f32 to vector<2x16xf32>
    %259 = arith.addf %258, %257 : vector<2x16xf32>
    %cst_90 = arith.constant 1.000000e+00 : f32
    %260 = vector.broadcast %cst_90 : f32 to vector<2x16xf32>
    %261 = arith.divf %260, %259 : vector<2x16xf32>
    %262 = vector.extract_strided_slice %253 {offsets = [0, 16], sizes = [2, 16], strides = [1, 1]} : vector<2x64xf32> to vector<2x16xf32>
    %cst_91 = arith.constant 0.000000e+00 : f32
    %263 = vector.broadcast %cst_91 : f32 to vector<2x16xf32>
    %264 = arith.subf %263, %262 : vector<2x16xf32>
    %265 = math.exp %264 : vector<2x16xf32>
    %cst_92 = arith.constant 1.000000e+00 : f32
    %266 = vector.broadcast %cst_92 : f32 to vector<2x16xf32>
    %267 = arith.addf %266, %265 : vector<2x16xf32>
    %cst_93 = arith.constant 1.000000e+00 : f32
    %268 = vector.broadcast %cst_93 : f32 to vector<2x16xf32>
    %269 = arith.divf %268, %267 : vector<2x16xf32>
    %270 = vector.extract_strided_slice %253 {offsets = [0, 32], sizes = [2, 16], strides = [1, 1]} : vector<2x64xf32> to vector<2x16xf32>
    %271 = math.tanh %270 : vector<2x16xf32>
    %272 = vector.extract_strided_slice %253 {offsets = [0, 48], sizes = [2, 16], strides = [1, 1]} : vector<2x64xf32> to vector<2x16xf32>
    %cst_94 = arith.constant 0.000000e+00 : f32
    %273 = vector.broadcast %cst_94 : f32 to vector<2x16xf32>
    %274 = arith.subf %273, %272 : vector<2x16xf32>
    %275 = math.exp %274 : vector<2x16xf32>
    %cst_95 = arith.constant 1.000000e+00 : f32
    %276 = vector.broadcast %cst_95 : f32 to vector<2x16xf32>
    %277 = arith.addf %276, %275 : vector<2x16xf32>
    %cst_96 = arith.constant 1.000000e+00 : f32
    %278 = vector.broadcast %cst_96 : f32 to vector<2x16xf32>
    %279 = arith.divf %278, %277 : vector<2x16xf32>
    %280 = arith.mulf %269, %246 : vector<2x16xf32>
    %281 = arith.mulf %261, %271 : vector<2x16xf32>
    %282 = arith.addf %280, %281 : vector<2x16xf32>
    %283 = math.tanh %282 : vector<2x16xf32>
    %284 = arith.mulf %279, %283 : vector<2x16xf32>
    %285 = arith.mulf %249, %284 : vector<2x16xf32>
    %cst_97 = arith.constant 1.000000e+00 : f32
    %286 = vector.broadcast %cst_97 : f32 to vector<2x16xf32>
    %287 = arith.subf %286, %249 : vector<2x16xf32>
    %288 = arith.mulf %287, %241 : vector<2x16xf32>
    %289 = arith.addf %285, %288 : vector<2x16xf32>
    %290 = arith.mulf %249, %282 : vector<2x16xf32>
    %cst_98 = arith.constant 1.000000e+00 : f32
    %291 = vector.broadcast %cst_98 : f32 to vector<2x16xf32>
    %292 = arith.subf %291, %249 : vector<2x16xf32>
    %293 = arith.mulf %292, %246 : vector<2x16xf32>
    %294 = arith.addf %290, %293 : vector<2x16xf32>
    %295 = arith.mulf %249, %284 : vector<2x16xf32>
    %c10_99 = arith.constant 10 : index
    %c0_100 = arith.constant 0 : index
    %296 = vector.load %arg16[%c10_99, %c0_100] : memref<16x16xf32, #tpu.memory_space<vmem>>, vector<2x16xf32>
    tpu.vector_store %arg16[%c10_99, %c0_100], %295 {strides = array<i32>} : memref<16x16xf32, #tpu.memory_space<vmem>>, vector<2x16xf32>,
    %c12 = arith.constant 12 : index
    %c0_101 = arith.constant 0 : index
    %297 = vector.load %arg1[%c12, %c0_101] : memref<16x16xf32, #tpu.memory_space<vmem>>, vector<2x16xf32>
    %298 = vector.extract_strided_slice %5 {offsets = [12, 0], sizes = [2, 64], strides = [1, 1]} : vector<16x128xf32> to vector<2x64xf32>
    %299 = arith.truncf %289 : vector<2x16xf32> to vector<2x16xbf16>
    %cst_102 = arith.constant dense<0.000000e+00> : vector<2x64xf32>
    %300 = tpu.matmul %299, %6, %cst_102 {dimension_numbers = #tpu.dot_dimension_numbers<[1], [0], [0], [1], [0, 0, 1, 1], [], []>} : vector<2x16xbf16>, vector<16x64xbf16>, vector<2x64xf32> -> vector<2x64xf32>
    %301 = arith.addf %298, %300 : vector<2x64xf32>
    %302 = vector.extract_strided_slice %301 {offsets = [0, 0], sizes = [2, 16], strides = [1, 1]} : vector<2x64xf32> to vector<2x16xf32>
    %cst_103 = arith.constant 0.000000e+00 : f32
    %303 = vector.broadcast %cst_103 : f32 to vector<2x16xf32>
    %304 = arith.subf %303, %302 : vector<2x16xf32>
    %305 = math.exp %304 : vector<2x16xf32>
    %cst_104 = arith.constant 1.000000e+00 : f32
    %306 = vector.broadcast %cst_104 : f32 to vector<2x16xf32>
    %307 = arith.addf %306, %305 : vector<2x16xf32>
    %cst_105 = arith.constant 1.000000e+00 : f32
    %308 = vector.broadcast %cst_105 : f32 to vector<2x16xf32>
    %309 = arith.divf %308, %307 : vector<2x16xf32>
    %310 = vector.extract_strided_slice %301 {offsets = [0, 16], sizes = [2, 16], strides = [1, 1]} : vector<2x64xf32> to vector<2x16xf32>
    %cst_106 = arith.constant 0.000000e+00 : f32
    %311 = vector.broadcast %cst_106 : f32 to vector<2x16xf32>
    %312 = arith.subf %311, %310 : vector<2x16xf32>
    %313 = math.exp %312 : vector<2x16xf32>
    %cst_107 = arith.constant 1.000000e+00 : f32
    %314 = vector.broadcast %cst_107 : f32 to vector<2x16xf32>
    %315 = arith.addf %314, %313 : vector<2x16xf32>
    %cst_108 = arith.constant 1.000000e+00 : f32
    %316 = vector.broadcast %cst_108 : f32 to vector<2x16xf32>
    %317 = arith.divf %316, %315 : vector<2x16xf32>
    %318 = vector.extract_strided_slice %301 {offsets = [0, 32], sizes = [2, 16], strides = [1, 1]} : vector<2x64xf32> to vector<2x16xf32>
    %319 = math.tanh %318 : vector<2x16xf32>
    %320 = vector.extract_strided_slice %301 {offsets = [0, 48], sizes = [2, 16], strides = [1, 1]} : vector<2x64xf32> to vector<2x16xf32>
    %cst_109 = arith.constant 0.000000e+00 : f32
    %321 = vector.broadcast %cst_109 : f32 to vector<2x16xf32>
    %322 = arith.subf %321, %320 : vector<2x16xf32>
    %323 = math.exp %322 : vector<2x16xf32>
    %cst_110 = arith.constant 1.000000e+00 : f32
    %324 = vector.broadcast %cst_110 : f32 to vector<2x16xf32>
    %325 = arith.addf %324, %323 : vector<2x16xf32>
    %cst_111 = arith.constant 1.000000e+00 : f32
    %326 = vector.broadcast %cst_111 : f32 to vector<2x16xf32>
    %327 = arith.divf %326, %325 : vector<2x16xf32>
    %328 = arith.mulf %317, %294 : vector<2x16xf32>
    %329 = arith.mulf %309, %319 : vector<2x16xf32>
    %330 = arith.addf %328, %329 : vector<2x16xf32>
    %331 = math.tanh %330 : vector<2x16xf32>
    %332 = arith.mulf %327, %331 : vector<2x16xf32>
    %333 = arith.mulf %297, %332 : vector<2x16xf32>
    %cst_112 = arith.constant 1.000000e+00 : f32
    %334 = vector.broadcast %cst_112 : f32 to vector<2x16xf32>
    %335 = arith.subf %334, %297 : vector<2x16xf32>
    %336 = arith.mulf %335, %289 : vector<2x16xf32>
    %337 = arith.addf %333, %336 : vector<2x16xf32>
    %338 = arith.mulf %297, %330 : vector<2x16xf32>
    %cst_113 = arith.constant 1.000000e+00 : f32
    %339 = vector.broadcast %cst_113 : f32 to vector<2x16xf32>
    %340 = arith.subf %339, %297 : vector<2x16xf32>
    %341 = arith.mulf %340, %294 : vector<2x16xf32>
    %342 = arith.addf %338, %341 : vector<2x16xf32>
    %343 = arith.mulf %297, %332 : vector<2x16xf32>
    %c12_114 = arith.constant 12 : index
    %c0_115 = arith.constant 0 : index
    %344 = vector.load %arg16[%c12_114, %c0_115] : memref<16x16xf32, #tpu.memory_space<vmem>>, vector<2x16xf32>
    tpu.vector_store %arg16[%c12_114, %c0_115], %343 {strides = array<i32>} : memref<16x16xf32, #tpu.memory_space<vmem>>, vector<2x16xf32>,
    %c14 = arith.constant 14 : index
    %c0_116 = arith.constant 0 : index
    %345 = vector.load %arg1[%c14, %c0_116] : memref<16x16xf32, #tpu.memory_space<vmem>>, vector<2x16xf32>
    %346 = vector.extract_strided_slice %5 {offsets = [14, 0], sizes = [2, 64], strides = [1, 1]} : vector<16x128xf32> to vector<2x64xf32>
    %347 = arith.truncf %337 : vector<2x16xf32> to vector<2x16xbf16>
    %cst_117 = arith.constant dense<0.000000e+00> : vector<2x64xf32>
    %348 = tpu.matmul %347, %6, %cst_117 {dimension_numbers = #tpu.dot_dimension_numbers<[1], [0], [0], [1], [0, 0, 1, 1], [], []>} : vector<2x16xbf16>, vector<16x64xbf16>, vector<2x64xf32> -> vector<2x64xf32>
    %349 = arith.addf %346, %348 : vector<2x64xf32>
    %350 = vector.extract_strided_slice %349 {offsets = [0, 0], sizes = [2, 16], strides = [1, 1]} : vector<2x64xf32> to vector<2x16xf32>
    %cst_118 = arith.constant 0.000000e+00 : f32
    %351 = vector.broadcast %cst_118 : f32 to vector<2x16xf32>
    %352 = arith.subf %351, %350 : vector<2x16xf32>
    %353 = math.exp %352 : vector<2x16xf32>
    %cst_119 = arith.constant 1.000000e+00 : f32
    %354 = vector.broadcast %cst_119 : f32 to vector<2x16xf32>
    %355 = arith.addf %354, %353 : vector<2x16xf32>
    %cst_120 = arith.constant 1.000000e+00 : f32
    %356 = vector.broadcast %cst_120 : f32 to vector<2x16xf32>
    %357 = arith.divf %356, %355 : vector<2x16xf32>
    %358 = vector.extract_strided_slice %349 {offsets = [0, 16], sizes = [2, 16], strides = [1, 1]} : vector<2x64xf32> to vector<2x16xf32>
    %cst_121 = arith.constant 0.000000e+00 : f32
    %359 = vector.broadcast %cst_121 : f32 to vector<2x16xf32>
    %360 = arith.subf %359, %358 : vector<2x16xf32>
    %361 = math.exp %360 : vector<2x16xf32>
    %cst_122 = arith.constant 1.000000e+00 : f32
    %362 = vector.broadcast %cst_122 : f32 to vector<2x16xf32>
    %363 = arith.addf %362, %361 : vector<2x16xf32>
    %cst_123 = arith.constant 1.000000e+00 : f32
    %364 = vector.broadcast %cst_123 : f32 to vector<2x16xf32>
    %365 = arith.divf %364, %363 : vector<2x16xf32>
    %366 = vector.extract_strided_slice %349 {offsets = [0, 32], sizes = [2, 16], strides = [1, 1]} : vector<2x64xf32> to vector<2x16xf32>
    %367 = math.tanh %366 : vector<2x16xf32>
    %368 = vector.extract_strided_slice %349 {offsets = [0, 48], sizes = [2, 16], strides = [1, 1]} : vector<2x64xf32> to vector<2x16xf32>
    %cst_124 = arith.constant 0.000000e+00 : f32
    %369 = vector.broadcast %cst_124 : f32 to vector<2x16xf32>
    %370 = arith.subf %369, %368 : vector<2x16xf32>
    %371 = math.exp %370 : vector<2x16xf32>
    %cst_125 = arith.constant 1.000000e+00 : f32
    %372 = vector.broadcast %cst_125 : f32 to vector<2x16xf32>
    %373 = arith.addf %372, %371 : vector<2x16xf32>
    %cst_126 = arith.constant 1.000000e+00 : f32
    %374 = vector.broadcast %cst_126 : f32 to vector<2x16xf32>
    %375 = arith.divf %374, %373 : vector<2x16xf32>
    %376 = arith.mulf %365, %342 : vector<2x16xf32>
    %377 = arith.mulf %357, %367 : vector<2x16xf32>
    %378 = arith.addf %376, %377 : vector<2x16xf32>
    %379 = math.tanh %378 : vector<2x16xf32>
    %380 = arith.mulf %375, %379 : vector<2x16xf32>
    %381 = arith.mulf %345, %380 : vector<2x16xf32>
    %c14_127 = arith.constant 14 : index
    %c0_128 = arith.constant 0 : index
    %382 = vector.load %arg16[%c14_127, %c0_128] : memref<16x16xf32, #tpu.memory_space<vmem>>, vector<2x16xf32>
    tpu.vector_store %arg16[%c14_127, %c0_128], %381 {strides = array<i32>} : memref<16x16xf32, #tpu.memory_space<vmem>>, vector<2x16xf32>,
    %c14_129 = arith.constant 14 : index
    %c0_130 = arith.constant 0 : index
    %383 = vector.load %arg1[%c14_129, %c0_130] : memref<16x16xf32, #tpu.memory_space<vmem>>, vector<2x16xf32>
    %384 = vector.extract_strided_slice %5 {offsets = [14, 64], sizes = [2, 64], strides = [1, 1]} : vector<16x128xf32> to vector<2x64xf32>
    %385 = arith.truncf %8 : vector<2x16xf32> to vector<2x16xbf16>
    %cst_131 = arith.constant dense<0.000000e+00> : vector<2x64xf32>
    %386 = tpu.matmul %385, %7, %cst_131 {dimension_numbers = #tpu.dot_dimension_numbers<[1], [0], [0], [1], [0, 0, 1, 1], [], []>} : vector<2x16xbf16>, vector<16x64xbf16>, vector<2x64xf32> -> vector<2x64xf32>
    %387 = arith.addf %384, %386 : vector<2x64xf32>
    %388 = vector.extract_strided_slice %387 {offsets = [0, 0], sizes = [2, 16], strides = [1, 1]} : vector<2x64xf32> to vector<2x16xf32>
    %cst_132 = arith.constant 0.000000e+00 : f32
    %389 = vector.broadcast %cst_132 : f32 to vector<2x16xf32>
    %390 = arith.subf %389, %388 : vector<2x16xf32>
    %391 = math.exp %390 : vector<2x16xf32>
    %cst_133 = arith.constant 1.000000e+00 : f32
    %392 = vector.broadcast %cst_133 : f32 to vector<2x16xf32>
    %393 = arith.addf %392, %391 : vector<2x16xf32>
    %cst_134 = arith.constant 1.000000e+00 : f32
    %394 = vector.broadcast %cst_134 : f32 to vector<2x16xf32>
    %395 = arith.divf %394, %393 : vector<2x16xf32>
    %396 = vector.extract_strided_slice %387 {offsets = [0, 16], sizes = [2, 16], strides = [1, 1]} : vector<2x64xf32> to vector<2x16xf32>
    %cst_135 = arith.constant 0.000000e+00 : f32
    %397 = vector.broadcast %cst_135 : f32 to vector<2x16xf32>
    %398 = arith.subf %397, %396 : vector<2x16xf32>
    %399 = math.exp %398 : vector<2x16xf32>
    %cst_136 = arith.constant 1.000000e+00 : f32
    %400 = vector.broadcast %cst_136 : f32 to vector<2x16xf32>
    %401 = arith.addf %400, %399 : vector<2x16xf32>
    %cst_137 = arith.constant 1.000000e+00 : f32
    %402 = vector.broadcast %cst_137 : f32 to vector<2x16xf32>
    %403 = arith.divf %402, %401 : vector<2x16xf32>
    %404 = vector.extract_strided_slice %387 {offsets = [0, 32], sizes = [2, 16], strides = [1, 1]} : vector<2x64xf32> to vector<2x16xf32>
    %405 = math.tanh %404 : vector<2x16xf32>
    %406 = vector.extract_strided_slice %387 {offsets = [0, 48], sizes = [2, 16], strides = [1, 1]} : vector<2x64xf32> to vector<2x16xf32>
    %cst_138 = arith.constant 0.000000e+00 : f32
    %407 = vector.broadcast %cst_138 : f32 to vector<2x16xf32>
    %408 = arith.subf %407, %406 : vector<2x16xf32>
    %409 = math.exp %408 : vector<2x16xf32>
    %cst_139 = arith.constant 1.000000e+00 : f32
    %410 = vector.broadcast %cst_139 : f32 to vector<2x16xf32>
    %411 = arith.addf %410, %409 : vector<2x16xf32>
    %cst_140 = arith.constant 1.000000e+00 : f32
    %412 = vector.broadcast %cst_140 : f32 to vector<2x16xf32>
    %413 = arith.divf %412, %411 : vector<2x16xf32>
    %414 = arith.mulf %403, %8 : vector<2x16xf32>
    %415 = arith.mulf %395, %405 : vector<2x16xf32>
    %416 = arith.addf %414, %415 : vector<2x16xf32>
    %417 = math.tanh %416 : vector<2x16xf32>
    %418 = arith.mulf %413, %417 : vector<2x16xf32>
    %419 = arith.mulf %383, %418 : vector<2x16xf32>
    %cst_141 = arith.constant 1.000000e+00 : f32
    %420 = vector.broadcast %cst_141 : f32 to vector<2x16xf32>
    %421 = arith.subf %420, %383 : vector<2x16xf32>
    %422 = arith.mulf %421, %8 : vector<2x16xf32>
    %423 = arith.addf %419, %422 : vector<2x16xf32>
    %424 = arith.mulf %383, %416 : vector<2x16xf32>
    %cst_142 = arith.constant 1.000000e+00 : f32
    %425 = vector.broadcast %cst_142 : f32 to vector<2x16xf32>
    %426 = arith.subf %425, %383 : vector<2x16xf32>
    %427 = arith.mulf %426, %8 : vector<2x16xf32>
    %428 = arith.addf %424, %427 : vector<2x16xf32>
    %429 = arith.mulf %383, %418 : vector<2x16xf32>
    %c14_143 = arith.constant 14 : index
    %c0_144 = arith.constant 0 : index
    %430 = vector.load %arg17[%c14_143, %c0_144] : memref<16x16xf32, #tpu.memory_space<vmem>>, vector<2x16xf32>
    tpu.vector_store %arg17[%c14_143, %c0_144], %429 {strides = array<i32>} : memref<16x16xf32, #tpu.memory_space<vmem>>, vector<2x16xf32>,
    %c12_145 = arith.constant 12 : index
    %c0_146 = arith.constant 0 : index
    %431 = vector.load %arg1[%c12_145, %c0_146] : memref<16x16xf32, #tpu.memory_space<vmem>>, vector<2x16xf32>
    %432 = vector.extract_strided_slice %5 {offsets = [12, 64], sizes = [2, 64], strides = [1, 1]} : vector<16x128xf32> to vector<2x64xf32>
    %433 = arith.truncf %423 : vector<2x16xf32> to vector<2x16xbf16>
    %cst_147 = arith.constant dense<0.000000e+00> : vector<2x64xf32>
    %434 = tpu.matmul %433, %7, %cst_147 {dimension_numbers = #tpu.dot_dimension_numbers<[1], [0], [0], [1], [0, 0, 1, 1], [], []>} : vector<2x16xbf16>, vector<16x64xbf16>, vector<2x64xf32> -> vector<2x64xf32>
    %435 = arith.addf %432, %434 : vector<2x64xf32>
    %436 = vector.extract_strided_slice %435 {offsets = [0, 0], sizes = [2, 16], strides = [1, 1]} : vector<2x64xf32> to vector<2x16xf32>
    %cst_148 = arith.constant 0.000000e+00 : f32
    %437 = vector.broadcast %cst_148 : f32 to vector<2x16xf32>
    %438 = arith.subf %437, %436 : vector<2x16xf32>
    %439 = math.exp %438 : vector<2x16xf32>
    %cst_149 = arith.constant 1.000000e+00 : f32
    %440 = vector.broadcast %cst_149 : f32 to vector<2x16xf32>
    %441 = arith.addf %440, %439 : vector<2x16xf32>
    %cst_150 = arith.constant 1.000000e+00 : f32
    %442 = vector.broadcast %cst_150 : f32 to vector<2x16xf32>
    %443 = arith.divf %442, %441 : vector<2x16xf32>
    %444 = vector.extract_strided_slice %435 {offsets = [0, 16], sizes = [2, 16], strides = [1, 1]} : vector<2x64xf32> to vector<2x16xf32>
    %cst_151 = arith.constant 0.000000e+00 : f32
    %445 = vector.broadcast %cst_151 : f32 to vector<2x16xf32>
    %446 = arith.subf %445, %444 : vector<2x16xf32>
    %447 = math.exp %446 : vector<2x16xf32>
    %cst_152 = arith.constant 1.000000e+00 : f32
    %448 = vector.broadcast %cst_152 : f32 to vector<2x16xf32>
    %449 = arith.addf %448, %447 : vector<2x16xf32>
    %cst_153 = arith.constant 1.000000e+00 : f32
    %450 = vector.broadcast %cst_153 : f32 to vector<2x16xf32>
    %451 = arith.divf %450, %449 : vector<2x16xf32>
    %452 = vector.extract_strided_slice %435 {offsets = [0, 32], sizes = [2, 16], strides = [1, 1]} : vector<2x64xf32> to vector<2x16xf32>
    %453 = math.tanh %452 : vector<2x16xf32>
    %454 = vector.extract_strided_slice %435 {offsets = [0, 48], sizes = [2, 16], strides = [1, 1]} : vector<2x64xf32> to vector<2x16xf32>
    %cst_154 = arith.constant 0.000000e+00 : f32
    %455 = vector.broadcast %cst_154 : f32 to vector<2x16xf32>
    %456 = arith.subf %455, %454 : vector<2x16xf32>
    %457 = math.exp %456 : vector<2x16xf32>
    %cst_155 = arith.constant 1.000000e+00 : f32
    %458 = vector.broadcast %cst_155 : f32 to vector<2x16xf32>
    %459 = arith.addf %458, %457 : vector<2x16xf32>
    %cst_156 = arith.constant 1.000000e+00 : f32
    %460 = vector.broadcast %cst_156 : f32 to vector<2x16xf32>
    %461 = arith.divf %460, %459 : vector<2x16xf32>
    %462 = arith.mulf %451, %428 : vector<2x16xf32>
    %463 = arith.mulf %443, %453 : vector<2x16xf32>
    %464 = arith.addf %462, %463 : vector<2x16xf32>
    %465 = math.tanh %464 : vector<2x16xf32>
    %466 = arith.mulf %461, %465 : vector<2x16xf32>
    %467 = arith.mulf %431, %466 : vector<2x16xf32>
    %cst_157 = arith.constant 1.000000e+00 : f32
    %468 = vector.broadcast %cst_157 : f32 to vector<2x16xf32>
    %469 = arith.subf %468, %431 : vector<2x16xf32>
    %470 = arith.mulf %469, %423 : vector<2x16xf32>
    %471 = arith.addf %467, %470 : vector<2x16xf32>
    %472 = arith.mulf %431, %464 : vector<2x16xf32>
    %cst_158 = arith.constant 1.000000e+00 : f32
    %473 = vector.broadcast %cst_158 : f32 to vector<2x16xf32>
    %474 = arith.subf %473, %431 : vector<2x16xf32>
    %475 = arith.mulf %474, %428 : vector<2x16xf32>
    %476 = arith.addf %472, %475 : vector<2x16xf32>
    %477 = arith.mulf %431, %466 : vector<2x16xf32>
    %c12_159 = arith.constant 12 : index
    %c0_160 = arith.constant 0 : index
    %478 = vector.load %arg17[%c12_159, %c0_160] : memref<16x16xf32, #tpu.memory_space<vmem>>, vector<2x16xf32>
    tpu.vector_store %arg17[%c12_159, %c0_160], %477 {strides = array<i32>} : memref<16x16xf32, #tpu.memory_space<vmem>>, vector<2x16xf32>,
    %c10_161 = arith.constant 10 : index
    %c0_162 = arith.constant 0 : index
    %479 = vector.load %arg1[%c10_161, %c0_162] : memref<16x16xf32, #tpu.memory_space<vmem>>, vector<2x16xf32>
    %480 = vector.extract_strided_slice %5 {offsets = [10, 64], sizes = [2, 64], strides = [1, 1]} : vector<16x128xf32> to vector<2x64xf32>
    %481 = arith.truncf %471 : vector<2x16xf32> to vector<2x16xbf16>
    %cst_163 = arith.constant dense<0.000000e+00> : vector<2x64xf32>
    %482 = tpu.matmul %481, %7, %cst_163 {dimension_numbers = #tpu.dot_dimension_numbers<[1], [0], [0], [1], [0, 0, 1, 1], [], []>} : vector<2x16xbf16>, vector<16x64xbf16>, vector<2x64xf32> -> vector<2x64xf32>
    %483 = arith.addf %480, %482 : vector<2x64xf32>
    %484 = vector.extract_strided_slice %483 {offsets = [0, 0], sizes = [2, 16], strides = [1, 1]} : vector<2x64xf32> to vector<2x16xf32>
    %cst_164 = arith.constant 0.000000e+00 : f32
    %485 = vector.broadcast %cst_164 : f32 to vector<2x16xf32>
    %486 = arith.subf %485, %484 : vector<2x16xf32>
    %487 = math.exp %486 : vector<2x16xf32>
    %cst_165 = arith.constant 1.000000e+00 : f32
    %488 = vector.broadcast %cst_165 : f32 to vector<2x16xf32>
    %489 = arith.addf %488, %487 : vector<2x16xf32>
    %cst_166 = arith.constant 1.000000e+00 : f32
    %490 = vector.broadcast %cst_166 : f32 to vector<2x16xf32>
    %491 = arith.divf %490, %489 : vector<2x16xf32>
    %492 = vector.extract_strided_slice %483 {offsets = [0, 16], sizes = [2, 16], strides = [1, 1]} : vector<2x64xf32> to vector<2x16xf32>
    %cst_167 = arith.constant 0.000000e+00 : f32
    %493 = vector.broadcast %cst_167 : f32 to vector<2x16xf32>
    %494 = arith.subf %493, %492 : vector<2x16xf32>
    %495 = math.exp %494 : vector<2x16xf32>
    %cst_168 = arith.constant 1.000000e+00 : f32
    %496 = vector.broadcast %cst_168 : f32 to vector<2x16xf32>
    %497 = arith.addf %496, %495 : vector<2x16xf32>
    %cst_169 = arith.constant 1.000000e+00 : f32
    %498 = vector.broadcast %cst_169 : f32 to vector<2x16xf32>
    %499 = arith.divf %498, %497 : vector<2x16xf32>
    %500 = vector.extract_strided_slice %483 {offsets = [0, 32], sizes = [2, 16], strides = [1, 1]} : vector<2x64xf32> to vector<2x16xf32>
    %501 = math.tanh %500 : vector<2x16xf32>
    %502 = vector.extract_strided_slice %483 {offsets = [0, 48], sizes = [2, 16], strides = [1, 1]} : vector<2x64xf32> to vector<2x16xf32>
    %cst_170 = arith.constant 0.000000e+00 : f32
    %503 = vector.broadcast %cst_170 : f32 to vector<2x16xf32>
    %504 = arith.subf %503, %502 : vector<2x16xf32>
    %505 = math.exp %504 : vector<2x16xf32>
    %cst_171 = arith.constant 1.000000e+00 : f32
    %506 = vector.broadcast %cst_171 : f32 to vector<2x16xf32>
    %507 = arith.addf %506, %505 : vector<2x16xf32>
    %cst_172 = arith.constant 1.000000e+00 : f32
    %508 = vector.broadcast %cst_172 : f32 to vector<2x16xf32>
    %509 = arith.divf %508, %507 : vector<2x16xf32>
    %510 = arith.mulf %499, %476 : vector<2x16xf32>
    %511 = arith.mulf %491, %501 : vector<2x16xf32>
    %512 = arith.addf %510, %511 : vector<2x16xf32>
    %513 = math.tanh %512 : vector<2x16xf32>
    %514 = arith.mulf %509, %513 : vector<2x16xf32>
    %515 = arith.mulf %479, %514 : vector<2x16xf32>
    %cst_173 = arith.constant 1.000000e+00 : f32
    %516 = vector.broadcast %cst_173 : f32 to vector<2x16xf32>
    %517 = arith.subf %516, %479 : vector<2x16xf32>
    %518 = arith.mulf %517, %471 : vector<2x16xf32>
    %519 = arith.addf %515, %518 : vector<2x16xf32>
    %520 = arith.mulf %479, %512 : vector<2x16xf32>
    %cst_174 = arith.constant 1.000000e+00 : f32
    %521 = vector.broadcast %cst_174 : f32 to vector<2x16xf32>
    %522 = arith.subf %521, %479 : vector<2x16xf32>
    %523 = arith.mulf %522, %476 : vector<2x16xf32>
    %524 = arith.addf %520, %523 : vector<2x16xf32>
    %525 = arith.mulf %479, %514 : vector<2x16xf32>
    %c10_175 = arith.constant 10 : index
    %c0_176 = arith.constant 0 : index
    %526 = vector.load %arg17[%c10_175, %c0_176] : memref<16x16xf32, #tpu.memory_space<vmem>>, vector<2x16xf32>
    tpu.vector_store %arg17[%c10_175, %c0_176], %525 {strides = array<i32>} : memref<16x16xf32, #tpu.memory_space<vmem>>, vector<2x16xf32>,
    %c8_177 = arith.constant 8 : index
    %c0_178 = arith.constant 0 : index
    %527 = vector.load %arg1[%c8_177, %c0_178] : memref<16x16xf32, #tpu.memory_space<vmem>>, vector<2x16xf32>
    %528 = vector.extract_strided_slice %5 {offsets = [8, 64], sizes = [2, 64], strides = [1, 1]} : vector<16x128xf32> to vector<2x64xf32>
    %529 = arith.truncf %519 : vector<2x16xf32> to vector<2x16xbf16>
    %cst_179 = arith.constant dense<0.000000e+00> : vector<2x64xf32>
    %530 = tpu.matmul %529, %7, %cst_179 {dimension_numbers = #tpu.dot_dimension_numbers<[1], [0], [0], [1], [0, 0, 1, 1], [], []>} : vector<2x16xbf16>, vector<16x64xbf16>, vector<2x64xf32> -> vector<2x64xf32>
    %531 = arith.addf %528, %530 : vector<2x64xf32>
    %532 = vector.extract_strided_slice %531 {offsets = [0, 0], sizes = [2, 16], strides = [1, 1]} : vector<2x64xf32> to vector<2x16xf32>
    %cst_180 = arith.constant 0.000000e+00 : f32
    %533 = vector.broadcast %cst_180 : f32 to vector<2x16xf32>
    %534 = arith.subf %533, %532 : vector<2x16xf32>
    %535 = math.exp %534 : vector<2x16xf32>
    %cst_181 = arith.constant 1.000000e+00 : f32
    %536 = vector.broadcast %cst_181 : f32 to vector<2x16xf32>
    %537 = arith.addf %536, %535 : vector<2x16xf32>
    %cst_182 = arith.constant 1.000000e+00 : f32
    %538 = vector.broadcast %cst_182 : f32 to vector<2x16xf32>
    %539 = arith.divf %538, %537 : vector<2x16xf32>
    %540 = vector.extract_strided_slice %531 {offsets = [0, 16], sizes = [2, 16], strides = [1, 1]} : vector<2x64xf32> to vector<2x16xf32>
    %cst_183 = arith.constant 0.000000e+00 : f32
    %541 = vector.broadcast %cst_183 : f32 to vector<2x16xf32>
    %542 = arith.subf %541, %540 : vector<2x16xf32>
    %543 = math.exp %542 : vector<2x16xf32>
    %cst_184 = arith.constant 1.000000e+00 : f32
    %544 = vector.broadcast %cst_184 : f32 to vector<2x16xf32>
    %545 = arith.addf %544, %543 : vector<2x16xf32>
    %cst_185 = arith.constant 1.000000e+00 : f32
    %546 = vector.broadcast %cst_185 : f32 to vector<2x16xf32>
    %547 = arith.divf %546, %545 : vector<2x16xf32>
    %548 = vector.extract_strided_slice %531 {offsets = [0, 32], sizes = [2, 16], strides = [1, 1]} : vector<2x64xf32> to vector<2x16xf32>
    %549 = math.tanh %548 : vector<2x16xf32>
    %550 = vector.extract_strided_slice %531 {offsets = [0, 48], sizes = [2, 16], strides = [1, 1]} : vector<2x64xf32> to vector<2x16xf32>
    %cst_186 = arith.constant 0.000000e+00 : f32
    %551 = vector.broadcast %cst_186 : f32 to vector<2x16xf32>
    %552 = arith.subf %551, %550 : vector<2x16xf32>
    %553 = math.exp %552 : vector<2x16xf32>
    %cst_187 = arith.constant 1.000000e+00 : f32
    %554 = vector.broadcast %cst_187 : f32 to vector<2x16xf32>
    %555 = arith.addf %554, %553 : vector<2x16xf32>
    %cst_188 = arith.constant 1.000000e+00 : f32
    %556 = vector.broadcast %cst_188 : f32 to vector<2x16xf32>
    %557 = arith.divf %556, %555 : vector<2x16xf32>
    %558 = arith.mulf %547, %524 : vector<2x16xf32>
    %559 = arith.mulf %539, %549 : vector<2x16xf32>
    %560 = arith.addf %558, %559 : vector<2x16xf32>
    %561 = math.tanh %560 : vector<2x16xf32>
    %562 = arith.mulf %557, %561 : vector<2x16xf32>
    %563 = arith.mulf %527, %562 : vector<2x16xf32>
    %cst_189 = arith.constant 1.000000e+00 : f32
    %564 = vector.broadcast %cst_189 : f32 to vector<2x16xf32>
    %565 = arith.subf %564, %527 : vector<2x16xf32>
    %566 = arith.mulf %565, %519 : vector<2x16xf32>
    %567 = arith.addf %563, %566 : vector<2x16xf32>
    %568 = arith.mulf %527, %560 : vector<2x16xf32>
    %cst_190 = arith.constant 1.000000e+00 : f32
    %569 = vector.broadcast %cst_190 : f32 to vector<2x16xf32>
    %570 = arith.subf %569, %527 : vector<2x16xf32>
    %571 = arith.mulf %570, %524 : vector<2x16xf32>
    %572 = arith.addf %568, %571 : vector<2x16xf32>
    %573 = arith.mulf %527, %562 : vector<2x16xf32>
    %c8_191 = arith.constant 8 : index
    %c0_192 = arith.constant 0 : index
    %574 = vector.load %arg17[%c8_191, %c0_192] : memref<16x16xf32, #tpu.memory_space<vmem>>, vector<2x16xf32>
    tpu.vector_store %arg17[%c8_191, %c0_192], %573 {strides = array<i32>} : memref<16x16xf32, #tpu.memory_space<vmem>>, vector<2x16xf32>,
    %c6_193 = arith.constant 6 : index
    %c0_194 = arith.constant 0 : index
    %575 = vector.load %arg1[%c6_193, %c0_194] : memref<16x16xf32, #tpu.memory_space<vmem>>, vector<2x16xf32>
    %576 = vector.extract_strided_slice %5 {offsets = [6, 64], sizes = [2, 64], strides = [1, 1]} : vector<16x128xf32> to vector<2x64xf32>
    %577 = arith.truncf %567 : vector<2x16xf32> to vector<2x16xbf16>
    %cst_195 = arith.constant dense<0.000000e+00> : vector<2x64xf32>
    %578 = tpu.matmul %577, %7, %cst_195 {dimension_numbers = #tpu.dot_dimension_numbers<[1], [0], [0], [1], [0, 0, 1, 1], [], []>} : vector<2x16xbf16>, vector<16x64xbf16>, vector<2x64xf32> -> vector<2x64xf32>
    %579 = arith.addf %576, %578 : vector<2x64xf32>
    %580 = vector.extract_strided_slice %579 {offsets = [0, 0], sizes = [2, 16], strides = [1, 1]} : vector<2x64xf32> to vector<2x16xf32>
    %cst_196 = arith.constant 0.000000e+00 : f32
    %581 = vector.broadcast %cst_196 : f32 to vector<2x16xf32>
    %582 = arith.subf %581, %580 : vector<2x16xf32>
    %583 = math.exp %582 : vector<2x16xf32>
    %cst_197 = arith.constant 1.000000e+00 : f32
    %584 = vector.broadcast %cst_197 : f32 to vector<2x16xf32>
    %585 = arith.addf %584, %583 : vector<2x16xf32>
    %cst_198 = arith.constant 1.000000e+00 : f32
    %586 = vector.broadcast %cst_198 : f32 to vector<2x16xf32>
    %587 = arith.divf %586, %585 : vector<2x16xf32>
    %588 = vector.extract_strided_slice %579 {offsets = [0, 16], sizes = [2, 16], strides = [1, 1]} : vector<2x64xf32> to vector<2x16xf32>
    %cst_199 = arith.constant 0.000000e+00 : f32
    %589 = vector.broadcast %cst_199 : f32 to vector<2x16xf32>
    %590 = arith.subf %589, %588 : vector<2x16xf32>
    %591 = math.exp %590 : vector<2x16xf32>
    %cst_200 = arith.constant 1.000000e+00 : f32
    %592 = vector.broadcast %cst_200 : f32 to vector<2x16xf32>
    %593 = arith.addf %592, %591 : vector<2x16xf32>
    %cst_201 = arith.constant 1.000000e+00 : f32
    %594 = vector.broadcast %cst_201 : f32 to vector<2x16xf32>
    %595 = arith.divf %594, %593 : vector<2x16xf32>
    %596 = vector.extract_strided_slice %579 {offsets = [0, 32], sizes = [2, 16], strides = [1, 1]} : vector<2x64xf32> to vector<2x16xf32>
    %597 = math.tanh %596 : vector<2x16xf32>
    %598 = vector.extract_strided_slice %579 {offsets = [0, 48], sizes = [2, 16], strides = [1, 1]} : vector<2x64xf32> to vector<2x16xf32>
    %cst_202 = arith.constant 0.000000e+00 : f32
    %599 = vector.broadcast %cst_202 : f32 to vector<2x16xf32>
    %600 = arith.subf %599, %598 : vector<2x16xf32>
    %601 = math.exp %600 : vector<2x16xf32>
    %cst_203 = arith.constant 1.000000e+00 : f32
    %602 = vector.broadcast %cst_203 : f32 to vector<2x16xf32>
    %603 = arith.addf %602, %601 : vector<2x16xf32>
    %cst_204 = arith.constant 1.000000e+00 : f32
    %604 = vector.broadcast %cst_204 : f32 to vector<2x16xf32>
    %605 = arith.divf %604, %603 : vector<2x16xf32>
    %606 = arith.mulf %595, %572 : vector<2x16xf32>
    %607 = arith.mulf %587, %597 : vector<2x16xf32>
    %608 = arith.addf %606, %607 : vector<2x16xf32>
    %609 = math.tanh %608 : vector<2x16xf32>
    %610 = arith.mulf %605, %609 : vector<2x16xf32>
    %611 = arith.mulf %575, %610 : vector<2x16xf32>
    %cst_205 = arith.constant 1.000000e+00 : f32
    %612 = vector.broadcast %cst_205 : f32 to vector<2x16xf32>
    %613 = arith.subf %612, %575 : vector<2x16xf32>
    %614 = arith.mulf %613, %567 : vector<2x16xf32>
    %615 = arith.addf %611, %614 : vector<2x16xf32>
    %616 = arith.mulf %575, %608 : vector<2x16xf32>
    %cst_206 = arith.constant 1.000000e+00 : f32
    %617 = vector.broadcast %cst_206 : f32 to vector<2x16xf32>
    %618 = arith.subf %617, %575 : vector<2x16xf32>
    %619 = arith.mulf %618, %572 : vector<2x16xf32>
    %620 = arith.addf %616, %619 : vector<2x16xf32>
    %621 = arith.mulf %575, %610 : vector<2x16xf32>
    %c6_207 = arith.constant 6 : index
    %c0_208 = arith.constant 0 : index
    %622 = vector.load %arg17[%c6_207, %c0_208] : memref<16x16xf32, #tpu.memory_space<vmem>>, vector<2x16xf32>
    tpu.vector_store %arg17[%c6_207, %c0_208], %621 {strides = array<i32>} : memref<16x16xf32, #tpu.memory_space<vmem>>, vector<2x16xf32>,
    %c4_209 = arith.constant 4 : index
    %c0_210 = arith.constant 0 : index
    %623 = vector.load %arg1[%c4_209, %c0_210] : memref<16x16xf32, #tpu.memory_space<vmem>>, vector<2x16xf32>
    %624 = vector.extract_strided_slice %5 {offsets = [4, 64], sizes = [2, 64], strides = [1, 1]} : vector<16x128xf32> to vector<2x64xf32>
    %625 = arith.truncf %615 : vector<2x16xf32> to vector<2x16xbf16>
    %cst_211 = arith.constant dense<0.000000e+00> : vector<2x64xf32>
    %626 = tpu.matmul %625, %7, %cst_211 {dimension_numbers = #tpu.dot_dimension_numbers<[1], [0], [0], [1], [0, 0, 1, 1], [], []>} : vector<2x16xbf16>, vector<16x64xbf16>, vector<2x64xf32> -> vector<2x64xf32>
    %627 = arith.addf %624, %626 : vector<2x64xf32>
    %628 = vector.extract_strided_slice %627 {offsets = [0, 0], sizes = [2, 16], strides = [1, 1]} : vector<2x64xf32> to vector<2x16xf32>
    %cst_212 = arith.constant 0.000000e+00 : f32
    %629 = vector.broadcast %cst_212 : f32 to vector<2x16xf32>
    %630 = arith.subf %629, %628 : vector<2x16xf32>
    %631 = math.exp %630 : vector<2x16xf32>
    %cst_213 = arith.constant 1.000000e+00 : f32
    %632 = vector.broadcast %cst_213 : f32 to vector<2x16xf32>
    %633 = arith.addf %632, %631 : vector<2x16xf32>
    %cst_214 = arith.constant 1.000000e+00 : f32
    %634 = vector.broadcast %cst_214 : f32 to vector<2x16xf32>
    %635 = arith.divf %634, %633 : vector<2x16xf32>
    %636 = vector.extract_strided_slice %627 {offsets = [0, 16], sizes = [2, 16], strides = [1, 1]} : vector<2x64xf32> to vector<2x16xf32>
    %cst_215 = arith.constant 0.000000e+00 : f32
    %637 = vector.broadcast %cst_215 : f32 to vector<2x16xf32>
    %638 = arith.subf %637, %636 : vector<2x16xf32>
    %639 = math.exp %638 : vector<2x16xf32>
    %cst_216 = arith.constant 1.000000e+00 : f32
    %640 = vector.broadcast %cst_216 : f32 to vector<2x16xf32>
    %641 = arith.addf %640, %639 : vector<2x16xf32>
    %cst_217 = arith.constant 1.000000e+00 : f32
    %642 = vector.broadcast %cst_217 : f32 to vector<2x16xf32>
    %643 = arith.divf %642, %641 : vector<2x16xf32>
    %644 = vector.extract_strided_slice %627 {offsets = [0, 32], sizes = [2, 16], strides = [1, 1]} : vector<2x64xf32> to vector<2x16xf32>
    %645 = math.tanh %644 : vector<2x16xf32>
    %646 = vector.extract_strided_slice %627 {offsets = [0, 48], sizes = [2, 16], strides = [1, 1]} : vector<2x64xf32> to vector<2x16xf32>
    %cst_218 = arith.constant 0.000000e+00 : f32
    %647 = vector.broadcast %cst_218 : f32 to vector<2x16xf32>
    %648 = arith.subf %647, %646 : vector<2x16xf32>
    %649 = math.exp %648 : vector<2x16xf32>
    %cst_219 = arith.constant 1.000000e+00 : f32
    %650 = vector.broadcast %cst_219 : f32 to vector<2x16xf32>
    %651 = arith.addf %650, %649 : vector<2x16xf32>
    %cst_220 = arith.constant 1.000000e+00 : f32
    %652 = vector.broadcast %cst_220 : f32 to vector<2x16xf32>
    %653 = arith.divf %652, %651 : vector<2x16xf32>
    %654 = arith.mulf %643, %620 : vector<2x16xf32>
    %655 = arith.mulf %635, %645 : vector<2x16xf32>
    %656 = arith.addf %654, %655 : vector<2x16xf32>
    %657 = math.tanh %656 : vector<2x16xf32>
    %658 = arith.mulf %653, %657 : vector<2x16xf32>
    %659 = arith.mulf %623, %658 : vector<2x16xf32>
    %cst_221 = arith.constant 1.000000e+00 : f32
    %660 = vector.broadcast %cst_221 : f32 to vector<2x16xf32>
    %661 = arith.subf %660, %623 : vector<2x16xf32>
    %662 = arith.mulf %661, %615 : vector<2x16xf32>
    %663 = arith.addf %659, %662 : vector<2x16xf32>
    %664 = arith.mulf %623, %656 : vector<2x16xf32>
    %cst_222 = arith.constant 1.000000e+00 : f32
    %665 = vector.broadcast %cst_222 : f32 to vector<2x16xf32>
    %666 = arith.subf %665, %623 : vector<2x16xf32>
    %667 = arith.mulf %666, %620 : vector<2x16xf32>
    %668 = arith.addf %664, %667 : vector<2x16xf32>
    %669 = arith.mulf %623, %658 : vector<2x16xf32>
    %c4_223 = arith.constant 4 : index
    %c0_224 = arith.constant 0 : index
    %670 = vector.load %arg17[%c4_223, %c0_224] : memref<16x16xf32, #tpu.memory_space<vmem>>, vector<2x16xf32>
    tpu.vector_store %arg17[%c4_223, %c0_224], %669 {strides = array<i32>} : memref<16x16xf32, #tpu.memory_space<vmem>>, vector<2x16xf32>,
    %c2_225 = arith.constant 2 : index
    %c0_226 = arith.constant 0 : index
    %671 = vector.load %arg1[%c2_225, %c0_226] : memref<16x16xf32, #tpu.memory_space<vmem>>, vector<2x16xf32>
    %672 = vector.extract_strided_slice %5 {offsets = [2, 64], sizes = [2, 64], strides = [1, 1]} : vector<16x128xf32> to vector<2x64xf32>
    %673 = arith.truncf %663 : vector<2x16xf32> to vector<2x16xbf16>
    %cst_227 = arith.constant dense<0.000000e+00> : vector<2x64xf32>
    %674 = tpu.matmul %673, %7, %cst_227 {dimension_numbers = #tpu.dot_dimension_numbers<[1], [0], [0], [1], [0, 0, 1, 1], [], []>} : vector<2x16xbf16>, vector<16x64xbf16>, vector<2x64xf32> -> vector<2x64xf32>
    %675 = arith.addf %672, %674 : vector<2x64xf32>
    %676 = vector.extract_strided_slice %675 {offsets = [0, 0], sizes = [2, 16], strides = [1, 1]} : vector<2x64xf32> to vector<2x16xf32>
    %cst_228 = arith.constant 0.000000e+00 : f32
    %677 = vector.broadcast %cst_228 : f32 to vector<2x16xf32>
    %678 = arith.subf %677, %676 : vector<2x16xf32>
    %679 = math.exp %678 : vector<2x16xf32>
    %cst_229 = arith.constant 1.000000e+00 : f32
    %680 = vector.broadcast %cst_229 : f32 to vector<2x16xf32>
    %681 = arith.addf %680, %679 : vector<2x16xf32>
    %cst_230 = arith.constant 1.000000e+00 : f32
    %682 = vector.broadcast %cst_230 : f32 to vector<2x16xf32>
    %683 = arith.divf %682, %681 : vector<2x16xf32>
    %684 = vector.extract_strided_slice %675 {offsets = [0, 16], sizes = [2, 16], strides = [1, 1]} : vector<2x64xf32> to vector<2x16xf32>
    %cst_231 = arith.constant 0.000000e+00 : f32
    %685 = vector.broadcast %cst_231 : f32 to vector<2x16xf32>
    %686 = arith.subf %685, %684 : vector<2x16xf32>
    %687 = math.exp %686 : vector<2x16xf32>
    %cst_232 = arith.constant 1.000000e+00 : f32
    %688 = vector.broadcast %cst_232 : f32 to vector<2x16xf32>
    %689 = arith.addf %688, %687 : vector<2x16xf32>
    %cst_233 = arith.constant 1.000000e+00 : f32
    %690 = vector.broadcast %cst_233 : f32 to vector<2x16xf32>
    %691 = arith.divf %690, %689 : vector<2x16xf32>
    %692 = vector.extract_strided_slice %675 {offsets = [0, 32], sizes = [2, 16], strides = [1, 1]} : vector<2x64xf32> to vector<2x16xf32>
    %693 = math.tanh %692 : vector<2x16xf32>
    %694 = vector.extract_strided_slice %675 {offsets = [0, 48], sizes = [2, 16], strides = [1, 1]} : vector<2x64xf32> to vector<2x16xf32>
    %cst_234 = arith.constant 0.000000e+00 : f32
    %695 = vector.broadcast %cst_234 : f32 to vector<2x16xf32>
    %696 = arith.subf %695, %694 : vector<2x16xf32>
    %697 = math.exp %696 : vector<2x16xf32>
    %cst_235 = arith.constant 1.000000e+00 : f32
    %698 = vector.broadcast %cst_235 : f32 to vector<2x16xf32>
    %699 = arith.addf %698, %697 : vector<2x16xf32>
    %cst_236 = arith.constant 1.000000e+00 : f32
    %700 = vector.broadcast %cst_236 : f32 to vector<2x16xf32>
    %701 = arith.divf %700, %699 : vector<2x16xf32>
    %702 = arith.mulf %691, %668 : vector<2x16xf32>
    %703 = arith.mulf %683, %693 : vector<2x16xf32>
    %704 = arith.addf %702, %703 : vector<2x16xf32>
    %705 = math.tanh %704 : vector<2x16xf32>
    %706 = arith.mulf %701, %705 : vector<2x16xf32>
    %707 = arith.mulf %671, %706 : vector<2x16xf32>
    %cst_237 = arith.constant 1.000000e+00 : f32
    %708 = vector.broadcast %cst_237 : f32 to vector<2x16xf32>
    %709 = arith.subf %708, %671 : vector<2x16xf32>
    %710 = arith.mulf %709, %663 : vector<2x16xf32>
    %711 = arith.addf %707, %710 : vector<2x16xf32>
    %712 = arith.mulf %671, %704 : vector<2x16xf32>
    %cst_238 = arith.constant 1.000000e+00 : f32
    %713 = vector.broadcast %cst_238 : f32 to vector<2x16xf32>
    %714 = arith.subf %713, %671 : vector<2x16xf32>
    %715 = arith.mulf %714, %668 : vector<2x16xf32>
    %716 = arith.addf %712, %715 : vector<2x16xf32>
    %717 = arith.mulf %671, %706 : vector<2x16xf32>
    %c2_239 = arith.constant 2 : index
    %c0_240 = arith.constant 0 : index
    %718 = vector.load %arg17[%c2_239, %c0_240] : memref<16x16xf32, #tpu.memory_space<vmem>>, vector<2x16xf32>
    tpu.vector_store %arg17[%c2_239, %c0_240], %717 {strides = array<i32>} : memref<16x16xf32, #tpu.memory_space<vmem>>, vector<2x16xf32>,
    %c0_241 = arith.constant 0 : index
    %c0_242 = arith.constant 0 : index
    %719 = vector.load %arg1[%c0_241, %c0_242] : memref<16x16xf32, #tpu.memory_space<vmem>>, vector<2x16xf32>
    %720 = vector.extract_strided_slice %5 {offsets = [0, 64], sizes = [2, 64], strides = [1, 1]} : vector<16x128xf32> to vector<2x64xf32>
    %721 = arith.truncf %711 : vector<2x16xf32> to vector<2x16xbf16>
    %cst_243 = arith.constant dense<0.000000e+00> : vector<2x64xf32>
    %722 = tpu.matmul %721, %7, %cst_243 {dimension_numbers = #tpu.dot_dimension_numbers<[1], [0], [0], [1], [0, 0, 1, 1], [], []>} : vector<2x16xbf16>, vector<16x64xbf16>, vector<2x64xf32> -> vector<2x64xf32>
    %723 = arith.addf %720, %722 : vector<2x64xf32>
    %724 = vector.extract_strided_slice %723 {offsets = [0, 0], sizes = [2, 16], strides = [1, 1]} : vector<2x64xf32> to vector<2x16xf32>
    %cst_244 = arith.constant 0.000000e+00 : f32
    %725 = vector.broadcast %cst_244 : f32 to vector<2x16xf32>
    %726 = arith.subf %725, %724 : vector<2x16xf32>
    %727 = math.exp %726 : vector<2x16xf32>
    %cst_245 = arith.constant 1.000000e+00 : f32
    %728 = vector.broadcast %cst_245 : f32 to vector<2x16xf32>
    %729 = arith.addf %728, %727 : vector<2x16xf32>
    %cst_246 = arith.constant 1.000000e+00 : f32
    %730 = vector.broadcast %cst_246 : f32 to vector<2x16xf32>
    %731 = arith.divf %730, %729 : vector<2x16xf32>
    %732 = vector.extract_strided_slice %723 {offsets = [0, 16], sizes = [2, 16], strides = [1, 1]} : vector<2x64xf32> to vector<2x16xf32>
    %cst_247 = arith.constant 0.000000e+00 : f32
    %733 = vector.broadcast %cst_247 : f32 to vector<2x16xf32>
    %734 = arith.subf %733, %732 : vector<2x16xf32>
    %735 = math.exp %734 : vector<2x16xf32>
    %cst_248 = arith.constant 1.000000e+00 : f32
    %736 = vector.broadcast %cst_248 : f32 to vector<2x16xf32>
    %737 = arith.addf %736, %735 : vector<2x16xf32>
    %cst_249 = arith.constant 1.000000e+00 : f32
    %738 = vector.broadcast %cst_249 : f32 to vector<2x16xf32>
    %739 = arith.divf %738, %737 : vector<2x16xf32>
    %740 = vector.extract_strided_slice %723 {offsets = [0, 32], sizes = [2, 16], strides = [1, 1]} : vector<2x64xf32> to vector<2x16xf32>
    %741 = math.tanh %740 : vector<2x16xf32>
    %742 = vector.extract_strided_slice %723 {offsets = [0, 48], sizes = [2, 16], strides = [1, 1]} : vector<2x64xf32> to vector<2x16xf32>
    %cst_250 = arith.constant 0.000000e+00 : f32
    %743 = vector.broadcast %cst_250 : f32 to vector<2x16xf32>
    %744 = arith.subf %743, %742 : vector<2x16xf32>
    %745 = math.exp %744 : vector<2x16xf32>
    %cst_251 = arith.constant 1.000000e+00 : f32
    %746 = vector.broadcast %cst_251 : f32 to vector<2x16xf32>
    %747 = arith.addf %746, %745 : vector<2x16xf32>
    %cst_252 = arith.constant 1.000000e+00 : f32
    %748 = vector.broadcast %cst_252 : f32 to vector<2x16xf32>
    %749 = arith.divf %748, %747 : vector<2x16xf32>
    %750 = arith.mulf %739, %716 : vector<2x16xf32>
    %751 = arith.mulf %731, %741 : vector<2x16xf32>
    %752 = arith.addf %750, %751 : vector<2x16xf32>
    %753 = math.tanh %752 : vector<2x16xf32>
    %754 = arith.mulf %749, %753 : vector<2x16xf32>
    %755 = arith.mulf %719, %754 : vector<2x16xf32>
    %c0_253 = arith.constant 0 : index
    %c0_254 = arith.constant 0 : index
    %756 = vector.load %arg17[%c0_253, %c0_254] : memref<16x16xf32, #tpu.memory_space<vmem>>, vector<2x16xf32>
    tpu.vector_store %arg17[%c0_253, %c0_254], %755 {strides = array<i32>} : memref<16x16xf32, #tpu.memory_space<vmem>>, vector<2x16xf32>,
    %c0_255 = arith.constant 0 : index
    %c0_256 = arith.constant 0 : index
    %757 = vector.load %arg16[%c0_255, %c0_256] : memref<16x16xf32, #tpu.memory_space<vmem>>, vector<16x16xf32>
    %c0_257 = arith.constant 0 : index
    %c0_258 = arith.constant 0 : index
    %758 = vector.load %arg17[%c0_257, %c0_258] : memref<16x16xf32, #tpu.memory_space<vmem>>, vector<16x16xf32>
    %759 = tpu.concatenate %757, %758 in 1 : vector<16x16xf32>, vector<16x16xf32> -> vector<16x32xf32>
    %c0_259 = arith.constant 0 : index
    %c0_260 = arith.constant 0 : index
    %760 = vector.load %arg2[%c0_259, %c0_260] : memref<16x16xbf16, #tpu.memory_space<vmem>>, vector<16x16xbf16>
    %c0_261 = arith.constant 0 : index
    %c0_262 = arith.constant 0 : index
    %761 = vector.load %arg8[%c0_261, %c0_262] : memref<32x128xbf16, #tpu.memory_space<vmem>>, vector<32x128xbf16>
    %c0_263 = arith.constant 0 : index
    %c0_264 = arith.constant 0 : index
    %762 = vector.load %arg9[%c0_263, %c0_264] : memref<1x128xf32, #tpu.memory_space<vmem>>, vector<1x128xf32>
    %763 = arith.truncf %759 : vector<16x32xf32> to vector<16x32xbf16>
    %cst_265 = arith.constant dense<0.000000e+00> : vector<16x128xf32>
    %764 = tpu.matmul %763, %761, %cst_265 {dimension_numbers = #tpu.dot_dimension_numbers<[1], [0], [0], [1], [0, 0, 1, 1], [], []>} : vector<16x32xbf16>, vector<32x128xbf16>, vector<16x128xf32> -> vector<16x128xf32>
    %765 = arith.truncf %764 : vector<16x128xf32> to vector<16x128xbf16>
    %cst_266 = arith.constant dense<0.000000e+00> : vector<16x128xf32>
    %766 = tpu.matmul %760, %765, %cst_266 {dimension_numbers = #tpu.dot_dimension_numbers<[1], [0], [0], [1], [0, 0, 1, 1], [], []>} : vector<16x16xbf16>, vector<16x128xbf16>, vector<16x128xf32> -> vector<16x128xf32>
    %767 = vector.broadcast %762 : vector<1x128xf32> to vector<16x128xf32>
    %768 = arith.addf %766, %767 : vector<16x128xf32>
    %cst_267 = arith.constant 0.000000e+00 : f32
    %769 = vector.broadcast %cst_267 : f32 to vector<16x128xf32>
    %770 = arith.maximumf %768, %769 : vector<16x128xf32>
    %c0_268 = arith.constant 0 : index
    %c0_269 = arith.constant 0 : index
    %771 = vector.load %arg10[%c0_268, %c0_269] : memref<128x128xbf16, #tpu.memory_space<vmem>>, vector<128x128xbf16>
    %c0_270 = arith.constant 0 : index
    %c0_271 = arith.constant 0 : index
    %772 = vector.load %arg11[%c0_270, %c0_271] : memref<1x128xf32, #tpu.memory_space<vmem>>, vector<1x128xf32>
    %773 = arith.truncf %770 : vector<16x128xf32> to vector<16x128xbf16>
    %cst_272 = arith.constant dense<0.000000e+00> : vector<16x128xf32>
    %774 = tpu.matmul %773, %771, %cst_272 {dimension_numbers = #tpu.dot_dimension_numbers<[1], [0], [0], [1], [0, 0, 1, 1], [], []>} : vector<16x128xbf16>, vector<128x128xbf16>, vector<16x128xf32> -> vector<16x128xf32>
    %775 = arith.truncf %774 : vector<16x128xf32> to vector<16x128xbf16>
    %cst_273 = arith.constant dense<0.000000e+00> : vector<16x128xf32>
    %776 = tpu.matmul %760, %775, %cst_273 {dimension_numbers = #tpu.dot_dimension_numbers<[1], [0], [0], [1], [0, 0, 1, 1], [], []>} : vector<16x16xbf16>, vector<16x128xbf16>, vector<16x128xf32> -> vector<16x128xf32>
    %777 = vector.broadcast %772 : vector<1x128xf32> to vector<16x128xf32>
    %778 = arith.addf %776, %777 : vector<16x128xf32>
    %cst_274 = arith.constant 0.000000e+00 : f32
    %779 = vector.broadcast %cst_274 : f32 to vector<16x128xf32>
    %780 = arith.maximumf %778, %779 : vector<16x128xf32>
    %781 = arith.truncf %780 : vector<16x128xf32> to vector<16x128xbf16>
    %c0_275 = arith.constant 0 : index
    %c0_276 = arith.constant 0 : index
    %782 = vector.load %arg12[%c0_275, %c0_276] : memref<128x768xbf16, #tpu.memory_space<vmem>>, vector<128x768xbf16>
    %cst_277 = arith.constant dense<0.000000e+00> : vector<16x768xf32>
    %783 = tpu.matmul %781, %782, %cst_277 {dimension_numbers = #tpu.dot_dimension_numbers<[1], [0], [0], [1], [0, 0, 1, 1], [], []>} : vector<16x128xbf16>, vector<128x768xbf16>, vector<16x768xf32> -> vector<16x768xf32>
    %c0_278 = arith.constant 0 : index
    %c0_279 = arith.constant 0 : index
    %784 = vector.load %arg3[%c0_278, %c0_279] : memref<16x16xf32, #tpu.memory_space<vmem>>, vector<16x16xf32>
    %785 = vector.extract_strided_slice %783 {offsets = [0, 0], sizes = [16, 128], strides = [1, 1]} : vector<16x768xf32> to vector<16x128xf32>
    %786 = arith.truncf %785 : vector<16x128xf32> to vector<16x128xbf16>
    %787 = vector.extract_strided_slice %783 {offsets = [0, 128], sizes = [16, 128], strides = [1, 1]} : vector<16x768xf32> to vector<16x128xf32>
    %788 = arith.truncf %787 : vector<16x128xf32> to vector<16x128xbf16>
    %789 = vector.extract_strided_slice %783 {offsets = [0, 256], sizes = [16, 128], strides = [1, 1]} : vector<16x768xf32> to vector<16x128xf32>
    %790 = arith.truncf %789 : vector<16x128xf32> to vector<16x128xbf16>
    %cst_280 = arith.constant dense<0.000000e+00> : vector<16x16xf32>
    %791 = tpu.matmul %786, %788, %cst_280 {dimension_numbers = #tpu.dot_dimension_numbers<[1], [1], [0], [0], [0, 0, 1, 0], [], []>} : vector<16x128xbf16>, vector<16x128xbf16>, vector<16x16xf32> -> vector<16x16xf32>
    %cst_281 = arith.constant 0.288675129 : f32
    %792 = vector.broadcast %cst_281 : f32 to vector<16x16xf32>
    %793 = arith.mulf %791, %792 : vector<16x16xf32>
    %794 = arith.addf %793, %784 : vector<16x16xf32>
    %cst_282 = arith.constant dense<0xFF800000> : vector<16xf32>
    %795 = vector.multi_reduction <maximumf>, %794, %cst_282 [1] : vector<16x16xf32> to vector<16xf32>
    %796 = vector.shape_cast %795 : vector<16xf32> to vector<16x1xf32>
    %797 = vector.broadcast %796 : vector<16x1xf32> to vector<16x16xf32>
    %798 = arith.subf %794, %797 : vector<16x16xf32>
    %799 = math.exp %798 : vector<16x16xf32>
    %cst_283 = arith.constant dense<0.000000e+00> : vector<16xf32>
    %800 = vector.multi_reduction <add>, %799, %cst_283 [1] : vector<16x16xf32> to vector<16xf32>
    %801 = vector.shape_cast %800 : vector<16xf32> to vector<16x1xf32>
    %802 = tpu.reciprocal %801 {approx = true} : vector<16x1xf32> -> vector<16x1xf32>
    %803 = vector.broadcast %802 : vector<16x1xf32> to vector<16x16xf32>
    %804 = arith.mulf %799, %803 : vector<16x16xf32>
    %805 = arith.truncf %804 : vector<16x16xf32> to vector<16x16xbf16>
    %cst_284 = arith.constant dense<0.000000e+00> : vector<16x128xf32>
    %806 = tpu.matmul %805, %790, %cst_284 {dimension_numbers = #tpu.dot_dimension_numbers<[1], [0], [0], [1], [0, 0, 1, 1], [], []>} : vector<16x16xbf16>, vector<16x128xbf16>, vector<16x128xf32> -> vector<16x128xf32>
    %807 = vector.extract_strided_slice %783 {offsets = [0, 384], sizes = [16, 128], strides = [1, 1]} : vector<16x768xf32> to vector<16x128xf32>
    %808 = arith.truncf %807 : vector<16x128xf32> to vector<16x128xbf16>
    %809 = vector.extract_strided_slice %783 {offsets = [0, 512], sizes = [16, 128], strides = [1, 1]} : vector<16x768xf32> to vector<16x128xf32>
    %810 = arith.truncf %809 : vector<16x128xf32> to vector<16x128xbf16>
    %811 = vector.extract_strided_slice %783 {offsets = [0, 640], sizes = [16, 128], strides = [1, 1]} : vector<16x768xf32> to vector<16x128xf32>
    %812 = arith.truncf %811 : vector<16x128xf32> to vector<16x128xbf16>
    %cst_285 = arith.constant dense<0.000000e+00> : vector<16x16xf32>
    %813 = tpu.matmul %808, %810, %cst_285 {dimension_numbers = #tpu.dot_dimension_numbers<[1], [1], [0], [0], [0, 0, 1, 0], [], []>} : vector<16x128xbf16>, vector<16x128xbf16>, vector<16x16xf32> -> vector<16x16xf32>
    %cst_286 = arith.constant 0.288675129 : f32
    %814 = vector.broadcast %cst_286 : f32 to vector<16x16xf32>
    %815 = arith.mulf %813, %814 : vector<16x16xf32>
    %816 = arith.addf %815, %784 : vector<16x16xf32>
    %cst_287 = arith.constant dense<0xFF800000> : vector<16xf32>
    %817 = vector.multi_reduction <maximumf>, %816, %cst_287 [1] : vector<16x16xf32> to vector<16xf32>
    %818 = vector.shape_cast %817 : vector<16xf32> to vector<16x1xf32>
    %819 = vector.broadcast %818 : vector<16x1xf32> to vector<16x16xf32>
    %820 = arith.subf %816, %819 : vector<16x16xf32>
    %821 = math.exp %820 : vector<16x16xf32>
    %cst_288 = arith.constant dense<0.000000e+00> : vector<16xf32>
    %822 = vector.multi_reduction <add>, %821, %cst_288 [1] : vector<16x16xf32> to vector<16xf32>
    %823 = vector.shape_cast %822 : vector<16xf32> to vector<16x1xf32>
    %824 = tpu.reciprocal %823 {approx = true} : vector<16x1xf32> -> vector<16x1xf32>
    %825 = vector.broadcast %824 : vector<16x1xf32> to vector<16x16xf32>
    %826 = arith.mulf %821, %825 : vector<16x16xf32>
    %827 = arith.truncf %826 : vector<16x16xf32> to vector<16x16xbf16>
    %cst_289 = arith.constant dense<0.000000e+00> : vector<16x128xf32>
    %828 = tpu.matmul %827, %812, %cst_289 {dimension_numbers = #tpu.dot_dimension_numbers<[1], [0], [0], [1], [0, 0, 1, 1], [], []>} : vector<16x16xbf16>, vector<16x128xbf16>, vector<16x128xf32> -> vector<16x128xf32>
    %829 = tpu.concatenate %806, %828 in 1 : vector<16x128xf32>, vector<16x128xf32> -> vector<16x256xf32>
    %830 = arith.truncf %829 : vector<16x256xf32> to vector<16x256xbf16>
    %c0_290 = arith.constant 0 : index
    %c0_291 = arith.constant 0 : index
    %831 = vector.load %arg13[%c0_290, %c0_291] : memref<256x128xbf16, #tpu.memory_space<vmem>>, vector<256x128xbf16>
    %cst_292 = arith.constant dense<0.000000e+00> : vector<16x128xf32>
    %832 = tpu.matmul %830, %831, %cst_292 {dimension_numbers = #tpu.dot_dimension_numbers<[1], [0], [0], [1], [0, 0, 1, 1], [], []>} : vector<16x256xbf16>, vector<256x128xbf16>, vector<16x128xf32> -> vector<16x128xf32>
    %c0_293 = arith.constant 0 : index
    %c0_294 = arith.constant 0 : index
    %833 = vector.load %arg14[%c0_293, %c0_294] : memref<1x128xf32, #tpu.memory_space<vmem>>, vector<1x128xf32>
    %834 = vector.broadcast %833 : vector<1x128xf32> to vector<16x128xf32>
    %835 = arith.addf %832, %834 : vector<16x128xf32>
    %836 = tpu.concatenate %780, %806, %828, %835 in 1 : vector<16x128xf32>, vector<16x128xf32>, vector<16x128xf32>, vector<16x128xf32> -> vector<16x512xf32>
    %c0_295 = arith.constant 0 : index
    %c0_296 = arith.constant 0 : index
    %837 = vector.load %arg15[%c0_295, %c0_296] : memref<16x512xf32, #tpu.memory_space<vmem>>, vector<16x512xf32>
    tpu.vector_store %arg15[%c0_295, %c0_296], %836 {strides = array<i32>} : memref<16x512xf32, #tpu.memory_space<vmem>>, vector<16x512xf32>,
    return
  }
}

</mosaic_0001>

<llo_original>
// kernel: dense_forward.1
$region0: #{dense_forward.1}
  #allocation0 [shape = 'u32[]', space=smem, size = 0x4, offset = 0x4, fixed_abs, tag = 'smem constant byte address 0x4 - core index']
  #allocation1 [shape = 'u32[144,128]{1,0:T(1,128)}', space=vmem, size = 0x12000, scoped, tag = 'internal scratch']
  #allocation2 [shape = 'f32[16,16]{1,0:T(8,128)}', space=vmem, size = 0x2000, scoped, tag = 'scratch operand']
  #allocation3 [shape = 'f32[16,16]{1,0:T(8,128)}', space=vmem, size = 0x2000, scoped, tag = 'scratch operand']
  %s0 = inlined_call_operand.vmem [shape: bf16[16,24], index: 0, kind: input, shape index: {}]
  %s1 = inlined_call_operand.vmem [shape: f32[16,16], index: 1, kind: input, shape index: {}]
  %s2 = inlined_call_operand.vmem [shape: bf16[16,16], index: 2, kind: input, shape index: {}]
  %s3 = inlined_call_operand.vmem [shape: f32[16,16], index: 3, kind: input, shape index: {}]
  %s4 = inlined_call_operand.vmem [shape: bf16[24,128], index: 4, kind: input, shape index: {}]
  %s5 = inlined_call_operand.vmem [shape: f32[1,128], index: 5, kind: input, shape index: {}]
  %s6 = inlined_call_operand.vmem [shape: bf16[16,64], index: 6, kind: input, shape index: {}]
  %s7 = inlined_call_operand.vmem [shape: bf16[16,64], index: 7, kind: input, shape index: {}]
  %s8 = inlined_call_operand.vmem [shape: bf16[32,128], index: 8, kind: input, shape index: {}]
  %s9 = inlined_call_operand.vmem [shape: f32[1,128], index: 9, kind: input, shape index: {}]
  %s10 = inlined_call_operand.vmem [shape: bf16[128,128], index: 10, kind: input, shape index: {}]
  %s11 = inlined_call_operand.vmem [shape: f32[1,128], index: 11, kind: input, shape index: {}]
  %s12 = inlined_call_operand.vmem [shape: bf16[128,768], index: 12, kind: input, shape index: {}]
  %s13 = inlined_call_operand.vmem [shape: bf16[256,128], index: 13, kind: input, shape index: {}]
  %s14 = inlined_call_operand.vmem [shape: f32[1,128], index: 14, kind: input, shape index: {}]
  %s15 = inlined_call_operand.vmem [shape: f32[16,512], index: 15, kind: output, shape index: {}]
  %s16 = sld [smem:[#allocation0]]
  $region70: #{dense_forward.1} parent=0
    _
  %s18 = ssub.s32 1, %s16
  %s19 = scalar_select 0, %s18, %s16
  // Predicated region
  $region2: #{dense_forward.1} parent=0 // pred_check
    _
  $region3: #{dense_forward.1} parent=0 // pred_check_branch
    %21 = sbr.rel (0) target = $region5
  $region4: #{dense_forward.1} parent=0 // pred_region
    _
  $region5: #{dense_forward.1} parent=0 // pred_fallthru
    _
  // Predicated region
  $region6: #{dense_forward.1} parent=0 // pred_check
    _
  $region7: #{dense_forward.1} parent=0 // pred_check_branch
    %23 = sbr.rel (0) target = $region9
  $region8: #{dense_forward.1} parent=0 // pred_region
    _
  $region9: #{dense_forward.1} parent=0 // pred_fallthru
    _
  // Predicated region
  $region10: #{dense_forward.1} parent=0 // pred_check
    _
  $region11: #{dense_forward.1} parent=0 // pred_check_branch
    %25 = sbr.rel (0) target = $region13
  $region12: #{dense_forward.1} parent=0 // pred_region
    _
  $region13: #{dense_forward.1} parent=0 // pred_fallthru
    _
  // Predicated region
  $region14: #{dense_forward.1} parent=0 // pred_check
    _
  $region15: #{dense_forward.1} parent=0 // pred_check_branch
    %27 = sbr.rel (0) target = $region17
  $region16: #{dense_forward.1} parent=0 // pred_region
    _
  $region17: #{dense_forward.1} parent=0 // pred_fallthru
    _
  // Predicated region
  $region18: #{dense_forward.1} parent=0 // pred_check
    _
  $region19: #{dense_forward.1} parent=0 // pred_check_branch
    %29 = sbr.rel (0) target = $region21
  $region20: #{dense_forward.1} parent=0 // pred_region
    _
  $region21: #{dense_forward.1} parent=0 // pred_fallthru
    _
  // Predicated region
  $region22: #{dense_forward.1} parent=0 // pred_check
    _
  $region23: #{dense_forward.1} parent=0 // pred_check_branch
    %31 = sbr.rel (0) target = $region25
  $region24: #{dense_forward.1} parent=0 // pred_region
    _
  $region25: #{dense_forward.1} parent=0 // pred_fallthru
    _
  // Predicated region
  $region26: #{dense_forward.1} parent=0 // pred_check
    _
  $region27: #{dense_forward.1} parent=0 // pred_check_branch
    %33 = sbr.rel (0) target = $region29
  $region28: #{dense_forward.1} parent=0 // pred_region
    _
  $region29: #{dense_forward.1} parent=0 // pred_fallthru
    _
  // Predicated region
  $region30: #{dense_forward.1} parent=0 // pred_check
    _
  $region31: #{dense_forward.1} parent=0 // pred_check_branch
    %35 = sbr.rel (0) target = $region33
  $region32: #{dense_forward.1} parent=0 // pred_region
    _
  $region33: #{dense_forward.1} parent=0 // pred_fallthru
    _
  // Predicated region
  $region34: #{dense_forward.1} parent=0 // pred_check
    _
  $region35: #{dense_forward.1} parent=0 // pred_check_branch
    %37 = sbr.rel (0) target = $region37
  $region36: #{dense_forward.1} parent=0 // pred_region
    _
  $region37: #{dense_forward.1} parent=0 // pred_fallthru
    _
  // Predicated region
  $region38: #{dense_forward.1} parent=0 // pred_check
    _
  $region39: #{dense_forward.1} parent=0 // pred_check_branch
    %39 = sbr.rel (0) target = $region41
  $region40: #{dense_forward.1} parent=0 // pred_region
    _
  $region41: #{dense_forward.1} parent=0 // pred_fallthru
    _
  // Predicated region
  $region42: #{dense_forward.1} parent=0 // pred_check
    _
  $region43: #{dense_forward.1} parent=0 // pred_check_branch
    %41 = sbr.rel (0) target = $region45
  $region44: #{dense_forward.1} parent=0 // pred_region
    _
  $region45: #{dense_forward.1} parent=0 // pred_fallthru
    _
  // Predicated region
  $region46: #{dense_forward.1} parent=0 // pred_check
    _
  $region47: #{dense_forward.1} parent=0 // pred_check_branch
    %43 = sbr.rel (0) target = $region49
  $region48: #{dense_forward.1} parent=0 // pred_region
    _
  $region49: #{dense_forward.1} parent=0 // pred_fallthru
    _
  // Predicated region
  $region50: #{dense_forward.1} parent=0 // pred_check
    _
  $region51: #{dense_forward.1} parent=0 // pred_check_branch
    %45 = sbr.rel (0) target = $region53
  $region52: #{dense_forward.1} parent=0 // pred_region
    _
  $region53: #{dense_forward.1} parent=0 // pred_fallthru
    _
  // Predicated region
  $region54: #{dense_forward.1} parent=0 // pred_check
    _
  $region55: #{dense_forward.1} parent=0 // pred_check_branch
    %47 = sbr.rel (0) target = $region57
  $region56: #{dense_forward.1} parent=0 // pred_region
    _
  $region57: #{dense_forward.1} parent=0 // pred_fallthru
    _
  // Predicated region
  $region58: #{dense_forward.1} parent=0 // pred_check
    _
  $region59: #{dense_forward.1} parent=0 // pred_check_branch
    %49 = sbr.rel (0) target = $region61
  $region60: #{dense_forward.1} parent=0 // pred_region
    _
  $region61: #{dense_forward.1} parent=0 // pred_fallthru
    _
  %v51 = vld [vmem:[%s0] sm:$0xf]
  %v52 = vld [vmem:[%s0 + $0x4] sm:$0xf]
  %v53 = vld [vmem:[%s4] sm:$0xf]
  %v54 = vld [vmem:[%s4 + $0x4] sm:$0xf]
  %v55 = vld [vmem:[%s4 + $0x8] sm:$0xf]
  %v56 = vld [vmem:[%s5] sm:$0x1]
  %v58 = vlaneseq
  %v59 = vshrl.u32 %v58, 7
  %v60 = vsub.s32 0, %v59
  %v61 = vrot.slane %v56, %v60
  %v65 = vunpack.c.l.b16 %v51
  %v66 = vunpack.c.l.b16 %v52
  %v67 = vpack.c.b16 %v66, %v65
  %v71 = vunpack.c.l.b16 %v53
  %v72 = vunpack.c.l.b16 %v54
  %v73 = vunpack.c.l.b16 %v55
  %v74 = vpack.c.b16 %v72, %v71
  %v75 = vpack.c.b16 %v73, %v73
  %vm77 = vcmask 195584
  %v79 = vsel %vm77, %v67, 0
  %vm81 = vcmask 1043456
  %v83 = vsel %vm81, %v75, 0
  %85 = vmatprep.subr.bf16.mxu0 0
  %86 = vmatpush1.bf16.msra.mxu0 %v74
  %87 = vmatprep.subr.bf16.mxu0 0
  %88 = vmatpush1.bf16.msra.mxu0 %v83
  %89 = vmatprep.subr.bf16.mxu0 0
  %90 = vmatpush1.bf16.msra.mxu0 0
  %91 = vmatprep.subr.bf16.mxu0 0
  %92 = vmatpush1.bf16.msra.mxu0 0
  %93 = vmatprep.subr.bf16.mxu0 0
  %94 = vmatpush1.bf16.msra.mxu0 0
  %95 = vmatprep.subr.bf16.mxu0 0
  %96 = vmatpush1.bf16.msra.mxu0 0
  %97 = vmatprep.subr.bf16.mxu0 0
  %98 = vmatpush1.bf16.msra.mxu0 0
  %99 = vmatprep.subr.bf16.mxu0 0
  %100 = vmatpush1.bf16.msra.mxu0 0
  %101 = vmatprep.subr.bf16.mxu0 0
  %102 = vmatpush1.bf16.msra.mxu0 0
  %103 = vmatprep.subr.bf16.mxu0 0
  %104 = vmatpush1.bf16.msra.mxu0 0
  %105 = vmatprep.subr.bf16.mxu0 0
  %106 = vmatpush1.bf16.msra.mxu0 0
  %107 = vmatprep.subr.bf16.mxu0 0
  %108 = vmatpush1.bf16.msra.mxu0 0
  %109 = vmatprep.subr.bf16.mxu0 0
  %110 = vmatpush1.bf16.msra.mxu0 0
  %111 = vmatprep.subr.bf16.mxu0 0
  %112 = vmatpush1.bf16.msra.mxu0 0
  %113 = vmatprep.subr.bf16.mxu0 0
  %114 = vmatpush1.bf16.msra.mxu0 0
  %115 = vmatprep.subr.bf16.mxu0 0
  %116 = vmatpush1.bf16.msra.mxu0 0
  %117 = vmatprep.mubr.bf16.mxu0 0
  %118 = vmatmul.mubr.bf16.gmra.mrb[0].mxu0 %v79
  %v119 = vpop.f32.mrb[0].mxu0
  %v120 = vadd.f32 %v61, %v119
  %v121 = vpop.f32.mrb[0].mxu0
  %v122 = vpop.f32.mrb[0].mxu0
  %v123 = vadd.f32 %v61, %v122
  %v124 = vpop.f32.mrb[0].mxu0
  %125 = vdwg.mxu0
  %v126 = vld [vmem:[%s6] sm:$0xf]
  %v127 = vld [vmem:[%s6 + $0x4] sm:$0xf]
  %v128 = vld [vmem:[%s7] sm:$0xf]
  %v129 = vld [vmem:[%s7 + $0x4] sm:$0xf]
  %v130 = vld [vmem:[%s1] sm:$0x3]
  %v133 = vunpack.c.l.b16 %v126
  %v134 = vunpack.c.l.b16 %v127
  %v135 = vpack.c.b16 %v134, %v133
  %vm137 = vcmask 130048
  %v139 = vsel %vm137, 0, 0
  %141 = vmatprep.subr.bf16.mxu0 0
  %142 = vmatpush1.bf16.msra.mxu0 %v135
  %143 = vmatprep.subr.bf16.mxu0 0
  %144 = vmatpush1.bf16.msra.mxu0 0
  %145 = vmatprep.subr.bf16.mxu0 0
  %146 = vmatpush1.bf16.msra.mxu0 0
  %147 = vmatprep.subr.bf16.mxu0 0
  %148 = vmatpush1.bf16.msra.mxu0 0
  %149 = vmatprep.subr.bf16.mxu0 0
  %150 = vmatpush1.bf16.msra.mxu0 0
  %151 = vmatprep.subr.bf16.mxu0 0
  %152 = vmatpush1.bf16.msra.mxu0 0
  %153 = vmatprep.subr.bf16.mxu0 0
  %154 = vmatpush1.bf16.msra.mxu0 0
  %155 = vmatprep.subr.bf16.mxu0 0
  %156 = vmatpush1.bf16.msra.mxu0 0
  %157 = vmatprep.subr.bf16.mxu0 0
  %158 = vmatpush1.bf16.msra.mxu0 0
  %159 = vmatprep.subr.bf16.mxu0 0
  %160 = vmatpush1.bf16.msra.mxu0 0
  %161 = vmatprep.subr.bf16.mxu0 0
  %162 = vmatpush1.bf16.msra.mxu0 0
  %163 = vmatprep.subr.bf16.mxu0 0
  %164 = vmatpush1.bf16.msra.mxu0 0
  %165 = vmatprep.subr.bf16.mxu0 0
  %166 = vmatpush1.bf16.msra.mxu0 0
  %167 = vmatprep.subr.bf16.mxu0 0
  %168 = vmatpush1.bf16.msra.mxu0 0
  %169 = vmatprep.subr.bf16.mxu0 0
  %170 = vmatpush1.bf16.msra.mxu0 0
  %171 = vmatprep.subr.bf16.mxu0 0
  %172 = vmatpush1.bf16.msra.mxu0 0
  %173 = vmatprep.mubr.bf16.mxu0 0
  %174 = vmatmul.mubr.bf16.gmra.mrb[0].mxu0 %v139
  %v175 = vpop.f32.mrb[0].mxu0
  %v176 = vadd.f32 0.0, %v175
  %v177 = vpop.f32.mrb[0].mxu0
  %v178 = vpop.f32.mrb[0].mxu0
  %v179 = vpop.f32.mrb[0].mxu0
  %180 = vdwg.mxu0
  %v181 = vadd.f32 %v120, %v176
  %v182 = vsub.f32 0.0, %v181
  %v183 = vmul.f32 %v182, 1.442695
  %v184 = vpow.pop %v183
  %v185 = vadd.f32 %v184, 1.0
  %v186 = vrcp.pop %v185
  %v187 = vmul.f32 1.0, %v186
  %v188 = vtanh.pop %v181
  %v189 = vmul.f32 %v187, 0.0
  %191 = vrot.lane.b32.xlu0 %v188, 96
  %v192 = vpop.permute.xlu0 %191
  %v194 = vmul.f32 %v187, %v192
  %196 = vrot.lane.b32.xlu0 %v194, 16
  %v197 = vpop.permute.xlu0 %196
  %v199 = vadd.f32 %v189, %v197
  %v200 = vtanh.pop %v199
  %202 = vrot.lane.b32.xlu0 %v200, 32
  %v203 = vpop.permute.xlu0 %202
  %v205 = vmul.f32 %v187, %v203
  %207 = vrot.lane.b32.xlu0 %v205, 80
  %v208 = vpop.permute.xlu0 %207
  %v210 = vmul.f32 %v130, %v208
  %v211 = vsub.f32 1.0, %v130
  %v212 = vmul.f32 %v211, 0.0
  %v213 = vadd.f32 %v210, %v212
  %215 = vrot.lane.b32.xlu0 %v199, 112
  %v216 = vpop.permute.xlu0 %215
  %v218 = vmul.f32 %v130, %v216
  %v219 = vadd.f32 %v218, %v212
  %vm220 = vcmask 123904
  %221 = vst.msk [vmem:[#allocation2] sm:$0x3] %vm220, %v210
  %v222 = vld [vmem:[%s1 + $0x2] sm:$0x3]
  %v223 = vpack.c.bf16 %v213, %v213
  %v225 = vsel %vm137, %v223, 0
  %227 = vmatprep.subr.bf16.mxu0 0
  %228 = vmatpush1.bf16.msra.mxu0 %v135
  %229 = vmatprep.subr.bf16.mxu0 0
  %230 = vmatpush1.bf16.msra.mxu0 0
  %231 = vmatprep.subr.bf16.mxu0 0
  %232 = vmatpush1.bf16.msra.mxu0 0
  %233 = vmatprep.subr.bf16.mxu0 0
  %234 = vmatpush1.bf16.msra.mxu0 0
  %235 = vmatprep.subr.bf16.mxu0 0
  %236 = vmatpush1.bf16.msra.mxu0 0
  %237 = vmatprep.subr.bf16.mxu0 0
  %238 = vmatpush1.bf16.msra.mxu0 0
  %239 = vmatprep.subr.bf16.mxu0 0
  %240 = vmatpush1.bf16.msra.mxu0 0
  %241 = vmatprep.subr.bf16.mxu0 0
  %242 = vmatpush1.bf16.msra.mxu0 0
  %243 = vmatprep.subr.bf16.mxu0 0
  %244 = vmatpush1.bf16.msra.mxu0 0
  %245 = vmatprep.subr.bf16.mxu0 0
  %246 = vmatpush1.bf16.msra.mxu0 0
  %247 = vmatprep.subr.bf16.mxu0 0
  %248 = vmatpush1.bf16.msra.mxu0 0
  %249 = vmatprep.subr.bf16.mxu0 0
  %250 = vmatpush1.bf16.msra.mxu0 0
  %251 = vmatprep.subr.bf16.mxu0 0
  %252 = vmatpush1.bf16.msra.mxu0 0
  %253 = vmatprep.subr.bf16.mxu0 0
  %254 = vmatpush1.bf16.msra.mxu0 0
  %255 = vmatprep.subr.bf16.mxu0 0
  %256 = vmatpush1.bf16.msra.mxu0 0
  %257 = vmatprep.subr.bf16.mxu0 0
  %258 = vmatpush1.bf16.msra.mxu0 0
  %259 = vmatprep.mubr.bf16.mxu0 0
  %260 = vmatmul.mubr.bf16.gmra.mrb[0].mxu0 %v225
  %v261 = vpop.f32.mrb[0].mxu0
  %v262 = vadd.f32 0.0, %v261
  %v263 = vpop.f32.mrb[0].mxu0
  %v264 = vpop.f32.mrb[0].mxu0
  %v265 = vpop.f32.mrb[0].mxu0
  %266 = vdwg.mxu0
  %v268 = vrot.slane %v262, 6
  %v270 = vadd.f32 %v120, %v268
  %v271 = vsub.f32 0.0, %v270
  %v272 = vmul.f32 %v271, 1.442695
  %v273 = vpow.pop %v272
  %v274 = vadd.f32 %v273, 1.0
  %v275 = vrcp.pop %v274
  %v276 = vmul.f32 1.0, %v275
  %v277 = vtanh.pop %v270
  %v279 = vrot.slane %v219, 6
  %280 = vrot.lane.b32.xlu0 %v279, 16
  %v281 = vpop.permute.xlu0 %280
  %v283 = vmul.f32 %v276, %v281
  %285 = vrot.lane.b32.xlu0 %v277, 96
  %v286 = vpop.permute.xlu0 %285
  %v288 = vmul.f32 %v276, %v286
  %290 = vrot.lane.b32.xlu0 %v288, 16
  %v291 = vpop.permute.xlu0 %290
  %v293 = vadd.f32 %v283, %v291
  %v294 = vtanh.pop %v293
  %296 = vrot.lane.b32.xlu0 %v294, 32
  %v297 = vpop.permute.xlu0 %296
  %v299 = vmul.f32 %v276, %v297
  %v301 = vrot.slane %v299, 2
  %302 = vrot.lane.b32.xlu0 %v301, 80
  %v303 = vpop.permute.xlu0 %302
  %v305 = vmul.f32 %v222, %v303
  %v306 = vsub.f32 1.0, %v222
  %v307 = vmul.f32 %v306, %v213
  %v308 = vadd.f32 %v305, %v307
  %v310 = vrot.slane %v293, 2
  %311 = vrot.lane.b32.xlu0 %v310, 112
  %v312 = vpop.permute.xlu0 %311
  %v314 = vmul.f32 %v222, %v312
  %v315 = vmul.f32 %v306, %v219
  %v316 = vadd.f32 %v314, %v315
  %317 = vst.msk [vmem:[#allocation2 + $0x2] sm:$0x3] %vm220, %v305
  %v318 = vld [vmem:[%s1 + $0x4] sm:$0x3]
  %v319 = vpack.c.bf16 %v308, %v308
  %v321 = vsel %vm137, %v319, 0
  %323 = vmatprep.subr.bf16.mxu0 0
  %324 = vmatpush1.bf16.msra.mxu0 %v135
  %325 = vmatprep.subr.bf16.mxu0 0
  %326 = vmatpush1.bf16.msra.mxu0 0
  %327 = vmatprep.subr.bf16.mxu0 0
  %328 = vmatpush1.bf16.msra.mxu0 0
  %329 = vmatprep.subr.bf16.mxu0 0
  %330 = vmatpush1.bf16.msra.mxu0 0
  %331 = vmatprep.subr.bf16.mxu0 0
  %332 = vmatpush1.bf16.msra.mxu0 0
  %333 = vmatprep.subr.bf16.mxu0 0
  %334 = vmatpush1.bf16.msra.mxu0 0
  %335 = vmatprep.subr.bf16.mxu0 0
  %336 = vmatpush1.bf16.msra.mxu0 0
  %337 = vmatprep.subr.bf16.mxu0 0
  %338 = vmatpush1.bf16.msra.mxu0 0
  %339 = vmatprep.subr.bf16.mxu0 0
  %340 = vmatpush1.bf16.msra.mxu0 0
  %341 = vmatprep.subr.bf16.mxu0 0
  %342 = vmatpush1.bf16.msra.mxu0 0
  %343 = vmatprep.subr.bf16.mxu0 0
  %344 = vmatpush1.bf16.msra.mxu0 0
  %345 = vmatprep.subr.bf16.mxu0 0
  %346 = vmatpush1.bf16.msra.mxu0 0
  %347 = vmatprep.subr.bf16.mxu0 0
  %348 = vmatpush1.bf16.msra.mxu0 0
  %349 = vmatprep.subr.bf16.mxu0 0
  %350 = vmatpush1.bf16.msra.mxu0 0
  %351 = vmatprep.subr.bf16.mxu0 0
  %352 = vmatpush1.bf16.msra.mxu0 0
  %353 = vmatprep.subr.bf16.mxu0 0
  %354 = vmatpush1.bf16.msra.mxu0 0
  %355 = vmatprep.mubr.bf16.mxu0 0
  %356 = vmatmul.mubr.bf16.gmra.mrb[0].mxu0 %v321
  %v357 = vpop.f32.mrb[0].mxu0
  %v358 = vadd.f32 0.0, %v357
  %v359 = vpop.f32.mrb[0].mxu0
  %v360 = vpop.f32.mrb[0].mxu0
  %v361 = vpop.f32.mrb[0].mxu0
  %362 = vdwg.mxu0
  %v364 = vrot.slane %v358, 4
  %v366 = vadd.f32 %v120, %v364
  %v367 = vsub.f32 0.0, %v366
  %v368 = vmul.f32 %v367, 1.442695
  %v369 = vpow.pop %v368
  %v370 = vadd.f32 %v369, 1.0
  %v371 = vrcp.pop %v370
  %v372 = vmul.f32 1.0, %v371
  %v373 = vtanh.pop %v366
  %v375 = vrot.slane %v316, 4
  %376 = vrot.lane.b32.xlu0 %v375, 16
  %v377 = vpop.permute.xlu0 %376
  %v379 = vmul.f32 %v372, %v377
  %381 = vrot.lane.b32.xlu0 %v373, 96
  %v382 = vpop.permute.xlu0 %381
  %v384 = vmul.f32 %v372, %v382
  %386 = vrot.lane.b32.xlu0 %v384, 16
  %v387 = vpop.permute.xlu0 %386
  %v389 = vadd.f32 %v379, %v387
  %v390 = vtanh.pop %v389
  %392 = vrot.lane.b32.xlu0 %v390, 32
  %v393 = vpop.permute.xlu0 %392
  %v395 = vmul.f32 %v372, %v393
  %v397 = vrot.slane %v395, 4
  %398 = vrot.lane.b32.xlu0 %v397, 80
  %v399 = vpop.permute.xlu0 %398
  %v401 = vmul.f32 %v318, %v399
  %v402 = vsub.f32 1.0, %v318
  %v403 = vmul.f32 %v402, %v308
  %v404 = vadd.f32 %v401, %v403
  %v406 = vrot.slane %v389, 4
  %407 = vrot.lane.b32.xlu0 %v406, 112
  %v408 = vpop.permute.xlu0 %407
  %v410 = vmul.f32 %v318, %v408
  %v411 = vmul.f32 %v402, %v316
  %v412 = vadd.f32 %v410, %v411
  %413 = vst.msk [vmem:[#allocation2 + $0x4] sm:$0x3] %vm220, %v401
  %v414 = vld [vmem:[%s1 + $0x6] sm:$0x3]
  %v415 = vpack.c.bf16 %v404, %v404
  %v417 = vsel %vm137, %v415, 0
  %419 = vmatprep.subr.bf16.mxu0 0
  %420 = vmatpush1.bf16.msra.mxu0 %v135
  %421 = vmatprep.subr.bf16.mxu0 0
  %422 = vmatpush1.bf16.msra.mxu0 0
  %423 = vmatprep.subr.bf16.mxu0 0
  %424 = vmatpush1.bf16.msra.mxu0 0
  %425 = vmatprep.subr.bf16.mxu0 0
  %426 = vmatpush1.bf16.msra.mxu0 0
  %427 = vmatprep.subr.bf16.mxu0 0
  %428 = vmatpush1.bf16.msra.mxu0 0
  %429 = vmatprep.subr.bf16.mxu0 0
  %430 = vmatpush1.bf16.msra.mxu0 0
  %431 = vmatprep.subr.bf16.mxu0 0
  %432 = vmatpush1.bf16.msra.mxu0 0
  %433 = vmatprep.subr.bf16.mxu0 0
  %434 = vmatpush1.bf16.msra.mxu0 0
  %435 = vmatprep.subr.bf16.mxu0 0
  %436 = vmatpush1.bf16.msra.mxu0 0
  %437 = vmatprep.subr.bf16.mxu0 0
  %438 = vmatpush1.bf16.msra.mxu0 0
  %439 = vmatprep.subr.bf16.mxu0 0
  %440 = vmatpush1.bf16.msra.mxu0 0
  %441 = vmatprep.subr.bf16.mxu0 0
  %442 = vmatpush1.bf16.msra.mxu0 0
  %443 = vmatprep.subr.bf16.mxu0 0
  %444 = vmatpush1.bf16.msra.mxu0 0
  %445 = vmatprep.subr.bf16.mxu0 0
  %446 = vmatpush1.bf16.msra.mxu0 0
  %447 = vmatprep.subr.bf16.mxu0 0
  %448 = vmatpush1.bf16.msra.mxu0 0
  %449 = vmatprep.subr.bf16.mxu0 0
  %450 = vmatpush1.bf16.msra.mxu0 0
  %451 = vmatprep.mubr.bf16.mxu0 0
  %452 = vmatmul.mubr.bf16.gmra.mrb[0].mxu0 %v417
  %v453 = vpop.f32.mrb[0].mxu0
  %v454 = vadd.f32 0.0, %v453
  %v455 = vpop.f32.mrb[0].mxu0
  %v456 = vpop.f32.mrb[0].mxu0
  %v457 = vpop.f32.mrb[0].mxu0
  %458 = vdwg.mxu0
  %v460 = vrot.slane %v454, 2
  %v462 = vadd.f32 %v120, %v460
  %v463 = vsub.f32 0.0, %v462
  %v464 = vmul.f32 %v463, 1.442695
  %v465 = vpow.pop %v464
  %v466 = vadd.f32 %v465, 1.0
  %v467 = vrcp.pop %v466
  %v468 = vmul.f32 1.0, %v467
  %v469 = vtanh.pop %v462
  %v471 = vrot.slane %v412, 2
  %472 = vrot.lane.b32.xlu0 %v471, 16
  %v473 = vpop.permute.xlu0 %472
  %v475 = vmul.f32 %v468, %v473
  %477 = vrot.lane.b32.xlu0 %v469, 96
  %v478 = vpop.permute.xlu0 %477
  %v480 = vmul.f32 %v468, %v478
  %482 = vrot.lane.b32.xlu0 %v480, 16
  %v483 = vpop.permute.xlu0 %482
  %v485 = vadd.f32 %v475, %v483
  %v486 = vtanh.pop %v485
  %488 = vrot.lane.b32.xlu0 %v486, 32
  %v489 = vpop.permute.xlu0 %488
  %v491 = vmul.f32 %v468, %v489
  %v493 = vrot.slane %v491, 6
  %494 = vrot.lane.b32.xlu0 %v493, 80
  %v495 = vpop.permute.xlu0 %494
  %v497 = vmul.f32 %v414, %v495
  %v498 = vsub.f32 1.0, %v414
  %v499 = vmul.f32 %v498, %v404
  %v500 = vadd.f32 %v497, %v499
  %v502 = vrot.slane %v485, 6
  %503 = vrot.lane.b32.xlu0 %v502, 112
  %v504 = vpop.permute.xlu0 %503
  %v506 = vmul.f32 %v414, %v504
  %v507 = vmul.f32 %v498, %v412
  %v508 = vadd.f32 %v506, %v507
  %509 = vst.msk [vmem:[#allocation2 + $0x6] sm:$0x3] %vm220, %v497
  %v510 = vld [vmem:[%s1 + $0x8] sm:$0x3]
  %v511 = vpack.c.bf16 %v500, %v500
  %v513 = vsel %vm137, %v511, 0
  %515 = vmatprep.subr.bf16.mxu0 0
  %516 = vmatpush1.bf16.msra.mxu0 %v135
  %517 = vmatprep.subr.bf16.mxu0 0
  %518 = vmatpush1.bf16.msra.mxu0 0
  %519 = vmatprep.subr.bf16.mxu0 0
  %520 = vmatpush1.bf16.msra.mxu0 0
  %521 = vmatprep.subr.bf16.mxu0 0
  %522 = vmatpush1.bf16.msra.mxu0 0
  %523 = vmatprep.subr.bf16.mxu0 0
  %524 = vmatpush1.bf16.msra.mxu0 0
  %525 = vmatprep.subr.bf16.mxu0 0
  %526 = vmatpush1.bf16.msra.mxu0 0
  %527 = vmatprep.subr.bf16.mxu0 0
  %528 = vmatpush1.bf16.msra.mxu0 0
  %529 = vmatprep.subr.bf16.mxu0 0
  %530 = vmatpush1.bf16.msra.mxu0 0
  %531 = vmatprep.subr.bf16.mxu0 0
  %532 = vmatpush1.bf16.msra.mxu0 0
  %533 = vmatprep.subr.bf16.mxu0 0
  %534 = vmatpush1.bf16.msra.mxu0 0
  %535 = vmatprep.subr.bf16.mxu0 0
  %536 = vmatpush1.bf16.msra.mxu0 0
  %537 = vmatprep.subr.bf16.mxu0 0
  %538 = vmatpush1.bf16.msra.mxu0 0
  %539 = vmatprep.subr.bf16.mxu0 0
  %540 = vmatpush1.bf16.msra.mxu0 0
  %541 = vmatprep.subr.bf16.mxu0 0
  %542 = vmatpush1.bf16.msra.mxu0 0
  %543 = vmatprep.subr.bf16.mxu0 0
  %544 = vmatpush1.bf16.msra.mxu0 0
  %545 = vmatprep.subr.bf16.mxu0 0
  %546 = vmatpush1.bf16.msra.mxu0 0
  %547 = vmatprep.mubr.bf16.mxu0 0
  %548 = vmatmul.mubr.bf16.gmra.mrb[0].mxu0 %v513
  %v549 = vpop.f32.mrb[0].mxu0
  %v550 = vadd.f32 0.0, %v549
  %v551 = vpop.f32.mrb[0].mxu0
  %v552 = vpop.f32.mrb[0].mxu0
  %v553 = vpop.f32.mrb[0].mxu0
  %554 = vdwg.mxu0
  %v555 = vadd.f32 %v123, %v550
  %v556 = vsub.f32 0.0, %v555
  %v557 = vmul.f32 %v556, 1.442695
  %v558 = vpow.pop %v557
  %v559 = vadd.f32 %v558, 1.0
  %v560 = vrcp.pop %v559
  %v561 = vmul.f32 1.0, %v560
  %v562 = vtanh.pop %v555
  %564 = vrot.lane.b32.xlu0 %v508, 16
  %v565 = vpop.permute.xlu0 %564
  %v567 = vmul.f32 %v561, %v565
  %569 = vrot.lane.b32.xlu0 %v562, 96
  %v570 = vpop.permute.xlu0 %569
  %v572 = vmul.f32 %v561, %v570
  %574 = vrot.lane.b32.xlu0 %v572, 16
  %v575 = vpop.permute.xlu0 %574
  %v577 = vadd.f32 %v567, %v575
  %v578 = vtanh.pop %v577
  %580 = vrot.lane.b32.xlu0 %v578, 32
  %v581 = vpop.permute.xlu0 %580
  %v583 = vmul.f32 %v561, %v581
  %585 = vrot.lane.b32.xlu0 %v583, 80
  %v586 = vpop.permute.xlu0 %585
  %v588 = vmul.f32 %v510, %v586
  %v589 = vsub.f32 1.0, %v510
  %v590 = vmul.f32 %v589, %v500
  %v591 = vadd.f32 %v588, %v590
  %593 = vrot.lane.b32.xlu0 %v577, 112
  %v594 = vpop.permute.xlu0 %593
  %v596 = vmul.f32 %v510, %v594
  %v597 = vmul.f32 %v589, %v508
  %v598 = vadd.f32 %v596, %v597
  %599 = vst.msk [vmem:[#allocation2 + $0x8] sm:$0x3] %vm220, %v588
  %v600 = vld [vmem:[%s1 + $0xa] sm:$0x3]
  %v601 = vpack.c.bf16 %v591, %v591
  %v603 = vsel %vm137, %v601, 0
  %605 = vmatprep.subr.bf16.mxu0 0
  %606 = vmatpush1.bf16.msra.mxu0 %v135
  %607 = vmatprep.subr.bf16.mxu0 0
  %608 = vmatpush1.bf16.msra.mxu0 0
  %609 = vmatprep.subr.bf16.mxu0 0
  %610 = vmatpush1.bf16.msra.mxu0 0
  %611 = vmatprep.subr.bf16.mxu0 0
  %612 = vmatpush1.bf16.msra.mxu0 0
  %613 = vmatprep.subr.bf16.mxu0 0
  %614 = vmatpush1.bf16.msra.mxu0 0
  %615 = vmatprep.subr.bf16.mxu0 0
  %616 = vmatpush1.bf16.msra.mxu0 0
  %617 = vmatprep.subr.bf16.mxu0 0
  %618 = vmatpush1.bf16.msra.mxu0 0
  %619 = vmatprep.subr.bf16.mxu0 0
  %620 = vmatpush1.bf16.msra.mxu0 0
  %621 = vmatprep.subr.bf16.mxu0 0
  %622 = vmatpush1.bf16.msra.mxu0 0
  %623 = vmatprep.subr.bf16.mxu0 0
  %624 = vmatpush1.bf16.msra.mxu0 0
  %625 = vmatprep.subr.bf16.mxu0 0
  %626 = vmatpush1.bf16.msra.mxu0 0
  %627 = vmatprep.subr.bf16.mxu0 0
  %628 = vmatpush1.bf16.msra.mxu0 0
  %629 = vmatprep.subr.bf16.mxu0 0
  %630 = vmatpush1.bf16.msra.mxu0 0
  %631 = vmatprep.subr.bf16.mxu0 0
  %632 = vmatpush1.bf16.msra.mxu0 0
  %633 = vmatprep.subr.bf16.mxu0 0
  %634 = vmatpush1.bf16.msra.mxu0 0
  %635 = vmatprep.subr.bf16.mxu0 0
  %636 = vmatpush1.bf16.msra.mxu0 0
  %637 = vmatprep.mubr.bf16.mxu0 0
  %638 = vmatmul.mubr.bf16.gmra.mrb[0].mxu0 %v603
  %v639 = vpop.f32.mrb[0].mxu0
  %v640 = vadd.f32 0.0, %v639
  %v641 = vpop.f32.mrb[0].mxu0
  %v642 = vpop.f32.mrb[0].mxu0
  %v643 = vpop.f32.mrb[0].mxu0
  %644 = vdwg.mxu0
  %v646 = vrot.slane %v640, 6
  %v648 = vadd.f32 %v123, %v646
  %v649 = vsub.f32 0.0, %v648
  %v650 = vmul.f32 %v649, 1.442695
  %v651 = vpow.pop %v650
  %v652 = vadd.f32 %v651, 1.0
  %v653 = vrcp.pop %v652
  %v654 = vmul.f32 1.0, %v653
  %v655 = vtanh.pop %v648
  %v657 = vrot.slane %v598, 6
  %658 = vrot.lane.b32.xlu0 %v657, 16
  %v659 = vpop.permute.xlu0 %658
  %v661 = vmul.f32 %v654, %v659
  %663 = vrot.lane.b32.xlu0 %v655, 96
  %v664 = vpop.permute.xlu0 %663
  %v666 = vmul.f32 %v654, %v664
  %668 = vrot.lane.b32.xlu0 %v666, 16
  %v669 = vpop.permute.xlu0 %668
  %v671 = vadd.f32 %v661, %v669
  %v672 = vtanh.pop %v671
  %674 = vrot.lane.b32.xlu0 %v672, 32
  %v675 = vpop.permute.xlu0 %674
  %v677 = vmul.f32 %v654, %v675
  %v679 = vrot.slane %v677, 2
  %680 = vrot.lane.b32.xlu0 %v679, 80
  %v681 = vpop.permute.xlu0 %680
  %v683 = vmul.f32 %v600, %v681
  %v684 = vsub.f32 1.0, %v600
  %v685 = vmul.f32 %v684, %v591
  %v686 = vadd.f32 %v683, %v685
  %v688 = vrot.slane %v671, 2
  %689 = vrot.lane.b32.xlu0 %v688, 112
  %v690 = vpop.permute.xlu0 %689
  %v692 = vmul.f32 %v600, %v690
  %v693 = vmul.f32 %v684, %v598
  %v694 = vadd.f32 %v692, %v693
  %695 = vst.msk [vmem:[#allocation2 + $0xa] sm:$0x3] %vm220, %v683
  %v696 = vld [vmem:[%s1 + $0xc] sm:$0x3]
  %v697 = vpack.c.bf16 %v686, %v686
  %v699 = vsel %vm137, %v697, 0
  %701 = vmatprep.subr.bf16.mxu0 0
  %702 = vmatpush1.bf16.msra.mxu0 %v135
  %703 = vmatprep.subr.bf16.mxu0 0
  %704 = vmatpush1.bf16.msra.mxu0 0
  %705 = vmatprep.subr.bf16.mxu0 0
  %706 = vmatpush1.bf16.msra.mxu0 0
  %707 = vmatprep.subr.bf16.mxu0 0
  %708 = vmatpush1.bf16.msra.mxu0 0
  %709 = vmatprep.subr.bf16.mxu0 0
  %710 = vmatpush1.bf16.msra.mxu0 0
  %711 = vmatprep.subr.bf16.mxu0 0
  %712 = vmatpush1.bf16.msra.mxu0 0
  %713 = vmatprep.subr.bf16.mxu0 0
  %714 = vmatpush1.bf16.msra.mxu0 0
  %715 = vmatprep.subr.bf16.mxu0 0
  %716 = vmatpush1.bf16.msra.mxu0 0
  %717 = vmatprep.subr.bf16.mxu0 0
  %718 = vmatpush1.bf16.msra.mxu0 0
  %719 = vmatprep.subr.bf16.mxu0 0
  %720 = vmatpush1.bf16.msra.mxu0 0
  %721 = vmatprep.subr.bf16.mxu0 0
  %722 = vmatpush1.bf16.msra.mxu0 0
  %723 = vmatprep.subr.bf16.mxu0 0
  %724 = vmatpush1.bf16.msra.mxu0 0
  %725 = vmatprep.subr.bf16.mxu0 0
  %726 = vmatpush1.bf16.msra.mxu0 0
  %727 = vmatprep.subr.bf16.mxu0 0
  %728 = vmatpush1.bf16.msra.mxu0 0
  %729 = vmatprep.subr.bf16.mxu0 0
  %730 = vmatpush1.bf16.msra.mxu0 0
  %731 = vmatprep.subr.bf16.mxu0 0
  %732 = vmatpush1.bf16.msra.mxu0 0
  %733 = vmatprep.mubr.bf16.mxu0 0
  %734 = vmatmul.mubr.bf16.gmra.mrb[0].mxu0 %v699
  %v735 = vpop.f32.mrb[0].mxu0
  %v736 = vadd.f32 0.0, %v735
  %v737 = vpop.f32.mrb[0].mxu0
  %v738 = vpop.f32.mrb[0].mxu0
  %v739 = vpop.f32.mrb[0].mxu0
  %740 = vdwg.mxu0
  %v742 = vrot.slane %v736, 4
  %v744 = vadd.f32 %v123, %v742
  %v745 = vsub.f32 0.0, %v744
  %v746 = vmul.f32 %v745, 1.442695
  %v747 = vpow.pop %v746
  %v748 = vadd.f32 %v747, 1.0
  %v749 = vrcp.pop %v748
  %v750 = vmul.f32 1.0, %v749
  %v751 = vtanh.pop %v744
  %v753 = vrot.slane %v694, 4
  %754 = vrot.lane.b32.xlu0 %v753, 16
  %v755 = vpop.permute.xlu0 %754
  %v757 = vmul.f32 %v750, %v755
  %759 = vrot.lane.b32.xlu0 %v751, 96
  %v760 = vpop.permute.xlu0 %759
  %v762 = vmul.f32 %v750, %v760
  %764 = vrot.lane.b32.xlu0 %v762, 16
  %v765 = vpop.permute.xlu0 %764
  %v767 = vadd.f32 %v757, %v765
  %v768 = vtanh.pop %v767
  %770 = vrot.lane.b32.xlu0 %v768, 32
  %v771 = vpop.permute.xlu0 %770
  %v773 = vmul.f32 %v750, %v771
  %v775 = vrot.slane %v773, 4
  %776 = vrot.lane.b32.xlu0 %v775, 80
  %v777 = vpop.permute.xlu0 %776
  %v779 = vmul.f32 %v696, %v777
  %v780 = vsub.f32 1.0, %v696
  %v781 = vmul.f32 %v780, %v686
  %v782 = vadd.f32 %v779, %v781
  %v784 = vrot.slane %v767, 4
  %785 = vrot.lane.b32.xlu0 %v784, 112
  %v786 = vpop.permute.xlu0 %785
  %v788 = vmul.f32 %v696, %v786
  %v789 = vmul.f32 %v780, %v694
  %v790 = vadd.f32 %v788, %v789
  %791 = vst.msk [vmem:[#allocation2 + $0xc] sm:$0x3] %vm220, %v779
  %v792 = vld [vmem:[%s1 + $0xe] sm:$0x3]
  %v793 = vpack.c.bf16 %v782, %v782
  %v795 = vsel %vm137, %v793, 0
  %797 = vmatprep.subr.bf16.mxu0 0
  %798 = vmatpush1.bf16.msra.mxu0 %v135
  %799 = vmatprep.subr.bf16.mxu0 0
  %800 = vmatpush1.bf16.msra.mxu0 0
  %801 = vmatprep.subr.bf16.mxu0 0
  %802 = vmatpush1.bf16.msra.mxu0 0
  %803 = vmatprep.subr.bf16.mxu0 0
  %804 = vmatpush1.bf16.msra.mxu0 0
  %805 = vmatprep.subr.bf16.mxu0 0
  %806 = vmatpush1.bf16.msra.mxu0 0
  %807 = vmatprep.subr.bf16.mxu0 0
  %808 = vmatpush1.bf16.msra.mxu0 0
  %809 = vmatprep.subr.bf16.mxu0 0
  %810 = vmatpush1.bf16.msra.mxu0 0
  %811 = vmatprep.subr.bf16.mxu0 0
  %812 = vmatpush1.bf16.msra.mxu0 0
  %813 = vmatprep.subr.bf16.mxu0 0
  %814 = vmatpush1.bf16.msra.mxu0 0
  %815 = vmatprep.subr.bf16.mxu0 0
  %816 = vmatpush1.bf16.msra.mxu0 0
  %817 = vmatprep.subr.bf16.mxu0 0
  %818 = vmatpush1.bf16.msra.mxu0 0
  %819 = vmatprep.subr.bf16.mxu0 0
  %820 = vmatpush1.bf16.msra.mxu0 0
  %821 = vmatprep.subr.bf16.mxu0 0
  %822 = vmatpush1.bf16.msra.mxu0 0
  %823 = vmatprep.subr.bf16.mxu0 0
  %824 = vmatpush1.bf16.msra.mxu0 0
  %825 = vmatprep.subr.bf16.mxu0 0
  %826 = vmatpush1.bf16.msra.mxu0 0
  %827 = vmatprep.subr.bf16.mxu0 0
  %828 = vmatpush1.bf16.msra.mxu0 0
  %829 = vmatprep.mubr.bf16.mxu0 0
  %830 = vmatmul.mubr.bf16.gmra.mrb[0].mxu0 %v795
  %v831 = vpop.f32.mrb[0].mxu0
  %v832 = vadd.f32 0.0, %v831
  %v833 = vpop.f32.mrb[0].mxu0
  %v834 = vpop.f32.mrb[0].mxu0
  %v835 = vpop.f32.mrb[0].mxu0
  %836 = vdwg.mxu0
  %v838 = vrot.slane %v832, 2
  %v840 = vadd.f32 %v123, %v838
  %v841 = vsub.f32 0.0, %v840
  %v842 = vmul.f32 %v841, 1.442695
  %v843 = vpow.pop %v842
  %v844 = vadd.f32 %v843, 1.0
  %v845 = vrcp.pop %v844
  %v846 = vmul.f32 1.0, %v845
  %v847 = vtanh.pop %v840
  %v849 = vrot.slane %v790, 2
  %850 = vrot.lane.b32.xlu0 %v849, 16
  %v851 = vpop.permute.xlu0 %850
  %v853 = vmul.f32 %v846, %v851
  %855 = vrot.lane.b32.xlu0 %v847, 96
  %v856 = vpop.permute.xlu0 %855
  %v858 = vmul.f32 %v846, %v856
  %860 = vrot.lane.b32.xlu0 %v858, 16
  %v861 = vpop.permute.xlu0 %860
  %v863 = vadd.f32 %v853, %v861
  %v864 = vtanh.pop %v863
  %866 = vrot.lane.b32.xlu0 %v864, 32
  %v867 = vpop.permute.xlu0 %866
  %v869 = vmul.f32 %v846, %v867
  %v871 = vrot.slane %v869, 6
  %872 = vrot.lane.b32.xlu0 %v871, 80
  %v873 = vpop.permute.xlu0 %872
  %v875 = vmul.f32 %v792, %v873
  %876 = vst.msk [vmem:[#allocation2 + $0xe] sm:$0x3] %vm220, %v875
  %v877 = vld [vmem:[%s1 + $0xe] sm:$0x3]
  %v880 = vunpack.c.l.b16 %v128
  %v881 = vunpack.c.l.b16 %v129
  %v882 = vpack.c.b16 %v881, %v880
  %884 = vmatprep.subr.bf16.mxu0 0
  %885 = vmatpush1.bf16.msra.mxu0 %v882
  %886 = vmatprep.subr.bf16.mxu0 0
  %887 = vmatpush1.bf16.msra.mxu0 0
  %888 = vmatprep.subr.bf16.mxu0 0
  %889 = vmatpush1.bf16.msra.mxu0 0
  %890 = vmatprep.subr.bf16.mxu0 0
  %891 = vmatpush1.bf16.msra.mxu0 0
  %892 = vmatprep.subr.bf16.mxu0 0
  %893 = vmatpush1.bf16.msra.mxu0 0
  %894 = vmatprep.subr.bf16.mxu0 0
  %895 = vmatpush1.bf16.msra.mxu0 0
  %896 = vmatprep.subr.bf16.mxu0 0
  %897 = vmatpush1.bf16.msra.mxu0 0
  %898 = vmatprep.subr.bf16.mxu0 0
  %899 = vmatpush1.bf16.msra.mxu0 0
  %900 = vmatprep.subr.bf16.mxu0 0
  %901 = vmatpush1.bf16.msra.mxu0 0
  %902 = vmatprep.subr.bf16.mxu0 0
  %903 = vmatpush1.bf16.msra.mxu0 0
  %904 = vmatprep.subr.bf16.mxu0 0
  %905 = vmatpush1.bf16.msra.mxu0 0
  %906 = vmatprep.subr.bf16.mxu0 0
  %907 = vmatpush1.bf16.msra.mxu0 0
  %908 = vmatprep.subr.bf16.mxu0 0
  %909 = vmatpush1.bf16.msra.mxu0 0
  %910 = vmatprep.subr.bf16.mxu0 0
  %911 = vmatpush1.bf16.msra.mxu0 0
  %912 = vmatprep.subr.bf16.mxu0 0
  %913 = vmatpush1.bf16.msra.mxu0 0
  %914 = vmatprep.subr.bf16.mxu0 0
  %915 = vmatpush1.bf16.msra.mxu0 0
  %916 = vmatprep.mubr.bf16.mxu0 0
  %917 = vmatmul.mubr.bf16.gmra.mrb[0].mxu0 %v139
  %v918 = vpop.f32.mrb[0].mxu0
  %v919 = vadd.f32 0.0, %v918
  %v920 = vpop.f32.mrb[0].mxu0
  %v921 = vpop.f32.mrb[0].mxu0
  %v922 = vpop.f32.mrb[0].mxu0
  %923 = vdwg.mxu0
  %v925 = vrot.slane %v919, 2
  %926 = vrot.lane.b32.xlu0 %v925, 64
  %v927 = vpop.permute.xlu0 %926
  %v929 = vadd.f32 %v123, %v927
  %v930 = vsub.f32 0.0, %v929
  %v931 = vmul.f32 %v930, 1.442695
  %v932 = vpow.pop %v931
  %v933 = vadd.f32 %v932, 1.0
  %v934 = vrcp.pop %v933
  %v935 = vmul.f32 1.0, %v934
  %v936 = vtanh.pop %v929
  %v937 = vmul.f32 %v935, 0.0
  %939 = vrot.lane.b32.xlu0 %v936, 96
  %v940 = vpop.permute.xlu0 %939
  %v942 = vmul.f32 %v935, %v940
  %944 = vrot.lane.b32.xlu0 %v942, 16
  %v945 = vpop.permute.xlu0 %944
  %v947 = vadd.f32 %v937, %v945
  %v948 = vtanh.pop %v947
  %950 = vrot.lane.b32.xlu0 %v948, 32
  %v951 = vpop.permute.xlu0 %950
  %v953 = vmul.f32 %v935, %v951
  %v955 = vrot.slane %v953, 6
  %956 = vrot.lane.b32.xlu0 %v955, 16
  %v957 = vpop.permute.xlu0 %956
  %v959 = vmul.f32 %v877, %v957
  %v960 = vsub.f32 1.0, %v877
  %v961 = vmul.f32 %v960, 0.0
  %v962 = vadd.f32 %v959, %v961
  %v964 = vrot.slane %v947, 6
  %965 = vrot.lane.b32.xlu0 %v964, 48
  %v966 = vpop.permute.xlu0 %965
  %v968 = vmul.f32 %v877, %v966
  %v969 = vadd.f32 %v968, %v961
  %970 = vst.msk [vmem:[#allocation3 + $0xe] sm:$0x3] %vm220, %v959
  %v971 = vld [vmem:[%s1 + $0xc] sm:$0x3]
  %v972 = vpack.c.bf16 %v962, %v962
  %v974 = vsel %vm137, %v972, 0
  %976 = vmatprep.subr.bf16.mxu0 0
  %977 = vmatpush1.bf16.msra.mxu0 %v882
  %978 = vmatprep.subr.bf16.mxu0 0
  %979 = vmatpush1.bf16.msra.mxu0 0
  %980 = vmatprep.subr.bf16.mxu0 0
  %981 = vmatpush1.bf16.msra.mxu0 0
  %982 = vmatprep.subr.bf16.mxu0 0
  %983 = vmatpush1.bf16.msra.mxu0 0
  %984 = vmatprep.subr.bf16.mxu0 0
  %985 = vmatpush1.bf16.msra.mxu0 0
  %986 = vmatprep.subr.bf16.mxu0 0
  %987 = vmatpush1.bf16.msra.mxu0 0
  %988 = vmatprep.subr.bf16.mxu0 0
  %989 = vmatpush1.bf16.msra.mxu0 0
  %990 = vmatprep.subr.bf16.mxu0 0
  %991 = vmatpush1.bf16.msra.mxu0 0
  %992 = vmatprep.subr.bf16.mxu0 0
  %993 = vmatpush1.bf16.msra.mxu0 0
  %994 = vmatprep.subr.bf16.mxu0 0
  %995 = vmatpush1.bf16.msra.mxu0 0
  %996 = vmatprep.subr.bf16.mxu0 0
  %997 = vmatpush1.bf16.msra.mxu0 0
  %998 = vmatprep.subr.bf16.mxu0 0
  %999 = vmatpush1.bf16.msra.mxu0 0
  %1000 = vmatprep.subr.bf16.mxu0 0
  %1001 = vmatpush1.bf16.msra.mxu0 0
  %1002 = vmatprep.subr.bf16.mxu0 0
  %1003 = vmatpush1.bf16.msra.mxu0 0
  %1004 = vmatprep.subr.bf16.mxu0 0
  %1005 = vmatpush1.bf16.msra.mxu0 0
  %1006 = vmatprep.subr.bf16.mxu0 0
  %1007 = vmatpush1.bf16.msra.mxu0 0
  %1008 = vmatprep.mubr.bf16.mxu0 0
  %1009 = vmatmul.mubr.bf16.gmra.mrb[0].mxu0 %v974
  %v1010 = vpop.f32.mrb[0].mxu0
  %v1011 = vadd.f32 0.0, %v1010
  %v1012 = vpop.f32.mrb[0].mxu0
  %v1013 = vpop.f32.mrb[0].mxu0
  %v1014 = vpop.f32.mrb[0].mxu0
  %1015 = vdwg.mxu0
  %v1017 = vrot.slane %v1011, 4
  %1018 = vrot.lane.b32.xlu0 %v1017, 64
  %v1019 = vpop.permute.xlu0 %1018
  %v1021 = vadd.f32 %v123, %v1019
  %v1022 = vsub.f32 0.0, %v1021
  %v1023 = vmul.f32 %v1022, 1.442695
  %v1024 = vpow.pop %v1023
  %v1025 = vadd.f32 %v1024, 1.0
  %v1026 = vrcp.pop %v1025
  %v1027 = vmul.f32 1.0, %v1026
  %v1028 = vtanh.pop %v1021
  %v1030 = vrot.slane %v969, 4
  %1031 = vrot.lane.b32.xlu0 %v1030, 80
  %v1032 = vpop.permute.xlu0 %1031
  %v1034 = vmul.f32 %v1027, %v1032
  %1036 = vrot.lane.b32.xlu0 %v1028, 96
  %v1037 = vpop.permute.xlu0 %1036
  %v1039 = vmul.f32 %v1027, %v1037
  %1041 = vrot.lane.b32.xlu0 %v1039, 16
  %v1042 = vpop.permute.xlu0 %1041
  %v1044 = vadd.f32 %v1034, %v1042
  %v1045 = vtanh.pop %v1044
  %1047 = vrot.lane.b32.xlu0 %v1045, 32
  %v1048 = vpop.permute.xlu0 %1047
  %v1050 = vmul.f32 %v1027, %v1048
  %v1052 = vrot.slane %v1050, 4
  %1053 = vrot.lane.b32.xlu0 %v1052, 16
  %v1054 = vpop.permute.xlu0 %1053
  %v1056 = vmul.f32 %v971, %v1054
  %v1057 = vsub.f32 1.0, %v971
  %v1058 = vmul.f32 %v1057, %v962
  %v1059 = vadd.f32 %v1056, %v1058
  %v1061 = vrot.slane %v1044, 4
  %1062 = vrot.lane.b32.xlu0 %v1061, 48
  %v1063 = vpop.permute.xlu0 %1062
  %v1065 = vmul.f32 %v971, %v1063
  %v1066 = vmul.f32 %v1057, %v969
  %v1067 = vadd.f32 %v1065, %v1066
  %1068 = vst.msk [vmem:[#allocation3 + $0xc] sm:$0x3] %vm220, %v1056
  %v1069 = vld [vmem:[%s1 + $0xa] sm:$0x3]
  %v1070 = vpack.c.bf16 %v1059, %v1059
  %v1072 = vsel %vm137, %v1070, 0
  %1074 = vmatprep.subr.bf16.mxu0 0
  %1075 = vmatpush1.bf16.msra.mxu0 %v882
  %1076 = vmatprep.subr.bf16.mxu0 0
  %1077 = vmatpush1.bf16.msra.mxu0 0
  %1078 = vmatprep.subr.bf16.mxu0 0
  %1079 = vmatpush1.bf16.msra.mxu0 0
  %1080 = vmatprep.subr.bf16.mxu0 0
  %1081 = vmatpush1.bf16.msra.mxu0 0
  %1082 = vmatprep.subr.bf16.mxu0 0
  %1083 = vmatpush1.bf16.msra.mxu0 0
  %1084 = vmatprep.subr.bf16.mxu0 0
  %1085 = vmatpush1.bf16.msra.mxu0 0
  %1086 = vmatprep.subr.bf16.mxu0 0
  %1087 = vmatpush1.bf16.msra.mxu0 0
  %1088 = vmatprep.subr.bf16.mxu0 0
  %1089 = vmatpush1.bf16.msra.mxu0 0
  %1090 = vmatprep.subr.bf16.mxu0 0
  %1091 = vmatpush1.bf16.msra.mxu0 0
  %1092 = vmatprep.subr.bf16.mxu0 0
  %1093 = vmatpush1.bf16.msra.mxu0 0
  %1094 = vmatprep.subr.bf16.mxu0 0
  %1095 = vmatpush1.bf16.msra.mxu0 0
  %1096 = vmatprep.subr.bf16.mxu0 0
  %1097 = vmatpush1.bf16.msra.mxu0 0
  %1098 = vmatprep.subr.bf16.mxu0 0
  %1099 = vmatpush1.bf16.msra.mxu0 0
  %1100 = vmatprep.subr.bf16.mxu0 0
  %1101 = vmatpush1.bf16.msra.mxu0 0
  %1102 = vmatprep.subr.bf16.mxu0 0
  %1103 = vmatpush1.bf16.msra.mxu0 0
  %1104 = vmatprep.subr.bf16.mxu0 0
  %1105 = vmatpush1.bf16.msra.mxu0 0
  %1106 = vmatprep.mubr.bf16.mxu0 0
  %1107 = vmatmul.mubr.bf16.gmra.mrb[0].mxu0 %v1072
  %v1108 = vpop.f32.mrb[0].mxu0
  %v1109 = vadd.f32 0.0, %v1108
  %v1110 = vpop.f32.mrb[0].mxu0
  %v1111 = vpop.f32.mrb[0].mxu0
  %v1112 = vpop.f32.mrb[0].mxu0
  %1113 = vdwg.mxu0
  %v1115 = vrot.slane %v1109, 6
  %1116 = vrot.lane.b32.xlu0 %v1115, 64
  %v1117 = vpop.permute.xlu0 %1116
  %v1119 = vadd.f32 %v123, %v1117
  %v1120 = vsub.f32 0.0, %v1119
  %v1121 = vmul.f32 %v1120, 1.442695
  %v1122 = vpow.pop %v1121
  %v1123 = vadd.f32 %v1122, 1.0
  %v1124 = vrcp.pop %v1123
  %v1125 = vmul.f32 1.0, %v1124
  %v1126 = vtanh.pop %v1119
  %v1128 = vrot.slane %v1067, 6
  %1129 = vrot.lane.b32.xlu0 %v1128, 80
  %v1130 = vpop.permute.xlu0 %1129
  %v1132 = vmul.f32 %v1125, %v1130
  %1134 = vrot.lane.b32.xlu0 %v1126, 96
  %v1135 = vpop.permute.xlu0 %1134
  %v1137 = vmul.f32 %v1125, %v1135
  %1139 = vrot.lane.b32.xlu0 %v1137, 16
  %v1140 = vpop.permute.xlu0 %1139
  %v1142 = vadd.f32 %v1132, %v1140
  %v1143 = vtanh.pop %v1142
  %1145 = vrot.lane.b32.xlu0 %v1143, 32
  %v1146 = vpop.permute.xlu0 %1145
  %v1148 = vmul.f32 %v1125, %v1146
  %v1150 = vrot.slane %v1148, 2
  %1151 = vrot.lane.b32.xlu0 %v1150, 16
  %v1152 = vpop.permute.xlu0 %1151
  %v1154 = vmul.f32 %v1069, %v1152
  %v1155 = vsub.f32 1.0, %v1069
  %v1156 = vmul.f32 %v1155, %v1059
  %v1157 = vadd.f32 %v1154, %v1156
  %v1159 = vrot.slane %v1142, 2
  %1160 = vrot.lane.b32.xlu0 %v1159, 48
  %v1161 = vpop.permute.xlu0 %1160
  %v1163 = vmul.f32 %v1069, %v1161
  %v1164 = vmul.f32 %v1155, %v1067
  %v1165 = vadd.f32 %v1163, %v1164
  %1166 = vst.msk [vmem:[#allocation3 + $0xa] sm:$0x3] %vm220, %v1154
  %v1167 = vld [vmem:[%s1 + $0x8] sm:$0x3]
  %v1168 = vpack.c.bf16 %v1157, %v1157
  %v1170 = vsel %vm137, %v1168, 0
  %1172 = vmatprep.subr.bf16.mxu0 0
  %1173 = vmatpush1.bf16.msra.mxu0 %v882
  %1174 = vmatprep.subr.bf16.mxu0 0
  %1175 = vmatpush1.bf16.msra.mxu0 0
  %1176 = vmatprep.subr.bf16.mxu0 0
  %1177 = vmatpush1.bf16.msra.mxu0 0
  %1178 = vmatprep.subr.bf16.mxu0 0
  %1179 = vmatpush1.bf16.msra.mxu0 0
  %1180 = vmatprep.subr.bf16.mxu0 0
  %1181 = vmatpush1.bf16.msra.mxu0 0
  %1182 = vmatprep.subr.bf16.mxu0 0
  %1183 = vmatpush1.bf16.msra.mxu0 0
  %1184 = vmatprep.subr.bf16.mxu0 0
  %1185 = vmatpush1.bf16.msra.mxu0 0
  %1186 = vmatprep.subr.bf16.mxu0 0
  %1187 = vmatpush1.bf16.msra.mxu0 0
  %1188 = vmatprep.subr.bf16.mxu0 0
  %1189 = vmatpush1.bf16.msra.mxu0 0
  %1190 = vmatprep.subr.bf16.mxu0 0
  %1191 = vmatpush1.bf16.msra.mxu0 0
  %1192 = vmatprep.subr.bf16.mxu0 0
  %1193 = vmatpush1.bf16.msra.mxu0 0
  %1194 = vmatprep.subr.bf16.mxu0 0
  %1195 = vmatpush1.bf16.msra.mxu0 0
  %1196 = vmatprep.subr.bf16.mxu0 0
  %1197 = vmatpush1.bf16.msra.mxu0 0
  %1198 = vmatprep.subr.bf16.mxu0 0
  %1199 = vmatpush1.bf16.msra.mxu0 0
  %1200 = vmatprep.subr.bf16.mxu0 0
  %1201 = vmatpush1.bf16.msra.mxu0 0
  %1202 = vmatprep.subr.bf16.mxu0 0
  %1203 = vmatpush1.bf16.msra.mxu0 0
  %1204 = vmatprep.mubr.bf16.mxu0 0
  %1205 = vmatmul.mubr.bf16.gmra.mrb[0].mxu0 %v1170
  %v1206 = vpop.f32.mrb[0].mxu0
  %v1207 = vadd.f32 0.0, %v1206
  %v1208 = vpop.f32.mrb[0].mxu0
  %v1209 = vpop.f32.mrb[0].mxu0
  %v1210 = vpop.f32.mrb[0].mxu0
  %1211 = vdwg.mxu0
  %1213 = vrot.lane.b32.xlu0 %v1207, 64
  %v1214 = vpop.permute.xlu0 %1213
  %v1216 = vadd.f32 %v123, %v1214
  %v1217 = vsub.f32 0.0, %v1216
  %v1218 = vmul.f32 %v1217, 1.442695
  %v1219 = vpow.pop %v1218
  %v1220 = vadd.f32 %v1219, 1.0
  %v1221 = vrcp.pop %v1220
  %v1222 = vmul.f32 1.0, %v1221
  %v1223 = vtanh.pop %v1216
  %1225 = vrot.lane.b32.xlu0 %v1165, 80
  %v1226 = vpop.permute.xlu0 %1225
  %v1228 = vmul.f32 %v1222, %v1226
  %1230 = vrot.lane.b32.xlu0 %v1223, 96
  %v1231 = vpop.permute.xlu0 %1230
  %v1233 = vmul.f32 %v1222, %v1231
  %1235 = vrot.lane.b32.xlu0 %v1233, 16
  %v1236 = vpop.permute.xlu0 %1235
  %v1238 = vadd.f32 %v1228, %v1236
  %v1239 = vtanh.pop %v1238
  %1241 = vrot.lane.b32.xlu0 %v1239, 32
  %v1242 = vpop.permute.xlu0 %1241
  %v1244 = vmul.f32 %v1222, %v1242
  %1246 = vrot.lane.b32.xlu0 %v1244, 16
  %v1247 = vpop.permute.xlu0 %1246
  %v1249 = vmul.f32 %v1167, %v1247
  %v1250 = vsub.f32 1.0, %v1167
  %v1251 = vmul.f32 %v1250, %v1157
  %v1252 = vadd.f32 %v1249, %v1251
  %1254 = vrot.lane.b32.xlu0 %v1238, 48
  %v1255 = vpop.permute.xlu0 %1254
  %v1257 = vmul.f32 %v1167, %v1255
  %v1258 = vmul.f32 %v1250, %v1165
  %v1259 = vadd.f32 %v1257, %v1258
  %1260 = vst.msk [vmem:[#allocation3 + $0x8] sm:$0x3] %vm220, %v1249
  %v1261 = vld [vmem:[%s1 + $0x6] sm:$0x3]
  %v1262 = vpack.c.bf16 %v1252, %v1252
  %v1264 = vsel %vm137, %v1262, 0
  %1266 = vmatprep.subr.bf16.mxu0 0
  %1267 = vmatpush1.bf16.msra.mxu0 %v882
  %1268 = vmatprep.subr.bf16.mxu0 0
  %1269 = vmatpush1.bf16.msra.mxu0 0
  %1270 = vmatprep.subr.bf16.mxu0 0
  %1271 = vmatpush1.bf16.msra.mxu0 0
  %1272 = vmatprep.subr.bf16.mxu0 0
  %1273 = vmatpush1.bf16.msra.mxu0 0
  %1274 = vmatprep.subr.bf16.mxu0 0
  %1275 = vmatpush1.bf16.msra.mxu0 0
  %1276 = vmatprep.subr.bf16.mxu0 0
  %1277 = vmatpush1.bf16.msra.mxu0 0
  %1278 = vmatprep.subr.bf16.mxu0 0
  %1279 = vmatpush1.bf16.msra.mxu0 0
  %1280 = vmatprep.subr.bf16.mxu0 0
  %1281 = vmatpush1.bf16.msra.mxu0 0
  %1282 = vmatprep.subr.bf16.mxu0 0
  %1283 = vmatpush1.bf16.msra.mxu0 0
  %1284 = vmatprep.subr.bf16.mxu0 0
  %1285 = vmatpush1.bf16.msra.mxu0 0
  %1286 = vmatprep.subr.bf16.mxu0 0
  %1287 = vmatpush1.bf16.msra.mxu0 0
  %1288 = vmatprep.subr.bf16.mxu0 0
  %1289 = vmatpush1.bf16.msra.mxu0 0
  %1290 = vmatprep.subr.bf16.mxu0 0
  %1291 = vmatpush1.bf16.msra.mxu0 0
  %1292 = vmatprep.subr.bf16.mxu0 0
  %1293 = vmatpush1.bf16.msra.mxu0 0
  %1294 = vmatprep.subr.bf16.mxu0 0
  %1295 = vmatpush1.bf16.msra.mxu0 0
  %1296 = vmatprep.subr.bf16.mxu0 0
  %1297 = vmatpush1.bf16.msra.mxu0 0
  %1298 = vmatprep.mubr.bf16.mxu0 0
  %1299 = vmatmul.mubr.bf16.gmra.mrb[0].mxu0 %v1264
  %v1300 = vpop.f32.mrb[0].mxu0
  %v1301 = vadd.f32 0.0, %v1300
  %v1302 = vpop.f32.mrb[0].mxu0
  %v1303 = vpop.f32.mrb[0].mxu0
  %v1304 = vpop.f32.mrb[0].mxu0
  %1305 = vdwg.mxu0
  %v1307 = vrot.slane %v1301, 2
  %1308 = vrot.lane.b32.xlu0 %v1307, 64
  %v1309 = vpop.permute.xlu0 %1308
  %v1311 = vadd.f32 %v120, %v1309
  %v1312 = vsub.f32 0.0, %v1311
  %v1313 = vmul.f32 %v1312, 1.442695
  %v1314 = vpow.pop %v1313
  %v1315 = vadd.f32 %v1314, 1.0
  %v1316 = vrcp.pop %v1315
  %v1317 = vmul.f32 1.0, %v1316
  %v1318 = vtanh.pop %v1311
  %v1320 = vrot.slane %v1259, 2
  %1321 = vrot.lane.b32.xlu0 %v1320, 80
  %v1322 = vpop.permute.xlu0 %1321
  %v1324 = vmul.f32 %v1317, %v1322
  %1326 = vrot.lane.b32.xlu0 %v1318, 96
  %v1327 = vpop.permute.xlu0 %1326
  %v1329 = vmul.f32 %v1317, %v1327
  %1331 = vrot.lane.b32.xlu0 %v1329, 16
  %v1332 = vpop.permute.xlu0 %1331
  %v1334 = vadd.f32 %v1324, %v1332
  %v1335 = vtanh.pop %v1334
  %1337 = vrot.lane.b32.xlu0 %v1335, 32
  %v1338 = vpop.permute.xlu0 %1337
  %v1340 = vmul.f32 %v1317, %v1338
  %v1342 = vrot.slane %v1340, 6
  %1343 = vrot.lane.b32.xlu0 %v1342, 16
  %v1344 = vpop.permute.xlu0 %1343
  %v1346 = vmul.f32 %v1261, %v1344
  %v1347 = vsub.f32 1.0, %v1261
  %v1348 = vmul.f32 %v1347, %v1252
  %v1349 = vadd.f32 %v1346, %v1348
  %v1351 = vrot.slane %v1334, 6
  %1352 = vrot.lane.b32.xlu0 %v1351, 48
  %v1353 = vpop.permute.xlu0 %1352
  %v1355 = vmul.f32 %v1261, %v1353
  %v1356 = vmul.f32 %v1347, %v1259
  %v1357 = vadd.f32 %v1355, %v1356
  %1358 = vst.msk [vmem:[#allocation3 + $0x6] sm:$0x3] %vm220, %v1346
  %v1359 = vld [vmem:[%s1 + $0x4] sm:$0x3]
  %v1360 = vpack.c.bf16 %v1349, %v1349
  %v1362 = vsel %vm137, %v1360, 0
  %1364 = vmatprep.subr.bf16.mxu0 0
  %1365 = vmatpush1.bf16.msra.mxu0 %v882
  %1366 = vmatprep.subr.bf16.mxu0 0
  %1367 = vmatpush1.bf16.msra.mxu0 0
  %1368 = vmatprep.subr.bf16.mxu0 0
  %1369 = vmatpush1.bf16.msra.mxu0 0
  %1370 = vmatprep.subr.bf16.mxu0 0
  %1371 = vmatpush1.bf16.msra.mxu0 0
  %1372 = vmatprep.subr.bf16.mxu0 0
  %1373 = vmatpush1.bf16.msra.mxu0 0
  %1374 = vmatprep.subr.bf16.mxu0 0
  %1375 = vmatpush1.bf16.msra.mxu0 0
  %1376 = vmatprep.subr.bf16.mxu0 0
  %1377 = vmatpush1.bf16.msra.mxu0 0
  %1378 = vmatprep.subr.bf16.mxu0 0
  %1379 = vmatpush1.bf16.msra.mxu0 0
  %1380 = vmatprep.subr.bf16.mxu0 0
  %1381 = vmatpush1.bf16.msra.mxu0 0
  %1382 = vmatprep.subr.bf16.mxu0 0
  %1383 = vmatpush1.bf16.msra.mxu0 0
  %1384 = vmatprep.subr.bf16.mxu0 0
  %1385 = vmatpush1.bf16.msra.mxu0 0
  %1386 = vmatprep.subr.bf16.mxu0 0
  %1387 = vmatpush1.bf16.msra.mxu0 0
  %1388 = vmatprep.subr.bf16.mxu0 0
  %1389 = vmatpush1.bf16.msra.mxu0 0
  %1390 = vmatprep.subr.bf16.mxu0 0
  %1391 = vmatpush1.bf16.msra.mxu0 0
  %1392 = vmatprep.subr.bf16.mxu0 0
  %1393 = vmatpush1.bf16.msra.mxu0 0
  %1394 = vmatprep.subr.bf16.mxu0 0
  %1395 = vmatpush1.bf16.msra.mxu0 0
  %1396 = vmatprep.mubr.bf16.mxu0 0
  %1397 = vmatmul.mubr.bf16.gmra.mrb[0].mxu0 %v1362
  %v1398 = vpop.f32.mrb[0].mxu0
  %v1399 = vadd.f32 0.0, %v1398
  %v1400 = vpop.f32.mrb[0].mxu0
  %v1401 = vpop.f32.mrb[0].mxu0
  %v1402 = vpop.f32.mrb[0].mxu0
  %1403 = vdwg.mxu0
  %v1405 = vrot.slane %v1399, 4
  %1406 = vrot.lane.b32.xlu0 %v1405, 64
  %v1407 = vpop.permute.xlu0 %1406
  %v1409 = vadd.f32 %v120, %v1407
  %v1410 = vsub.f32 0.0, %v1409
  %v1411 = vmul.f32 %v1410, 1.442695
  %v1412 = vpow.pop %v1411
  %v1413 = vadd.f32 %v1412, 1.0
  %v1414 = vrcp.pop %v1413
  %v1415 = vmul.f32 1.0, %v1414
  %v1416 = vtanh.pop %v1409
  %v1418 = vrot.slane %v1357, 4
  %1419 = vrot.lane.b32.xlu0 %v1418, 80
  %v1420 = vpop.permute.xlu0 %1419
  %v1422 = vmul.f32 %v1415, %v1420
  %1424 = vrot.lane.b32.xlu0 %v1416, 96
  %v1425 = vpop.permute.xlu0 %1424
  %v1427 = vmul.f32 %v1415, %v1425
  %1429 = vrot.lane.b32.xlu0 %v1427, 16
  %v1430 = vpop.permute.xlu0 %1429
  %v1432 = vadd.f32 %v1422, %v1430
  %v1433 = vtanh.pop %v1432
  %1435 = vrot.lane.b32.xlu0 %v1433, 32
  %v1436 = vpop.permute.xlu0 %1435
  %v1438 = vmul.f32 %v1415, %v1436
  %v1440 = vrot.slane %v1438, 4
  %1441 = vrot.lane.b32.xlu0 %v1440, 16
  %v1442 = vpop.permute.xlu0 %1441
  %v1444 = vmul.f32 %v1359, %v1442
  %v1445 = vsub.f32 1.0, %v1359
  %v1446 = vmul.f32 %v1445, %v1349
  %v1447 = vadd.f32 %v1444, %v1446
  %v1449 = vrot.slane %v1432, 4
  %1450 = vrot.lane.b32.xlu0 %v1449, 48
  %v1451 = vpop.permute.xlu0 %1450
  %v1453 = vmul.f32 %v1359, %v1451
  %v1454 = vmul.f32 %v1445, %v1357
  %v1455 = vadd.f32 %v1453, %v1454
  %1456 = vst.msk [vmem:[#allocation3 + $0x4] sm:$0x3] %vm220, %v1444
  %v1457 = vld [vmem:[%s1 + $0x2] sm:$0x3]
  %v1458 = vpack.c.bf16 %v1447, %v1447
  %v1460 = vsel %vm137, %v1458, 0
  %1462 = vmatprep.subr.bf16.mxu0 0
  %1463 = vmatpush1.bf16.msra.mxu0 %v882
  %1464 = vmatprep.subr.bf16.mxu0 0
  %1465 = vmatpush1.bf16.msra.mxu0 0
  %1466 = vmatprep.subr.bf16.mxu0 0
  %1467 = vmatpush1.bf16.msra.mxu0 0
  %1468 = vmatprep.subr.bf16.mxu0 0
  %1469 = vmatpush1.bf16.msra.mxu0 0
  %1470 = vmatprep.subr.bf16.mxu0 0
  %1471 = vmatpush1.bf16.msra.mxu0 0
  %1472 = vmatprep.subr.bf16.mxu0 0
  %1473 = vmatpush1.bf16.msra.mxu0 0
  %1474 = vmatprep.subr.bf16.mxu0 0
  %1475 = vmatpush1.bf16.msra.mxu0 0
  %1476 = vmatprep.subr.bf16.mxu0 0
  %1477 = vmatpush1.bf16.msra.mxu0 0
  %1478 = vmatprep.subr.bf16.mxu0 0
  %1479 = vmatpush1.bf16.msra.mxu0 0
  %1480 = vmatprep.subr.bf16.mxu0 0
  %1481 = vmatpush1.bf16.msra.mxu0 0
  %1482 = vmatprep.subr.bf16.mxu0 0
  %1483 = vmatpush1.bf16.msra.mxu0 0
  %1484 = vmatprep.subr.bf16.mxu0 0
  %1485 = vmatpush1.bf16.msra.mxu0 0
  %1486 = vmatprep.subr.bf16.mxu0 0
  %1487 = vmatpush1.bf16.msra.mxu0 0
  %1488 = vmatprep.subr.bf16.mxu0 0
  %1489 = vmatpush1.bf16.msra.mxu0 0
  %1490 = vmatprep.subr.bf16.mxu0 0
  %1491 = vmatpush1.bf16.msra.mxu0 0
  %1492 = vmatprep.subr.bf16.mxu0 0
  %1493 = vmatpush1.bf16.msra.mxu0 0
  %1494 = vmatprep.mubr.bf16.mxu0 0
  %1495 = vmatmul.mubr.bf16.gmra.mrb[0].mxu0 %v1460
  %v1496 = vpop.f32.mrb[0].mxu0
  %v1497 = vadd.f32 0.0, %v1496
  %v1498 = vpop.f32.mrb[0].mxu0
  %v1499 = vpop.f32.mrb[0].mxu0
  %v1500 = vpop.f32.mrb[0].mxu0
  %1501 = vdwg.mxu0
  %v1503 = vrot.slane %v1497, 6
  %1504 = vrot.lane.b32.xlu0 %v1503, 64
  %v1505 = vpop.permute.xlu0 %1504
  %v1507 = vadd.f32 %v120, %v1505
  %v1508 = vsub.f32 0.0, %v1507
  %v1509 = vmul.f32 %v1508, 1.442695
  %v1510 = vpow.pop %v1509
  %v1511 = vadd.f32 %v1510, 1.0
  %v1512 = vrcp.pop %v1511
  %v1513 = vmul.f32 1.0, %v1512
  %v1514 = vtanh.pop %v1507
  %v1516 = vrot.slane %v1455, 6
  %1517 = vrot.lane.b32.xlu0 %v1516, 80
  %v1518 = vpop.permute.xlu0 %1517
  %v1520 = vmul.f32 %v1513, %v1518
  %1522 = vrot.lane.b32.xlu0 %v1514, 96
  %v1523 = vpop.permute.xlu0 %1522
  %v1525 = vmul.f32 %v1513, %v1523
  %1527 = vrot.lane.b32.xlu0 %v1525, 16
  %v1528 = vpop.permute.xlu0 %1527
  %v1530 = vadd.f32 %v1520, %v1528
  %v1531 = vtanh.pop %v1530
  %1533 = vrot.lane.b32.xlu0 %v1531, 32
  %v1534 = vpop.permute.xlu0 %1533
  %v1536 = vmul.f32 %v1513, %v1534
  %v1538 = vrot.slane %v1536, 2
  %1539 = vrot.lane.b32.xlu0 %v1538, 16
  %v1540 = vpop.permute.xlu0 %1539
  %v1542 = vmul.f32 %v1457, %v1540
  %v1543 = vsub.f32 1.0, %v1457
  %v1544 = vmul.f32 %v1543, %v1447
  %v1545 = vadd.f32 %v1542, %v1544
  %v1547 = vrot.slane %v1530, 2
  %1548 = vrot.lane.b32.xlu0 %v1547, 48
  %v1549 = vpop.permute.xlu0 %1548
  %v1551 = vmul.f32 %v1457, %v1549
  %v1552 = vmul.f32 %v1543, %v1455
  %v1553 = vadd.f32 %v1551, %v1552
  %1554 = vst.msk [vmem:[#allocation3 + $0x2] sm:$0x3] %vm220, %v1542
  %v1555 = vld [vmem:[%s1] sm:$0x3]
  %v1556 = vpack.c.bf16 %v1545, %v1545
  %v1558 = vsel %vm137, %v1556, 0
  %1560 = vmatprep.subr.bf16.mxu0 0
  %1561 = vmatpush1.bf16.msra.mxu0 %v882
  %1562 = vmatprep.subr.bf16.mxu0 0
  %1563 = vmatpush1.bf16.msra.mxu0 0
  %1564 = vmatprep.subr.bf16.mxu0 0
  %1565 = vmatpush1.bf16.msra.mxu0 0
  %1566 = vmatprep.subr.bf16.mxu0 0
  %1567 = vmatpush1.bf16.msra.mxu0 0
  %1568 = vmatprep.subr.bf16.mxu0 0
  %1569 = vmatpush1.bf16.msra.mxu0 0
  %1570 = vmatprep.subr.bf16.mxu0 0
  %1571 = vmatpush1.bf16.msra.mxu0 0
  %1572 = vmatprep.subr.bf16.mxu0 0
  %1573 = vmatpush1.bf16.msra.mxu0 0
  %1574 = vmatprep.subr.bf16.mxu0 0
  %1575 = vmatpush1.bf16.msra.mxu0 0
  %1576 = vmatprep.subr.bf16.mxu0 0
  %1577 = vmatpush1.bf16.msra.mxu0 0
  %1578 = vmatprep.subr.bf16.mxu0 0
  %1579 = vmatpush1.bf16.msra.mxu0 0
  %1580 = vmatprep.subr.bf16.mxu0 0
  %1581 = vmatpush1.bf16.msra.mxu0 0
  %1582 = vmatprep.subr.bf16.mxu0 0
  %1583 = vmatpush1.bf16.msra.mxu0 0
  %1584 = vmatprep.subr.bf16.mxu0 0
  %1585 = vmatpush1.bf16.msra.mxu0 0
  %1586 = vmatprep.subr.bf16.mxu0 0
  %1587 = vmatpush1.bf16.msra.mxu0 0
  %1588 = vmatprep.subr.bf16.mxu0 0
  %1589 = vmatpush1.bf16.msra.mxu0 0
  %1590 = vmatprep.subr.bf16.mxu0 0
  %1591 = vmatpush1.bf16.msra.mxu0 0
  %1592 = vmatprep.mubr.bf16.mxu0 0
  %1593 = vmatmul.mubr.bf16.gmra.mrb[0].mxu0 %v1558
  %v1594 = vpop.f32.mrb[0].mxu0
  %v1595 = vadd.f32 0.0, %v1594
  %v1596 = vpop.f32.mrb[0].mxu0
  %v1597 = vpop.f32.mrb[0].mxu0
  %v1598 = vpop.f32.mrb[0].mxu0
  %1599 = vdwg.mxu0
  %1601 = vrot.lane.b32.xlu0 %v1595, 64
  %v1602 = vpop.permute.xlu0 %1601
  %v1604 = vadd.f32 %v120, %v1602
  %v1605 = vsub.f32 0.0, %v1604
  %v1606 = vmul.f32 %v1605, 1.442695
  %v1607 = vpow.pop %v1606
  %v1608 = vadd.f32 %v1607, 1.0
  %v1609 = vrcp.pop %v1608
  %v1610 = vmul.f32 1.0, %v1609
  %v1611 = vtanh.pop %v1604
  %1613 = vrot.lane.b32.xlu0 %v1553, 80
  %v1614 = vpop.permute.xlu0 %1613
  %v1616 = vmul.f32 %v1610, %v1614
  %1618 = vrot.lane.b32.xlu0 %v1611, 96
  %v1619 = vpop.permute.xlu0 %1618
  %v1621 = vmul.f32 %v1610, %v1619
  %1623 = vrot.lane.b32.xlu0 %v1621, 16
  %v1624 = vpop.permute.xlu0 %1623
  %v1626 = vadd.f32 %v1616, %v1624
  %v1627 = vtanh.pop %v1626
  %1629 = vrot.lane.b32.xlu0 %v1627, 32
  %v1630 = vpop.permute.xlu0 %1629
  %v1632 = vmul.f32 %v1610, %v1630
  %1634 = vrot.lane.b32.xlu0 %v1632, 16
  %v1635 = vpop.permute.xlu0 %1634
  %v1637 = vmul.f32 %v1555, %v1635
  %1638 = vst.msk [vmem:[#allocation3] sm:$0x3] %vm220, %v1637
  %v1639 = vld [vmem:[#allocation2] sm:$0xff]
  %v1640 = vld [vmem:[#allocation2 + $0x8] sm:$0xff]
  %v1641 = vld [vmem:[#allocation3] sm:$0xff]
  %v1642 = vld [vmem:[#allocation3 + $0x8] sm:$0xff]
  %1645 = vrot.lane.b32.xlu0 %v1641, 16
  %v1646 = vpop.permute.xlu0 %1645
  %1647 = vrot.lane.b32.xlu0 %v1642, 16
  %v1648 = vpop.permute.xlu0 %1647
  %v1651 = vsel %vm137, %v1639, %v1646
  %v1652 = vsel %vm137, %v1640, %v1648
  %v1653 = vld [vmem:[%s2] sm:$0xf]
  %v1654 = vld [vmem:[%s2 + $0x4] sm:$0xf]
  %v1655 = vld [vmem:[%s8] sm:$0xf]
  %v1656 = vld [vmem:[%s8 + $0x4] sm:$0xf]
  %v1657 = vld [vmem:[%s8 + $0x8] sm:$0xf]
  %v1658 = vld [vmem:[%s8 + $0xc] sm:$0xf]
  %v1659 = vld [vmem:[%s9] sm:$0x1]
  %v1660 = vpack.c.bf16 %v1652, %v1651
  %v1665 = vunpack.c.l.b16 %v1655
  %v1666 = vunpack.c.l.b16 %v1656
  %v1667 = vunpack.c.l.b16 %v1657
  %v1668 = vunpack.c.l.b16 %v1658
  %v1669 = vpack.c.b16 %v1666, %v1665
  %v1670 = vpack.c.b16 %v1668, %v1667
  %vm1673 = vcmask 261120
  %v1675 = vsel %vm1673, %v1660, 0
  %1677 = vmatprep.subr.bf16.mxu0 0
  %1678 = vmatpush1.bf16.msra.mxu0 %v1669
  %1679 = vmatprep.subr.bf16.mxu0 0
  %1680 = vmatpush1.bf16.msra.mxu0 %v1670
  %1681 = vmatprep.subr.bf16.mxu0 0
  %1682 = vmatpush1.bf16.msra.mxu0 0
  %1683 = vmatprep.subr.bf16.mxu0 0
  %1684 = vmatpush1.bf16.msra.mxu0 0
  %1685 = vmatprep.subr.bf16.mxu0 0
  %1686 = vmatpush1.bf16.msra.mxu0 0
  %1687 = vmatprep.subr.bf16.mxu0 0
  %1688 = vmatpush1.bf16.msra.mxu0 0
  %1689 = vmatprep.subr.bf16.mxu0 0
  %1690 = vmatpush1.bf16.msra.mxu0 0
  %1691 = vmatprep.subr.bf16.mxu0 0
  %1692 = vmatpush1.bf16.msra.mxu0 0
  %1693 = vmatprep.subr.bf16.mxu0 0
  %1694 = vmatpush1.bf16.msra.mxu0 0
  %1695 = vmatprep.subr.bf16.mxu0 0
  %1696 = vmatpush1.bf16.msra.mxu0 0
  %1697 = vmatprep.subr.bf16.mxu0 0
  %1698 = vmatpush1.bf16.msra.mxu0 0
  %1699 = vmatprep.subr.bf16.mxu0 0
  %1700 = vmatpush1.bf16.msra.mxu0 0
  %1701 = vmatprep.subr.bf16.mxu0 0
  %1702 = vmatpush1.bf16.msra.mxu0 0
  %1703 = vmatprep.subr.bf16.mxu0 0
  %1704 = vmatpush1.bf16.msra.mxu0 0
  %1705 = vmatprep.subr.bf16.mxu0 0
  %1706 = vmatpush1.bf16.msra.mxu0 0
  %1707 = vmatprep.subr.bf16.mxu0 0
  %1708 = vmatpush1.bf16.msra.mxu0 0
  %1709 = vmatprep.mubr.bf16.mxu0 0
  %1710 = vmatmul.mubr.bf16.gmra.mrb[0].mxu0 %v1675
  %v1711 = vpop.f32.mrb[0].mxu0
  %v1712 = vadd.f32 0.0, %v1711
  %v1713 = vpop.f32.mrb[0].mxu0
  %v1714 = vpop.f32.mrb[0].mxu0
  %v1715 = vadd.f32 0.0, %v1714
  %v1716 = vpop.f32.mrb[0].mxu0
  %1717 = vdwg.mxu0
  %v1718 = vpack.c.bf16 %v1715, %v1712
  %v1720 = vlaneseq
  %v1721 = vshrl.u32 %v1720, 7
  %v1722 = vsub.s32 0, %v1721
  %v1723 = vrot.slane %v1659, %v1722
  %v1727 = vunpack.c.l.b16 %v1653
  %v1728 = vunpack.c.l.b16 %v1654
  %v1729 = vpack.c.b16 %v1728, %v1727
  %v1731 = vsel %vm137, %v1729, 0
  %1733 = vmatprep.subr.bf16.mxu0 0
  %1734 = vmatpush1.bf16.msra.mxu0 %v1718
  %1735 = vmatprep.subr.bf16.mxu0 0
  %1736 = vmatpush1.bf16.msra.mxu0 0
  %1737 = vmatprep.subr.bf16.mxu0 0
  %1738 = vmatpush1.bf16.msra.mxu0 0
  %1739 = vmatprep.subr.bf16.mxu0 0
  %1740 = vmatpush1.bf16.msra.mxu0 0
  %1741 = vmatprep.subr.bf16.mxu0 0
  %1742 = vmatpush1.bf16.msra.mxu0 0
  %1743 = vmatprep.subr.bf16.mxu0 0
  %1744 = vmatpush1.bf16.msra.mxu0 0
  %1745 = vmatprep.subr.bf16.mxu0 0
  %1746 = vmatpush1.bf16.msra.mxu0 0
  %1747 = vmatprep.subr.bf16.mxu0 0
  %1748 = vmatpush1.bf16.msra.mxu0 0
  %1749 = vmatprep.subr.bf16.mxu0 0
  %1750 = vmatpush1.bf16.msra.mxu0 0
  %1751 = vmatprep.subr.bf16.mxu0 0
  %1752 = vmatpush1.bf16.msra.mxu0 0
  %1753 = vmatprep.subr.bf16.mxu0 0
  %1754 = vmatpush1.bf16.msra.mxu0 0
  %1755 = vmatprep.subr.bf16.mxu0 0
  %1756 = vmatpush1.bf16.msra.mxu0 0
  %1757 = vmatprep.subr.bf16.mxu0 0
  %1758 = vmatpush1.bf16.msra.mxu0 0
  %1759 = vmatprep.subr.bf16.mxu0 0
  %1760 = vmatpush1.bf16.msra.mxu0 0
  %1761 = vmatprep.subr.bf16.mxu0 0
  %1762 = vmatpush1.bf16.msra.mxu0 0
  %1763 = vmatprep.subr.bf16.mxu0 0
  %1764 = vmatpush1.bf16.msra.mxu0 0
  %1765 = vmatprep.mubr.bf16.mxu0 0
  %1766 = vmatmul.mubr.bf16.gmra.mrb[0].mxu0 %v1731
  %v1767 = vpop.f32.mrb[0].mxu0
  %v1768 = vadd.f32 %v1723, %v1767
  %v1769 = vpop.f32.mrb[0].mxu0
  %v1770 = vpop.f32.mrb[0].mxu0
  %v1771 = vadd.f32 %v1723, %v1770
  %v1772 = vpop.f32.mrb[0].mxu0
  %1773 = vdwg.mxu0
  %v1774 = vmax.f32 %v1768, 0.0
  %v1775 = vmax.f32 %v1771, 0.0
  %v1776 = vld [vmem:[%s10] sm:$0xf]
  %v1777 = vld [vmem:[%s10 + $0x4] sm:$0xf]
  %v1778 = vld [vmem:[%s10 + $0x8] sm:$0xf]
  %v1779 = vld [vmem:[%s10 + $0xc] sm:$0xf]
  %v1780 = vld [vmem:[%s10 + $0x10] sm:$0xf]
  %v1781 = vld [vmem:[%s10 + $0x14] sm:$0xf]
  %v1782 = vld [vmem:[%s10 + $0x18] sm:$0xf]
  %v1783 = vld [vmem:[%s10 + $0x1c] sm:$0xf]
  %v1784 = vld [vmem:[%s10 + $0x20] sm:$0xf]
  %v1785 = vld [vmem:[%s10 + $0x24] sm:$0xf]
  %v1786 = vld [vmem:[%s10 + $0x28] sm:$0xf]
  %v1787 = vld [vmem:[%s10 + $0x2c] sm:$0xf]
  %v1788 = vld [vmem:[%s10 + $0x30] sm:$0xf]
  %v1789 = vld [vmem:[%s10 + $0x34] sm:$0xf]
  %v1790 = vld [vmem:[%s10 + $0x38] sm:$0xf]
  %v1791 = vld [vmem:[%s10 + $0x3c] sm:$0xf]
  %v1792 = vld [vmem:[%s11] sm:$0x1]
  %v1793 = vpack.c.bf16 %v1775, %v1774
  %v1810 = vunpack.c.l.b16 %v1776
  %v1811 = vunpack.c.l.b16 %v1777
  %v1812 = vunpack.c.l.b16 %v1778
  %v1813 = vunpack.c.l.b16 %v1779
  %v1814 = vunpack.c.l.b16 %v1780
  %v1815 = vunpack.c.l.b16 %v1781
  %v1816 = vunpack.c.l.b16 %v1782
  %v1817 = vunpack.c.l.b16 %v1783
  %v1818 = vunpack.c.l.b16 %v1784
  %v1819 = vunpack.c.l.b16 %v1785
  %v1820 = vunpack.c.l.b16 %v1786
  %v1821 = vunpack.c.l.b16 %v1787
  %v1822 = vunpack.c.l.b16 %v1788
  %v1823 = vunpack.c.l.b16 %v1789
  %v1824 = vunpack.c.l.b16 %v1790
  %v1825 = vunpack.c.l.b16 %v1791
  %v1826 = vpack.c.b16 %v1811, %v1810
  %v1827 = vpack.c.b16 %v1813, %v1812
  %v1828 = vpack.c.b16 %v1815, %v1814
  %v1829 = vpack.c.b16 %v1817, %v1816
  %v1830 = vpack.c.b16 %v1819, %v1818
  %v1831 = vpack.c.b16 %v1821, %v1820
  %v1832 = vpack.c.b16 %v1823, %v1822
  %v1833 = vpack.c.b16 %v1825, %v1824
  %1842 = vmatprep.subr.bf16.mxu0 0
  %1843 = vmatpush1.bf16.msra.mxu0 %v1826
  %1844 = vmatprep.subr.bf16.mxu0 0
  %1845 = vmatpush1.bf16.msra.mxu0 %v1827
  %1846 = vmatprep.subr.bf16.mxu0 0
  %1847 = vmatpush1.bf16.msra.mxu0 %v1828
  %1848 = vmatprep.subr.bf16.mxu0 0
  %1849 = vmatpush1.bf16.msra.mxu0 %v1829
  %1850 = vmatprep.subr.bf16.mxu0 0
  %1851 = vmatpush1.bf16.msra.mxu0 %v1830
  %1852 = vmatprep.subr.bf16.mxu0 0
  %1853 = vmatpush1.bf16.msra.mxu0 %v1831
  %1854 = vmatprep.subr.bf16.mxu0 0
  %1855 = vmatpush1.bf16.msra.mxu0 %v1832
  %1856 = vmatprep.subr.bf16.mxu0 0
  %1857 = vmatpush1.bf16.msra.mxu0 %v1833
  %1858 = vmatprep.subr.bf16.mxu0 0
  %1859 = vmatpush1.bf16.msra.mxu0 0
  %1860 = vmatprep.subr.bf16.mxu0 0
  %1861 = vmatpush1.bf16.msra.mxu0 0
  %1862 = vmatprep.subr.bf16.mxu0 0
  %1863 = vmatpush1.bf16.msra.mxu0 0
  %1864 = vmatprep.subr.bf16.mxu0 0
  %1865 = vmatpush1.bf16.msra.mxu0 0
  %1866 = vmatprep.subr.bf16.mxu0 0
  %1867 = vmatpush1.bf16.msra.mxu0 0
  %1868 = vmatprep.subr.bf16.mxu0 0
  %1869 = vmatpush1.bf16.msra.mxu0 0
  %1870 = vmatprep.subr.bf16.mxu0 0
  %1871 = vmatpush1.bf16.msra.mxu0 0
  %1872 = vmatprep.subr.bf16.mxu0 0
  %1873 = vmatpush1.bf16.msra.mxu0 0
  %1874 = vmatprep.mubr.bf16.mxu0 0
  %1875 = vmatmul.mubr.bf16.gmra.mrb[0].mxu0 %v1793
  %v1876 = vpop.f32.mrb[0].mxu0
  %v1877 = vadd.f32 0.0, %v1876
  %v1878 = vpop.f32.mrb[0].mxu0
  %v1879 = vpop.f32.mrb[0].mxu0
  %v1880 = vadd.f32 0.0, %v1879
  %v1881 = vpop.f32.mrb[0].mxu0
  %1882 = vdwg.mxu0
  %v1883 = vpack.c.bf16 %v1880, %v1877
  %v1885 = vlaneseq
  %v1886 = vshrl.u32 %v1885, 7
  %v1887 = vsub.s32 0, %v1886
  %v1888 = vrot.slane %v1792, %v1887
  %1890 = vmatprep.subr.bf16.mxu0 0
  %1891 = vmatpush1.bf16.msra.mxu0 %v1883
  %1892 = vmatprep.subr.bf16.mxu0 0
  %1893 = vmatpush1.bf16.msra.mxu0 0
  %1894 = vmatprep.subr.bf16.mxu0 0
  %1895 = vmatpush1.bf16.msra.mxu0 0
  %1896 = vmatprep.subr.bf16.mxu0 0
  %1897 = vmatpush1.bf16.msra.mxu0 0
  %1898 = vmatprep.subr.bf16.mxu0 0
  %1899 = vmatpush1.bf16.msra.mxu0 0
  %1900 = vmatprep.subr.bf16.mxu0 0
  %1901 = vmatpush1.bf16.msra.mxu0 0
  %1902 = vmatprep.subr.bf16.mxu0 0
  %1903 = vmatpush1.bf16.msra.mxu0 0
  %1904 = vmatprep.subr.bf16.mxu0 0
  %1905 = vmatpush1.bf16.msra.mxu0 0
  %1906 = vmatprep.subr.bf16.mxu0 0
  %1907 = vmatpush1.bf16.msra.mxu0 0
  %1908 = vmatprep.subr.bf16.mxu0 0
  %1909 = vmatpush1.bf16.msra.mxu0 0
  %1910 = vmatprep.subr.bf16.mxu0 0
  %1911 = vmatpush1.bf16.msra.mxu0 0
  %1912 = vmatprep.subr.bf16.mxu0 0
  %1913 = vmatpush1.bf16.msra.mxu0 0
  %1914 = vmatprep.subr.bf16.mxu0 0
  %1915 = vmatpush1.bf16.msra.mxu0 0
  %1916 = vmatprep.subr.bf16.mxu0 0
  %1917 = vmatpush1.bf16.msra.mxu0 0
  %1918 = vmatprep.subr.bf16.mxu0 0
  %1919 = vmatpush1.bf16.msra.mxu0 0
  %1920 = vmatprep.subr.bf16.mxu0 0
  %1921 = vmatpush1.bf16.msra.mxu0 0
  %1922 = vmatprep.mubr.bf16.mxu0 0
  %1923 = vmatmul.mubr.bf16.gmra.mrb[0].mxu0 %v1731
  %v1924 = vpop.f32.mrb[0].mxu0
  %v1925 = vadd.f32 %v1888, %v1924
  %v1926 = vpop.f32.mrb[0].mxu0
  %v1927 = vpop.f32.mrb[0].mxu0
  %v1928 = vadd.f32 %v1888, %v1927
  %v1929 = vpop.f32.mrb[0].mxu0
  %1930 = vdwg.mxu0
  %v1931 = vmax.f32 %v1925, 0.0
  %v1932 = vmax.f32 %v1928, 0.0
  %v1933 = vpack.c.bf16 %v1932, %v1931
  %v1934 = vld [vmem:[%s12] sm:$0xff]
  %v1935 = vld [vmem:[%s12 + $0x8] sm:$0xff]
  %v1936 = vld [vmem:[%s12 + $0x10] sm:$0xff]
  %v1937 = vld [vmem:[%s12 + $0x18] sm:$0xff]
  %v1938 = vld [vmem:[%s12 + $0x20] sm:$0xff]
  %v1939 = vld [vmem:[%s12 + $0x28] sm:$0xff]
  %v1940 = vld [vmem:[%s12 + $0x30] sm:$0xff]
  %v1941 = vld [vmem:[%s12 + $0x38] sm:$0xff]
  %v1942 = vld [vmem:[%s12 + $0x40] sm:$0xff]
  %v1943 = vld [vmem:[%s12 + $0x48] sm:$0xff]
  %v1944 = vld [vmem:[%s12 + $0x50] sm:$0xff]
  %v1945 = vld [vmem:[%s12 + $0x58] sm:$0xff]
  %v1946 = vld [vmem:[%s12 + $0x60] sm:$0xff]
  %v1947 = vld [vmem:[%s12 + $0x68] sm:$0xff]
  %v1948 = vld [vmem:[%s12 + $0x70] sm:$0xff]
  %v1949 = vld [vmem:[%s12 + $0x78] sm:$0xff]
  %v1950 = vld [vmem:[%s12 + $0x80] sm:$0xff]
  %v1951 = vld [vmem:[%s12 + $0x88] sm:$0xff]
  %v1952 = vld [vmem:[%s12 + $0x90] sm:$0xff]
  %v1953 = vld [vmem:[%s12 + $0x98] sm:$0xff]
  %v1954 = vld [vmem:[%s12 + $0xa0] sm:$0xff]
  %v1955 = vld [vmem:[%s12 + $0xa8] sm:$0xff]
  %v1956 = vld [vmem:[%s12 + $0xb0] sm:$0xff]
  %v1957 = vld [vmem:[%s12 + $0xb8] sm:$0xff]
  %v1958 = vld [vmem:[%s12 + $0xc0] sm:$0xff]
  %v1959 = vld [vmem:[%s12 + $0xc8] sm:$0xff]
  %v1960 = vld [vmem:[%s12 + $0xd0] sm:$0xff]
  %v1961 = vld [vmem:[%s12 + $0xd8] sm:$0xff]
  %v1962 = vld [vmem:[%s12 + $0xe0] sm:$0xff]
  %v1963 = vld [vmem:[%s12 + $0xe8] sm:$0xff]
  %v1964 = vld [vmem:[%s12 + $0xf0] sm:$0xff]
  %v1965 = vld [vmem:[%s12 + $0xf8] sm:$0xff]
  %v1966 = vld [vmem:[%s12 + $0x100] sm:$0xff]
  %v1967 = vld [vmem:[%s12 + $0x108] sm:$0xff]
  %v1968 = vld [vmem:[%s12 + $0x110] sm:$0xff]
  %v1969 = vld [vmem:[%s12 + $0x118] sm:$0xff]
  %v1970 = vld [vmem:[%s12 + $0x120] sm:$0xff]
  %v1971 = vld [vmem:[%s12 + $0x128] sm:$0xff]
  %v1972 = vld [vmem:[%s12 + $0x130] sm:$0xff]
  %v1973 = vld [vmem:[%s12 + $0x138] sm:$0xff]
  %v1974 = vld [vmem:[%s12 + $0x140] sm:$0xff]
  %v1975 = vld [vmem:[%s12 + $0x148] sm:$0xff]
  %v1976 = vld [vmem:[%s12 + $0x150] sm:$0xff]
  %v1977 = vld [vmem:[%s12 + $0x158] sm:$0xff]
  %v1978 = vld [vmem:[%s12 + $0x160] sm:$0xff]
  %v1979 = vld [vmem:[%s12 + $0x168] sm:$0xff]
  %v1980 = vld [vmem:[%s12 + $0x170] sm:$0xff]
  %v1981 = vld [vmem:[%s12 + $0x178] sm:$0xff]
  %v2030 = vunpack.c.l.b16 %v1934
  %v2031 = vunpack.c.h.b16 %v1934
  %v2032 = vunpack.c.l.b16 %v1935
  %v2033 = vunpack.c.h.b16 %v1935
  %v2034 = vunpack.c.l.b16 %v1936
  %v2035 = vunpack.c.h.b16 %v1936
  %v2036 = vunpack.c.l.b16 %v1937
  %v2037 = vunpack.c.h.b16 %v1937
  %v2038 = vunpack.c.l.b16 %v1938
  %v2039 = vunpack.c.h.b16 %v1938
  %v2040 = vunpack.c.l.b16 %v1939
  %v2041 = vunpack.c.h.b16 %v1939
  %v2042 = vunpack.c.l.b16 %v1940
  %v2043 = vunpack.c.h.b16 %v1940
  %v2044 = vunpack.c.l.b16 %v1941
  %v2045 = vunpack.c.h.b16 %v1941
  %v2046 = vunpack.c.l.b16 %v1942
  %v2047 = vunpack.c.h.b16 %v1942
  %v2048 = vunpack.c.l.b16 %v1943
  %v2049 = vunpack.c.h.b16 %v1943
  %v2050 = vunpack.c.l.b16 %v1944
  %v2051 = vunpack.c.h.b16 %v1944
  %v2052 = vunpack.c.l.b16 %v1945
  %v2053 = vunpack.c.h.b16 %v1945
  %v2054 = vunpack.c.l.b16 %v1946
  %v2055 = vunpack.c.h.b16 %v1946
  %v2056 = vunpack.c.l.b16 %v1947
  %v2057 = vunpack.c.h.b16 %v1947
  %v2058 = vunpack.c.l.b16 %v1948
  %v2059 = vunpack.c.h.b16 %v1948
  %v2060 = vunpack.c.l.b16 %v1949
  %v2061 = vunpack.c.h.b16 %v1949
  %v2062 = vunpack.c.l.b16 %v1950
  %v2063 = vunpack.c.h.b16 %v1950
  %v2064 = vunpack.c.l.b16 %v1951
  %v2065 = vunpack.c.h.b16 %v1951
  %v2066 = vunpack.c.l.b16 %v1952
  %v2067 = vunpack.c.h.b16 %v1952
  %v2068 = vunpack.c.l.b16 %v1953
  %v2069 = vunpack.c.h.b16 %v1953
  %v2070 = vunpack.c.l.b16 %v1954
  %v2071 = vunpack.c.h.b16 %v1954
  %v2072 = vunpack.c.l.b16 %v1955
  %v2073 = vunpack.c.h.b16 %v1955
  %v2074 = vunpack.c.l.b16 %v1956
  %v2075 = vunpack.c.h.b16 %v1956
  %v2076 = vunpack.c.l.b16 %v1957
  %v2077 = vunpack.c.h.b16 %v1957
  %v2078 = vunpack.c.l.b16 %v1958
  %v2079 = vunpack.c.h.b16 %v1958
  %v2080 = vunpack.c.l.b16 %v1959
  %v2081 = vunpack.c.h.b16 %v1959
  %v2082 = vunpack.c.l.b16 %v1960
  %v2083 = vunpack.c.h.b16 %v1960
  %v2084 = vunpack.c.l.b16 %v1961
  %v2085 = vunpack.c.h.b16 %v1961
  %v2086 = vunpack.c.l.b16 %v1962
  %v2087 = vunpack.c.h.b16 %v1962
  %v2088 = vunpack.c.l.b16 %v1963
  %v2089 = vunpack.c.h.b16 %v1963
  %v2090 = vunpack.c.l.b16 %v1964
  %v2091 = vunpack.c.h.b16 %v1964
  %v2092 = vunpack.c.l.b16 %v1965
  %v2093 = vunpack.c.h.b16 %v1965
  %v2094 = vunpack.c.l.b16 %v1966
  %v2095 = vunpack.c.h.b16 %v1966
  %v2096 = vunpack.c.l.b16 %v1967
  %v2097 = vunpack.c.h.b16 %v1967
  %v2098 = vunpack.c.l.b16 %v1968
  %v2099 = vunpack.c.h.b16 %v1968
  %v2100 = vunpack.c.l.b16 %v1969
  %v2101 = vunpack.c.h.b16 %v1969
  %v2102 = vunpack.c.l.b16 %v1970
  %v2103 = vunpack.c.h.b16 %v1970
  %v2104 = vunpack.c.l.b16 %v1971
  %v2105 = vunpack.c.h.b16 %v1971
  %v2106 = vunpack.c.l.b16 %v1972
  %v2107 = vunpack.c.h.b16 %v1972
  %v2108 = vunpack.c.l.b16 %v1973
  %v2109 = vunpack.c.h.b16 %v1973
  %v2110 = vunpack.c.l.b16 %v1974
  %v2111 = vunpack.c.h.b16 %v1974
  %v2112 = vunpack.c.l.b16 %v1975
  %v2113 = vunpack.c.h.b16 %v1975
  %v2114 = vunpack.c.l.b16 %v1976
  %v2115 = vunpack.c.h.b16 %v1976
  %v2116 = vunpack.c.l.b16 %v1977
  %v2117 = vunpack.c.h.b16 %v1977
  %v2118 = vunpack.c.l.b16 %v1978
  %v2119 = vunpack.c.h.b16 %v1978
  %v2120 = vunpack.c.l.b16 %v1979
  %v2121 = vunpack.c.h.b16 %v1979
  %v2122 = vunpack.c.l.b16 %v1980
  %v2123 = vunpack.c.h.b16 %v1980
  %v2124 = vunpack.c.l.b16 %v1981
  %v2125 = vunpack.c.h.b16 %v1981
  %v2126 = vpack.c.b16 %v2036, %v2030
  %v2127 = vpack.c.b16 %v2037, %v2031
  %v2128 = vpack.c.b16 %v2038, %v2032
  %v2129 = vpack.c.b16 %v2039, %v2033
  %v2130 = vpack.c.b16 %v2040, %v2034
  %v2131 = vpack.c.b16 %v2041, %v2035
  %v2132 = vpack.c.b16 %v2048, %v2042
  %v2133 = vpack.c.b16 %v2049, %v2043
  %v2134 = vpack.c.b16 %v2050, %v2044
  %v2135 = vpack.c.b16 %v2051, %v2045
  %v2136 = vpack.c.b16 %v2052, %v2046
  %v2137 = vpack.c.b16 %v2053, %v2047
  %v2138 = vpack.c.b16 %v2060, %v2054
  %v2139 = vpack.c.b16 %v2061, %v2055
  %v2140 = vpack.c.b16 %v2062, %v2056
  %v2141 = vpack.c.b16 %v2063, %v2057
  %v2142 = vpack.c.b16 %v2064, %v2058
  %v2143 = vpack.c.b16 %v2065, %v2059
  %v2144 = vpack.c.b16 %v2072, %v2066
  %v2145 = vpack.c.b16 %v2073, %v2067
  %v2146 = vpack.c.b16 %v2074, %v2068
  %v2147 = vpack.c.b16 %v2075, %v2069
  %v2148 = vpack.c.b16 %v2076, %v2070
  %v2149 = vpack.c.b16 %v2077, %v2071
  %v2150 = vpack.c.b16 %v2084, %v2078
  %v2151 = vpack.c.b16 %v2085, %v2079
  %v2152 = vpack.c.b16 %v2086, %v2080
  %v2153 = vpack.c.b16 %v2087, %v2081
  %v2154 = vpack.c.b16 %v2088, %v2082
  %v2155 = vpack.c.b16 %v2089, %v2083
  %v2156 = vpack.c.b16 %v2096, %v2090
  %v2157 = vpack.c.b16 %v2097, %v2091
  %v2158 = vpack.c.b16 %v2098, %v2092
  %v2159 = vpack.c.b16 %v2099, %v2093
  %v2160 = vpack.c.b16 %v2100, %v2094
  %v2161 = vpack.c.b16 %v2101, %v2095
  %v2162 = vpack.c.b16 %v2108, %v2102
  %v2163 = vpack.c.b16 %v2109, %v2103
  %v2164 = vpack.c.b16 %v2110, %v2104
  %v2165 = vpack.c.b16 %v2111, %v2105
  %v2166 = vpack.c.b16 %v2112, %v2106
  %v2167 = vpack.c.b16 %v2113, %v2107
  %v2168 = vpack.c.b16 %v2120, %v2114
  %v2169 = vpack.c.b16 %v2121, %v2115
  %v2170 = vpack.c.b16 %v2122, %v2116
  %v2171 = vpack.c.b16 %v2123, %v2117
  %v2172 = vpack.c.b16 %v2124, %v2118
  %v2173 = vpack.c.b16 %v2125, %v2119
  %2222 = vmatprep.subr.bf16.mxu0 %v2127
  %2223 = vmatpush1.bf16.msra.mxu0 %v2126
  %2224 = vmatprep.subr.bf16.mxu0 %v2133
  %2225 = vmatpush1.bf16.msra.mxu0 %v2132
  %2226 = vmatprep.subr.bf16.mxu0 %v2139
  %2227 = vmatpush1.bf16.msra.mxu0 %v2138
  %2228 = vmatprep.subr.bf16.mxu0 %v2145
  %2229 = vmatpush1.bf16.msra.mxu0 %v2144
  %2230 = vmatprep.subr.bf16.mxu0 %v2151
  %2231 = vmatpush1.bf16.msra.mxu0 %v2150
  %2232 = vmatprep.subr.bf16.mxu0 %v2157
  %2233 = vmatpush1.bf16.msra.mxu0 %v2156
  %2234 = vmatprep.subr.bf16.mxu0 %v2163
  %2235 = vmatpush1.bf16.msra.mxu0 %v2162
  %2236 = vmatprep.subr.bf16.mxu0 %v2169
  %2237 = vmatpush1.bf16.msra.mxu0 %v2168
  %2238 = vmatprep.subr.bf16.mxu0 0
  %2239 = vmatpush1.bf16.msra.mxu0 0
  %2240 = vmatprep.subr.bf16.mxu0 0
  %2241 = vmatpush1.bf16.msra.mxu0 0
  %2242 = vmatprep.subr.bf16.mxu0 0
  %2243 = vmatpush1.bf16.msra.mxu0 0
  %2244 = vmatprep.subr.bf16.mxu0 0
  %2245 = vmatpush1.bf16.msra.mxu0 0
  %2246 = vmatprep.subr.bf16.mxu0 0
  %2247 = vmatpush1.bf16.msra.mxu0 0
  %2248 = vmatprep.subr.bf16.mxu0 0
  %2249 = vmatpush1.bf16.msra.mxu0 0
  %2250 = vmatprep.subr.bf16.mxu0 0
  %2251 = vmatpush1.bf16.msra.mxu0 0
  %2252 = vmatprep.subr.bf16.mxu0 0
  %2253 = vmatpush1.bf16.msra.mxu0 0
  %2254 = vmatprep.mubr.bf16.mxu0 0
  %2255 = vmatmul.mubr.bf16.gmra.mrb[0].mxu0 %v1933
  %v2256 = vpop.f32.mrb[0].mxu0
  %v2257 = vadd.f32 0.0, %v2256
  %v2258 = vpop.f32.mrb[0].mxu0
  %v2259 = vadd.f32 0.0, %v2258
  %v2260 = vpop.f32.mrb[0].mxu0
  %v2261 = vadd.f32 0.0, %v2260
  %v2262 = vpop.f32.mrb[0].mxu0
  %v2263 = vadd.f32 0.0, %v2262
  %2264 = vdwg.mxu0
  %2265 = vmatprep.subr.bf16.mxu0 %v2129
  %2266 = vmatpush1.bf16.msra.mxu0 %v2128
  %2267 = vmatprep.subr.bf16.mxu0 %v2135
  %2268 = vmatpush1.bf16.msra.mxu0 %v2134
  %2269 = vmatprep.subr.bf16.mxu0 %v2141
  %2270 = vmatpush1.bf16.msra.mxu0 %v2140
  %2271 = vmatprep.subr.bf16.mxu0 %v2147
  %2272 = vmatpush1.bf16.msra.mxu0 %v2146
  %2273 = vmatprep.subr.bf16.mxu0 %v2153
  %2274 = vmatpush1.bf16.msra.mxu0 %v2152
  %2275 = vmatprep.subr.bf16.mxu0 %v2159
  %2276 = vmatpush1.bf16.msra.mxu0 %v2158
  %2277 = vmatprep.subr.bf16.mxu0 %v2165
  %2278 = vmatpush1.bf16.msra.mxu0 %v2164
  %2279 = vmatprep.subr.bf16.mxu0 %v2171
  %2280 = vmatpush1.bf16.msra.mxu0 %v2170
  %2281 = vmatprep.subr.bf16.mxu0 0
  %2282 = vmatpush1.bf16.msra.mxu0 0
  %2283 = vmatprep.subr.bf16.mxu0 0
  %2284 = vmatpush1.bf16.msra.mxu0 0
  %2285 = vmatprep.subr.bf16.mxu0 0
  %2286 = vmatpush1.bf16.msra.mxu0 0
  %2287 = vmatprep.subr.bf16.mxu0 0
  %2288 = vmatpush1.bf16.msra.mxu0 0
  %2289 = vmatprep.subr.bf16.mxu0 0
  %2290 = vmatpush1.bf16.msra.mxu0 0
  %2291 = vmatprep.subr.bf16.mxu0 0
  %2292 = vmatpush1.bf16.msra.mxu0 0
  %2293 = vmatprep.subr.bf16.mxu0 0
  %2294 = vmatpush1.bf16.msra.mxu0 0
  %2295 = vmatprep.subr.bf16.mxu0 0
  %2296 = vmatpush1.bf16.msra.mxu0 0
  %2297 = vmatprep.mubr.bf16.mxu0 0
  %2298 = vmatmul.mubr.bf16.gmra.mrb[0].mxu0 %v1933
  %v2299 = vpop.f32.mrb[0].mxu0
  %v2300 = vadd.f32 0.0, %v2299
  %v2301 = vpop.f32.mrb[0].mxu0
  %v2302 = vadd.f32 0.0, %v2301
  %v2303 = vpop.f32.mrb[0].mxu0
  %v2304 = vadd.f32 0.0, %v2303
  %v2305 = vpop.f32.mrb[0].mxu0
  %v2306 = vadd.f32 0.0, %v2305
  %2307 = vdwg.mxu0
  %2308 = vmatprep.subr.bf16.mxu0 %v2131
  %2309 = vmatpush1.bf16.msra.mxu0 %v2130
  %2310 = vmatprep.subr.bf16.mxu0 %v2137
  %2311 = vmatpush1.bf16.msra.mxu0 %v2136
  %2312 = vmatprep.subr.bf16.mxu0 %v2143
  %2313 = vmatpush1.bf16.msra.mxu0 %v2142
  %2314 = vmatprep.subr.bf16.mxu0 %v2149
  %2315 = vmatpush1.bf16.msra.mxu0 %v2148
  %2316 = vmatprep.subr.bf16.mxu0 %v2155
  %2317 = vmatpush1.bf16.msra.mxu0 %v2154
  %2318 = vmatprep.subr.bf16.mxu0 %v2161
  %2319 = vmatpush1.bf16.msra.mxu0 %v2160
  %2320 = vmatprep.subr.bf16.mxu0 %v2167
  %2321 = vmatpush1.bf16.msra.mxu0 %v2166
  %2322 = vmatprep.subr.bf16.mxu0 %v2173
  %2323 = vmatpush1.bf16.msra.mxu0 %v2172
  %2324 = vmatprep.subr.bf16.mxu0 0
  %2325 = vmatpush1.bf16.msra.mxu0 0
  %2326 = vmatprep.subr.bf16.mxu0 0
  %2327 = vmatpush1.bf16.msra.mxu0 0
  %2328 = vmatprep.subr.bf16.mxu0 0
  %2329 = vmatpush1.bf16.msra.mxu0 0
  %2330 = vmatprep.subr.bf16.mxu0 0
  %2331 = vmatpush1.bf16.msra.mxu0 0
  %2332 = vmatprep.subr.bf16.mxu0 0
  %2333 = vmatpush1.bf16.msra.mxu0 0
  %2334 = vmatprep.subr.bf16.mxu0 0
  %2335 = vmatpush1.bf16.msra.mxu0 0
  %2336 = vmatprep.subr.bf16.mxu0 0
  %2337 = vmatpush1.bf16.msra.mxu0 0
  %2338 = vmatprep.subr.bf16.mxu0 0
  %2339 = vmatpush1.bf16.msra.mxu0 0
  %2340 = vmatprep.mubr.bf16.mxu0 0
  %2341 = vmatmul.mubr.bf16.gmra.mrb[0].mxu0 %v1933
  %v2342 = vpop.f32.mrb[0].mxu0
  %v2343 = vadd.f32 0.0, %v2342
  %v2344 = vpop.f32.mrb[0].mxu0
  %v2345 = vadd.f32 0.0, %v2344
  %v2346 = vpop.f32.mrb[0].mxu0
  %v2347 = vadd.f32 0.0, %v2346
  %v2348 = vpop.f32.mrb[0].mxu0
  %v2349 = vadd.f32 0.0, %v2348
  %2350 = vdwg.mxu0
  %v2351 = vld [vmem:[%s3] sm:$0xff]
  %v2352 = vld [vmem:[%s3 + $0x8] sm:$0xff]
  %v2353 = vpack.c.bf16 %v2261, %v2257
  %v2354 = vpack.c.bf16 %v2263, %v2259
  %v2355 = vpack.c.bf16 %v2304, %v2300
  %2356 = vmatprep.subr.bf16.mxu0 0
  %2357 = vmatpush1.bf16.xpose.msra.mxu0 %v2354
  %2358 = vmatprep.subr.bf16.mxu0 0
  %2359 = vmatpush1.bf16.xpose.msra.mxu0 0
  %2360 = vmatprep.subr.bf16.mxu0 0
  %2361 = vmatpush1.bf16.xpose.msra.mxu0 0
  %2362 = vmatprep.subr.bf16.mxu0 0
  %2363 = vmatpush1.bf16.xpose.msra.mxu0 0
  %2364 = vmatprep.subr.bf16.mxu0 0
  %2365 = vmatpush1.bf16.xpose.msra.mxu0 0
  %2366 = vmatprep.subr.bf16.mxu0 0
  %2367 = vmatpush1.bf16.xpose.msra.mxu0 0
  %2368 = vmatprep.subr.bf16.mxu0 0
  %2369 = vmatpush1.bf16.xpose.msra.mxu0 0
  %2370 = vmatprep.subr.bf16.mxu0 0
  %2371 = vmatpush1.bf16.xpose.msra.mxu0 0
  %2372 = vmatprep.subr.bf16.mxu0 0
  %2373 = vmatpush1.bf16.xpose.msra.mxu0 0
  %2374 = vmatprep.subr.bf16.mxu0 0
  %2375 = vmatpush1.bf16.xpose.msra.mxu0 0
  %2376 = vmatprep.subr.bf16.mxu0 0
  %2377 = vmatpush1.bf16.xpose.msra.mxu0 0
  %2378 = vmatprep.subr.bf16.mxu0 0
  %2379 = vmatpush1.bf16.xpose.msra.mxu0 0
  %2380 = vmatprep.subr.bf16.mxu0 0
  %2381 = vmatpush1.bf16.xpose.msra.mxu0 0
  %2382 = vmatprep.subr.bf16.mxu0 0
  %2383 = vmatpush1.bf16.xpose.msra.mxu0 0
  %2384 = vmatprep.subr.bf16.mxu0 0
  %2385 = vmatpush1.bf16.xpose.msra.mxu0 0
  %2386 = vmatprep.subr.bf16.mxu0 0
  %2387 = vmatpush1.bf16.xpose.msra.mxu0 0
  %2388 = vmatprep.mubr.bf16.mxu0 0
  %2389 = vmatmul.mubr.bf16.gmra.mrb[0].mxu0 %v2353
  %v2390 = vpop.f32.mrb[0].mxu0
  %v2391 = vadd.f32 0.0, %v2390
  %v2392 = vpop.f32.mrb[0].mxu0
  %v2393 = vpop.f32.mrb[0].mxu0
  %v2394 = vadd.f32 0.0, %v2393
  %v2395 = vpop.f32.mrb[0].mxu0
  %2396 = vdwg.mxu0
  %v2397 = vmul.f32 %v2391, 0.28867513
  %v2398 = vmul.f32 %v2394, 0.28867513
  %v2399 = vadd.f32 %v2397, %v2351
  %v2400 = vadd.f32 %v2398, %v2352
  %v2401 = vsel %vm137, %v2399, -inf
  %2402 = vmax.xlane.f32.xlu0 %v2401
  %v2403 = vpop.xlane.xlu0 %2402
  %v2404 = vsel %vm137, %v2400, -inf
  %2405 = vmax.xlane.f32.xlu0 %v2404
  %v2406 = vpop.xlane.xlu0 %2405
  %v2407 = vsub.f32 %v2399, %v2403
  %v2408 = vsub.f32 %v2400, %v2406
  %v2409 = vmul.f32 %v2407, 1.442695
  %v2410 = vpow.pop %v2409
  %v2411 = vmul.f32 %v2408, 1.442695
  %v2412 = vpow.pop %v2411
  %v2413 = vsel %vm137, %v2410, 0.0
  %2414 = vadd.xlane.f32.xlu0 %v2413
  %v2415 = vpop.xlane.xlu0 %2414
  %v2416 = vsel %vm137, %v2412, 0.0
  %2417 = vadd.xlane.f32.xlu0 %v2416
  %v2418 = vpop.xlane.xlu0 %2417
  %v2419 = vrcp.pop %v2415
  %v2420 = vrcp.pop %v2418
  %v2421 = vmul.f32 %v2410, %v2419
  %v2422 = vmul.f32 %v2412, %v2420
  %v2423 = vpack.c.bf16 %v2422, %v2421
  %v2425 = vsel %vm137, %v2423, 0
  %2427 = vmatprep.subr.bf16.mxu0 0
  %2428 = vmatpush1.bf16.msra.mxu0 %v2355
  %2429 = vmatprep.subr.bf16.mxu0 0
  %2430 = vmatpush1.bf16.msra.mxu0 0
  %2431 = vmatprep.subr.bf16.mxu0 0
  %2432 = vmatpush1.bf16.msra.mxu0 0
  %2433 = vmatprep.subr.bf16.mxu0 0
  %2434 = vmatpush1.bf16.msra.mxu0 0
  %2435 = vmatprep.subr.bf16.mxu0 0
  %2436 = vmatpush1.bf16.msra.mxu0 0
  %2437 = vmatprep.subr.bf16.mxu0 0
  %2438 = vmatpush1.bf16.msra.mxu0 0
  %2439 = vmatprep.subr.bf16.mxu0 0
  %2440 = vmatpush1.bf16.msra.mxu0 0
  %2441 = vmatprep.subr.bf16.mxu0 0
  %2442 = vmatpush1.bf16.msra.mxu0 0
  %2443 = vmatprep.subr.bf16.mxu0 0
  %2444 = vmatpush1.bf16.msra.mxu0 0
  %2445 = vmatprep.subr.bf16.mxu0 0
  %2446 = vmatpush1.bf16.msra.mxu0 0
  %2447 = vmatprep.subr.bf16.mxu0 0
  %2448 = vmatpush1.bf16.msra.mxu0 0
  %2449 = vmatprep.subr.bf16.mxu0 0
  %2450 = vmatpush1.bf16.msra.mxu0 0
  %2451 = vmatprep.subr.bf16.mxu0 0
  %2452 = vmatpush1.bf16.msra.mxu0 0
  %2453 = vmatprep.subr.bf16.mxu0 0
  %2454 = vmatpush1.bf16.msra.mxu0 0
  %2455 = vmatprep.subr.bf16.mxu0 0
  %2456 = vmatpush1.bf16.msra.mxu0 0
  %2457 = vmatprep.subr.bf16.mxu0 0
  %2458 = vmatpush1.bf16.msra.mxu0 0
  %2459 = vmatprep.mubr.bf16.mxu0 0
  %2460 = vmatmul.mubr.bf16.gmra.mrb[0].mxu0 %v2425
  %v2461 = vpop.f32.mrb[0].mxu0
  %v2462 = vadd.f32 0.0, %v2461
  %v2463 = vpop.f32.mrb[0].mxu0
  %v2464 = vpop.f32.mrb[0].mxu0
  %v2465 = vadd.f32 0.0, %v2464
  %v2466 = vpop.f32.mrb[0].mxu0
  %2467 = vdwg.mxu0
  %v2468 = vpack.c.bf16 %v2306, %v2302
  %v2469 = vpack.c.bf16 %v2347, %v2343
  %v2470 = vpack.c.bf16 %v2349, %v2345
  %2471 = vmatprep.subr.bf16.mxu0 0
  %2472 = vmatpush1.bf16.xpose.msra.mxu0 %v2469
  %2473 = vmatprep.subr.bf16.mxu0 0
  %2474 = vmatpush1.bf16.xpose.msra.mxu0 0
  %2475 = vmatprep.subr.bf16.mxu0 0
  %2476 = vmatpush1.bf16.xpose.msra.mxu0 0
  %2477 = vmatprep.subr.bf16.mxu0 0
  %2478 = vmatpush1.bf16.xpose.msra.mxu0 0
  %2479 = vmatprep.subr.bf16.mxu0 0
  %2480 = vmatpush1.bf16.xpose.msra.mxu0 0
  %2481 = vmatprep.subr.bf16.mxu0 0
  %2482 = vmatpush1.bf16.xpose.msra.mxu0 0
  %2483 = vmatprep.subr.bf16.mxu0 0
  %2484 = vmatpush1.bf16.xpose.msra.mxu0 0
  %2485 = vmatprep.subr.bf16.mxu0 0
  %2486 = vmatpush1.bf16.xpose.msra.mxu0 0
  %2487 = vmatprep.subr.bf16.mxu0 0
  %2488 = vmatpush1.bf16.xpose.msra.mxu0 0
  %2489 = vmatprep.subr.bf16.mxu0 0
  %2490 = vmatpush1.bf16.xpose.msra.mxu0 0
  %2491 = vmatprep.subr.bf16.mxu0 0
  %2492 = vmatpush1.bf16.xpose.msra.mxu0 0
  %2493 = vmatprep.subr.bf16.mxu0 0
  %2494 = vmatpush1.bf16.xpose.msra.mxu0 0
  %2495 = vmatprep.subr.bf16.mxu0 0
  %2496 = vmatpush1.bf16.xpose.msra.mxu0 0
  %2497 = vmatprep.subr.bf16.mxu0 0
  %2498 = vmatpush1.bf16.xpose.msra.mxu0 0
  %2499 = vmatprep.subr.bf16.mxu0 0
  %2500 = vmatpush1.bf16.xpose.msra.mxu0 0
  %2501 = vmatprep.subr.bf16.mxu0 0
  %2502 = vmatpush1.bf16.xpose.msra.mxu0 0
  %2503 = vmatprep.mubr.bf16.mxu0 0
  %2504 = vmatmul.mubr.bf16.gmra.mrb[0].mxu0 %v2468
  %v2505 = vpop.f32.mrb[0].mxu0
  %v2506 = vadd.f32 0.0, %v2505
  %v2507 = vpop.f32.mrb[0].mxu0
  %v2508 = vpop.f32.mrb[0].mxu0
  %v2509 = vadd.f32 0.0, %v2508
  %v2510 = vpop.f32.mrb[0].mxu0
  %2511 = vdwg.mxu0
  %v2512 = vmul.f32 %v2506, 0.28867513
  %v2513 = vmul.f32 %v2509, 0.28867513
  %v2514 = vadd.f32 %v2512, %v2351
  %v2515 = vadd.f32 %v2513, %v2352
  %v2516 = vsel %vm137, %v2514, -inf
  %2517 = vmax.xlane.f32.xlu0 %v2516
  %v2518 = vpop.xlane.xlu0 %2517
  %v2519 = vsel %vm137, %v2515, -inf
  %2520 = vmax.xlane.f32.xlu0 %v2519
  %v2521 = vpop.xlane.xlu0 %2520
  %v2522 = vsub.f32 %v2514, %v2518
  %v2523 = vsub.f32 %v2515, %v2521
  %v2524 = vmul.f32 %v2522, 1.442695
  %v2525 = vpow.pop %v2524
  %v2526 = vmul.f32 %v2523, 1.442695
  %v2527 = vpow.pop %v2526
  %v2528 = vsel %vm137, %v2525, 0.0
  %2529 = vadd.xlane.f32.xlu0 %v2528
  %v2530 = vpop.xlane.xlu0 %2529
  %v2531 = vsel %vm137, %v2527, 0.0
  %2532 = vadd.xlane.f32.xlu0 %v2531
  %v2533 = vpop.xlane.xlu0 %2532
  %v2534 = vrcp.pop %v2530
  %v2535 = vrcp.pop %v2533
  %v2536 = vmul.f32 %v2525, %v2534
  %v2537 = vmul.f32 %v2527, %v2535
  %v2538 = vpack.c.bf16 %v2537, %v2536
  %v2540 = vsel %vm137, %v2538, 0
  %2542 = vmatprep.subr.bf16.mxu0 0
  %2543 = vmatpush1.bf16.msra.mxu0 %v2470
  %2544 = vmatprep.subr.bf16.mxu0 0
  %2545 = vmatpush1.bf16.msra.mxu0 0
  %2546 = vmatprep.subr.bf16.mxu0 0
  %2547 = vmatpush1.bf16.msra.mxu0 0
  %2548 = vmatprep.subr.bf16.mxu0 0
  %2549 = vmatpush1.bf16.msra.mxu0 0
  %2550 = vmatprep.subr.bf16.mxu0 0
  %2551 = vmatpush1.bf16.msra.mxu0 0
  %2552 = vmatprep.subr.bf16.mxu0 0
  %2553 = vmatpush1.bf16.msra.mxu0 0
  %2554 = vmatprep.subr.bf16.mxu0 0
  %2555 = vmatpush1.bf16.msra.mxu0 0
  %2556 = vmatprep.subr.bf16.mxu0 0
  %2557 = vmatpush1.bf16.msra.mxu0 0
  %2558 = vmatprep.subr.bf16.mxu0 0
  %2559 = vmatpush1.bf16.msra.mxu0 0
  %2560 = vmatprep.subr.bf16.mxu0 0
  %2561 = vmatpush1.bf16.msra.mxu0 0
  %2562 = vmatprep.subr.bf16.mxu0 0
  %2563 = vmatpush1.bf16.msra.mxu0 0
  %2564 = vmatprep.subr.bf16.mxu0 0
  %2565 = vmatpush1.bf16.msra.mxu0 0
  %2566 = vmatprep.subr.bf16.mxu0 0
  %2567 = vmatpush1.bf16.msra.mxu0 0
  %2568 = vmatprep.subr.bf16.mxu0 0
  %2569 = vmatpush1.bf16.msra.mxu0 0
  %2570 = vmatprep.subr.bf16.mxu0 0
  %2571 = vmatpush1.bf16.msra.mxu0 0
  %2572 = vmatprep.subr.bf16.mxu0 0
  %2573 = vmatpush1.bf16.msra.mxu0 0
  %2574 = vmatprep.mubr.bf16.mxu0 0
  %2575 = vmatmul.mubr.bf16.gmra.mrb[0].mxu0 %v2540
  %v2576 = vpop.f32.mrb[0].mxu0
  %v2577 = vadd.f32 0.0, %v2576
  %v2578 = vpop.f32.mrb[0].mxu0
  %v2579 = vpop.f32.mrb[0].mxu0
  %v2580 = vadd.f32 0.0, %v2579
  %v2581 = vpop.f32.mrb[0].mxu0
  %2582 = vdwg.mxu0
  %v2583 = vpack.c.bf16 %v2465, %v2462
  %v2584 = vpack.c.bf16 %v2580, %v2577
  %v2585 = vld [vmem:[%s13] sm:$0xf]
  %v2586 = vld [vmem:[%s13 + $0x4] sm:$0xf]
  %v2587 = vld [vmem:[%s13 + $0x8] sm:$0xf]
  %v2588 = vld [vmem:[%s13 + $0xc] sm:$0xf]
  %v2589 = vld [vmem:[%s13 + $0x10] sm:$0xf]
  %v2590 = vld [vmem:[%s13 + $0x14] sm:$0xf]
  %v2591 = vld [vmem:[%s13 + $0x18] sm:$0xf]
  %v2592 = vld [vmem:[%s13 + $0x1c] sm:$0xf]
  %v2593 = vld [vmem:[%s13 + $0x20] sm:$0xf]
  %v2594 = vld [vmem:[%s13 + $0x24] sm:$0xf]
  %v2595 = vld [vmem:[%s13 + $0x28] sm:$0xf]
  %v2596 = vld [vmem:[%s13 + $0x2c] sm:$0xf]
  %v2597 = vld [vmem:[%s13 + $0x30] sm:$0xf]
  %v2598 = vld [vmem:[%s13 + $0x34] sm:$0xf]
  %v2599 = vld [vmem:[%s13 + $0x38] sm:$0xf]
  %v2600 = vld [vmem:[%s13 + $0x3c] sm:$0xf]
  %v2601 = vld [vmem:[%s13 + $0x40] sm:$0xf]
  %v2602 = vld [vmem:[%s13 + $0x44] sm:$0xf]
  %v2603 = vld [vmem:[%s13 + $0x48] sm:$0xf]
  %v2604 = vld [vmem:[%s13 + $0x4c] sm:$0xf]
  %v2605 = vld [vmem:[%s13 + $0x50] sm:$0xf]
  %v2606 = vld [vmem:[%s13 + $0x54] sm:$0xf]
  %v2607 = vld [vmem:[%s13 + $0x58] sm:$0xf]
  %v2608 = vld [vmem:[%s13 + $0x5c] sm:$0xf]
  %v2609 = vld [vmem:[%s13 + $0x60] sm:$0xf]
  %v2610 = vld [vmem:[%s13 + $0x64] sm:$0xf]
  %v2611 = vld [vmem:[%s13 + $0x68] sm:$0xf]
  %v2612 = vld [vmem:[%s13 + $0x6c] sm:$0xf]
  %v2613 = vld [vmem:[%s13 + $0x70] sm:$0xf]
  %v2614 = vld [vmem:[%s13 + $0x74] sm:$0xf]
  %v2615 = vld [vmem:[%s13 + $0x78] sm:$0xf]
  %v2616 = vld [vmem:[%s13 + $0x7c] sm:$0xf]
  %v2617 = vld [vmem:[%s14] sm:$0x1]
  %v2619 = vlaneseq
  %v2620 = vshrl.u32 %v2619, 7
  %v2621 = vsub.s32 0, %v2620
  %v2622 = vrot.slane %v2617, %v2621
  %v2656 = vunpack.c.l.b16 %v2585
  %v2657 = vunpack.c.l.b16 %v2586
  %v2658 = vunpack.c.l.b16 %v2587
  %v2659 = vunpack.c.l.b16 %v2588
  %v2660 = vunpack.c.l.b16 %v2589
  %v2661 = vunpack.c.l.b16 %v2590
  %v2662 = vunpack.c.l.b16 %v2591
  %v2663 = vunpack.c.l.b16 %v2592
  %v2664 = vunpack.c.l.b16 %v2593
  %v2665 = vunpack.c.l.b16 %v2594
  %v2666 = vunpack.c.l.b16 %v2595
  %v2667 = vunpack.c.l.b16 %v2596
  %v2668 = vunpack.c.l.b16 %v2597
  %v2669 = vunpack.c.l.b16 %v2598
  %v2670 = vunpack.c.l.b16 %v2599
  %v2671 = vunpack.c.l.b16 %v2600
  %v2672 = vunpack.c.l.b16 %v2601
  %v2673 = vunpack.c.l.b16 %v2602
  %v2674 = vunpack.c.l.b16 %v2603
  %v2675 = vunpack.c.l.b16 %v2604
  %v2676 = vunpack.c.l.b16 %v2605
  %v2677 = vunpack.c.l.b16 %v2606
  %v2678 = vunpack.c.l.b16 %v2607
  %v2679 = vunpack.c.l.b16 %v2608
  %v2680 = vunpack.c.l.b16 %v2609
  %v2681 = vunpack.c.l.b16 %v2610
  %v2682 = vunpack.c.l.b16 %v2611
  %v2683 = vunpack.c.l.b16 %v2612
  %v2684 = vunpack.c.l.b16 %v2613
  %v2685 = vunpack.c.l.b16 %v2614
  %v2686 = vunpack.c.l.b16 %v2615
  %v2687 = vunpack.c.l.b16 %v2616
  %v2688 = vpack.c.b16 %v2657, %v2656
  %v2689 = vpack.c.b16 %v2659, %v2658
  %v2690 = vpack.c.b16 %v2661, %v2660
  %v2691 = vpack.c.b16 %v2663, %v2662
  %v2692 = vpack.c.b16 %v2665, %v2664
  %v2693 = vpack.c.b16 %v2667, %v2666
  %v2694 = vpack.c.b16 %v2669, %v2668
  %v2695 = vpack.c.b16 %v2671, %v2670
  %v2696 = vpack.c.b16 %v2673, %v2672
  %v2697 = vpack.c.b16 %v2675, %v2674
  %v2698 = vpack.c.b16 %v2677, %v2676
  %v2699 = vpack.c.b16 %v2679, %v2678
  %v2700 = vpack.c.b16 %v2681, %v2680
  %v2701 = vpack.c.b16 %v2683, %v2682
  %v2702 = vpack.c.b16 %v2685, %v2684
  %v2703 = vpack.c.b16 %v2687, %v2686
  %2720 = vmatprep.subr.bf16.mxu0 0
  %2721 = vmatpush1.bf16.msra.mxu0 %v2688
  %2722 = vmatprep.subr.bf16.mxu0 0
  %2723 = vmatpush1.bf16.msra.mxu0 %v2689
  %2724 = vmatprep.subr.bf16.mxu0 0
  %2725 = vmatpush1.bf16.msra.mxu0 %v2690
  %2726 = vmatprep.subr.bf16.mxu0 0
  %2727 = vmatpush1.bf16.msra.mxu0 %v2691
  %2728 = vmatprep.subr.bf16.mxu0 0
  %2729 = vmatpush1.bf16.msra.mxu0 %v2692
  %2730 = vmatprep.subr.bf16.mxu0 0
  %2731 = vmatpush1.bf16.msra.mxu0 %v2693
  %2732 = vmatprep.subr.bf16.mxu0 0
  %2733 = vmatpush1.bf16.msra.mxu0 %v2694
  %2734 = vmatprep.subr.bf16.mxu0 0
  %2735 = vmatpush1.bf16.msra.mxu0 %v2695
  %2736 = vmatprep.subr.bf16.mxu0 0
  %2737 = vmatpush1.bf16.msra.mxu0 %v2696
  %2738 = vmatprep.subr.bf16.mxu0 0
  %2739 = vmatpush1.bf16.msra.mxu0 %v2697
  %2740 = vmatprep.subr.bf16.mxu0 0
  %2741 = vmatpush1.bf16.msra.mxu0 %v2698
  %2742 = vmatprep.subr.bf16.mxu0 0
  %2743 = vmatpush1.bf16.msra.mxu0 %v2699
  %2744 = vmatprep.subr.bf16.mxu0 0
  %2745 = vmatpush1.bf16.msra.mxu0 %v2700
  %2746 = vmatprep.subr.bf16.mxu0 0
  %2747 = vmatpush1.bf16.msra.mxu0 %v2701
  %2748 = vmatprep.subr.bf16.mxu0 0
  %2749 = vmatpush1.bf16.msra.mxu0 %v2702
  %2750 = vmatprep.subr.bf16.mxu0 0
  %2751 = vmatpush1.bf16.msra.mxu0 %v2703
  %2752 = vmatprep.mubr.bf16.mxu0 %v2584
  %2753 = vmatmul.mubr.bf16.gmra.mrb[0].mxu0 %v2583
  %v2754 = vpop.f32.mrb[0].mxu0
  %v2755 = vadd.f32 %v2622, %v2754
  %v2756 = vpop.f32.mrb[0].mxu0
  %v2757 = vpop.f32.mrb[0].mxu0
  %v2758 = vadd.f32 %v2622, %v2757
  %v2759 = vpop.f32.mrb[0].mxu0
  %2760 = vdwg.mxu0
  %2761 = vst [vmem:[%s15] sm:$0xff] %v1931
  %2762 = vst [vmem:[%s15 + $0x8] sm:$0xff] %v2462
  %2763 = vst [vmem:[%s15 + $0x10] sm:$0xff] %v2577
  %2764 = vst [vmem:[%s15 + $0x18] sm:$0xff] %v2755
  %2765 = vst [vmem:[%s15 + $0x20] sm:$0xff] %v1932
  %2766 = vst [vmem:[%s15 + $0x28] sm:$0xff] %v2465
  %2767 = vst [vmem:[%s15 + $0x30] sm:$0xff] %v2580
  %2768 = vst [vmem:[%s15 + $0x38] sm:$0xff] %v2758
  // Predicated region
  $region62: #{dense_forward.1} parent=0 // pred_check
    _
  $region63: #{dense_forward.1} parent=0 // pred_check_branch
    %2770 = sbr.rel (0) target = $region65
  $region64: #{dense_forward.1} parent=0 // pred_region
    _
  $region65: #{dense_forward.1} parent=0 // pred_fallthru
    _
  // Predicated region
  $region66: #{dense_forward.1} parent=0 // pred_check
    _
  $region67: #{dense_forward.1} parent=0 // pred_check_branch
    %2772 = sbr.rel (0) target = $region69
  $region68: #{dense_forward.1} parent=0 // pred_region
    _
  $region69: #{dense_forward.1} parent=0 // pred_fallthru
    _

</llo_original>
